<compile_context>
chip_gen: v7x
topology: tpu7x:2x2x1
jax: 0.10.0
libtpu: 0.0.40
codegen_flags: <defaults>
</compile_context>

<pallas_src>
import jax
import jax.numpy as jnp
from jax.experimental import pallas as pl
from jax.experimental.pallas import tpu as pltpu  # noqa: F401

# ---------------- config (consistent with the module) ----------------
N_FEAT      = 32   # d_model
NUM_TASK    = 8    # sequence length
NUM_HEAD    = 4
HIDDEN      = 64   # dim_feedforward
NUM_ENCODER = 2
NUM_CLASSES = 5
BATCH       = 2
HEAD_DIM    = N_FEAT // NUM_HEAD
LN_EPS      = 1e-5
LANES       = 128  # lane width of the packed parameter buffer


# ---------------- packed-parameter layout (host + kernel share it) ----------
def _round8(n):
    return ((n + 7) // 8) * 8


def _build_layout():
    layout = {}
    row = 0

    def add(name, nrows, ncols):
        nonlocal row
        layout[name] = (row, nrows, ncols)
        row += _round8(nrows)          # keep every section sublane-aligned

    B, S, D, C = BATCH, NUM_TASK, N_FEAT, NUM_CLASSES
    add('pe', B * S, D)                # positional encoding, pre-tiled over batch
    add('fc_w2d', D, S * C)            # W2d[d, s*C+c] = fc[s, d, c]
    add('fc_mask', B * S, S * C)       # block-diagonal selector (s == s')
    add('fc_r', S * C, C)              # lane regrouping matrix
    add('fc_lsel', B, B * S)           # per-batch row-sum selector
    add('fc_b', 1, C)
    for l in range(NUM_ENCODER):
        add(f'wqkv{l}', D, 3 * D)      # fused q|k|v projection (scale folded into q)
        add(f'bqkv{l}', 1, 3 * D)
        add(f'wo{l}', D, D)            # (H*Dh, D) output projection
        add(f'bo{l}', 1, D)
        add(f'w1{l}', D, HIDDEN)
        add(f'b1{l}', 1, HIDDEN)
        add(f'w2{l}', HIDDEN, D)
        add(f'b2{l}', 1, D)
        add(f'ln{l}', 4, D)            # rows: ln1_g, ln1_b, ln2_g, ln2_b
    return layout, _round8(row)


LAYOUT, TOTAL_ROWS = _build_layout()


# ---------------- positional encoding table (matches torch formula) ---------
def make_positional_encoding(n_feat, num_task):
    pos = jnp.arange(num_task, dtype=jnp.float32)[:, None]
    i = jnp.arange(n_feat, dtype=jnp.float32)[None, :]
    denom = jnp.power(10000.0, (jnp.floor(i / 2.0) * 2.0) / n_feat)
    pe = pos / denom
    even = (jnp.arange(n_feat) % 2 == 0)[None, :]
    return jnp.where(even, jnp.sin(pe), jnp.cos(pe)).astype(jnp.float32)


# ---------------- fused kernel ------------------------------------------------
def _get(ref, name):
    r0, nr, nc = LAYOUT[name]
    return ref[r0:r0 + nr, 0:nc]


def _layer_norm(x, g, b):
    mu = jnp.mean(x, axis=-1, keepdims=True)
    var = jnp.mean(jnp.square(x - mu), axis=-1, keepdims=True)
    return (x - mu) * jax.lax.rsqrt(var + LN_EPS) * g + b


def fused_transformer_kernel(x_ref, w_ref, o_ref):
    B, S, D, H, Dh = BATCH, NUM_TASK, N_FEAT, NUM_HEAD, HEAD_DIM

    # positional encoding (pre-tiled host-side) added to the flat (B*S, D) block
    x2 = x_ref[...] + _get(w_ref, 'pe')                                   # (B*S, D)

    for l in range(NUM_ENCODER):
        wqkv = _get(w_ref, f'wqkv{l}')                                    # (D, 3D)
        bqkv = _get(w_ref, f'bqkv{l}')                                    # (1, 3D)
        wo   = _get(w_ref, f'wo{l}')                                      # (H*Dh, D)
        bo   = _get(w_ref, f'bo{l}')                                      # (1, D)
        w1   = _get(w_ref, f'w1{l}')                                      # (D, HIDDEN)
        b1   = _get(w_ref, f'b1{l}')                                      # (1, HIDDEN)
        w2   = _get(w_ref, f'w2{l}')                                      # (HIDDEN, D)
        b2   = _get(w_ref, f'b2{l}')                                      # (1, D)
        ln   = _get(w_ref, f'ln{l}')                                      # (4, D)
        g1, be1, g2, be2 = ln[0:1], ln[1:2], ln[2:3], ln[3:4]

        # ---- fused QKV projection: one lane-dense matmul (q-scale pre-folded)
        qkv = jnp.dot(x2, wqkv, preferred_element_type=jnp.float32) + bqkv   # (B*S, 3D)

        # ---- split into merged (B*H, S, Dh) head-batched tensors
        def heads(off):
            return jnp.stack(
                [qkv[b * S:(b + 1) * S, off + h * Dh: off + (h + 1) * Dh]
                 for b in range(B) for h in range(H)], axis=0)
        q = heads(0)
        k = heads(D)
        v = heads(2 * D)

        # ---- scaled dot-product attention, batched over all B*H blocks
        s = jnp.einsum('nqe,nke->nqk', q, k,
                       preferred_element_type=jnp.float32)                # (B*H, S, S)
        s = s - jnp.max(s, axis=-1, keepdims=True)
        p = jnp.exp(s)
        p = p * pl.reciprocal(jnp.sum(p, axis=-1, keepdims=True), approx=False)
        ctx = jnp.einsum('nqk,nke->nqe', p, v,
                         preferred_element_type=jnp.float32)              # (B*H, S, Dh)

        # ---- merge heads along lanes, single output-projection matmul
        ctx_cat = jnp.concatenate(
            [jnp.concatenate([ctx[b * H + h] for h in range(H)], axis=1)
             for b in range(B)], axis=0)                                  # (B*S, H*Dh)
        attn = jnp.dot(ctx_cat, wo, preferred_element_type=jnp.float32) + bo

        # ---- post-norm TransformerEncoderLayer (dropout = identity)
        y = _layer_norm(x2 + attn, g1, be1)
        hmid = jnp.maximum(jnp.dot(y, w1, preferred_element_type=jnp.float32) + b1, 0.0)
        ff = jnp.dot(hmid, w2, preferred_element_type=jnp.float32) + b2
        x2 = _layer_norm(y + ff, g2, be2)

    # ---- classifier: logits = Lsel @ ((x2 @ W2d) * M) @ R + b
    #      (equivalent to reshape(B, S*D) @ fc_w, but with no in-kernel reshape)
    pmat = jnp.dot(x2, _get(w_ref, 'fc_w2d'),
                   preferred_element_type=jnp.float32)                    # (B*S, S*C)
    pmat = pmat * _get(w_ref, 'fc_mask')
    rowc = jnp.dot(pmat, _get(w_ref, 'fc_r'),
                   preferred_element_type=jnp.float32)                    # (B*S, C)
    logits = jnp.dot(_get(w_ref, 'fc_lsel'), rowc,
                     preferred_element_type=jnp.float32)                  # (B, C)
    o_ref[...] = logits + _get(w_ref, 'fc_b')


# ---------------- wrapper -----------------------------------------------------
@jax.jit
def forward(x, packed_params):
    # flatten batch*seq outside the kernel (free XLA reshape)
    x2 = x.reshape(BATCH * NUM_TASK, N_FEAT)
    return pl.pallas_call(
        fused_transformer_kernel,
        out_shape=jax.ShapeDtypeStruct((BATCH, NUM_CLASSES), jnp.float32),
    )(x2, packed_params)
    # TODO(synk): if the effective batch grows, add a ("parallel",) grid over
    # batch chunks so the second TensorCore on v7x is used.


# ---------------- deterministic packed-parameter init -------------------------
def init_packed_params(key):
    L, D, H, Dh = NUM_ENCODER, N_FEAT, NUM_HEAD, HEAD_DIM
    Hid, S, B, C = HIDDEN, NUM_TASK, BATCH, NUM_CLASSES

    n_rand = 2 + L * 8
    kit = iter(jax.random.split(key, n_rand))
    rnd = lambda shape: jax.random.normal(next(kit), shape, dtype=jnp.float32) * 0.05

    sections = {}
    # positional encoding, pre-tiled over batch
    sections['pe'] = jnp.tile(make_positional_encoding(D, S), (B, 1))

    # classifier: fc3[s, d, c] corresponds to W_fc[c, s*D + d]
    fc3 = rnd((S, D, C))
    sections['fc_w2d'] = jnp.transpose(fc3, (1, 0, 2)).reshape(D, S * C)
    rows = jnp.arange(B * S) % S
    cols = jnp.arange(S * C) // C
    sections['fc_mask'] = (rows[:, None] == cols[None, :]).astype(jnp.float32)
    sections['fc_r'] = (jnp.arange(S * C)[:, None] % C
                        == jnp.arange(C)[None, :]).astype(jnp.float32)
    sections['fc_lsel'] = (jnp.arange(B)[:, None]
                           == (jnp.arange(B * S)[None, :] // S)).astype(jnp.float32)
    sections['fc_b'] = rnd((1, C))

    scale = 1.0 / float(Dh) ** 0.5
    for l in range(L):
        wqkv = rnd((D, 3 * D))
        bqkv = rnd((1, 3 * D))
        # fold 1/sqrt(head_dim) into the query projection (zero runtime cost)
        wqkv = wqkv.at[:, 0:D].multiply(scale)
        bqkv = bqkv.at[:, 0:D].multiply(scale)
        sections[f'wqkv{l}'] = wqkv
        sections[f'bqkv{l}'] = bqkv
        sections[f'wo{l}'] = rnd((D, D))
        sections[f'bo{l}'] = rnd((1, D))
        sections[f'w1{l}'] = rnd((D, Hid))
        sections[f'b1{l}'] = rnd((1, Hid))
        sections[f'w2{l}'] = rnd((Hid, D))
        sections[f'b2{l}'] = rnd((1, D))
        sections[f'ln{l}'] = jnp.stack(
            [jnp.ones(D), jnp.zeros(D), jnp.ones(D), jnp.zeros(D)]).astype(jnp.float32)

    buf = jnp.zeros((TOTAL_ROWS, LANES), jnp.float32)
    for name, val in sections.items():
        r0, nr, nc = LAYOUT[name]
        assert val.shape == (nr, nc), (name, val.shape, (nr, nc))
        buf = buf.at[r0:r0 + nr, 0:nc].set(val)
    return buf


if __name__ == "__main__":
    key = jax.random.PRNGKey(0)
    kx, kp = jax.random.split(key)

    x = jax.random.normal(kx, (BATCH, NUM_TASK, N_FEAT), dtype=jnp.float32)
    params = init_packed_params(kp)

    out = forward(x, params)
    out = jax.block_until_ready(out)
    assert out.shape == (BATCH, NUM_CLASSES), out.shape
    print("KERNEL_OK")
</pallas_src>

<mosaic_0001>
module attributes {stable_mosaic.version = 11 : i64} {
  func.func @fused_transformer_kernel(%arg0: memref<16x32xf32, #tpu.memory_space<vmem>>, %arg1: memref<520x128xf32, #tpu.memory_space<vmem>>, %arg2: memref<2x5xf32, #tpu.memory_space<vmem>>) attributes {dimension_semantics = [], scalar_prefetch = 0 : i64, scratch_operands = 0 : i64, tpu.core_type = #tpu.core_type<tc>} {
    %c0 = arith.constant 0 : index
    %c0_0 = arith.constant 0 : index
    %0 = vector.load %arg0[%c0, %c0_0] : memref<16x32xf32, #tpu.memory_space<vmem>>, vector<16x32xf32>
    %c0_1 = arith.constant 0 : index
    %c0_2 = arith.constant 0 : index
    %1 = vector.load %arg1[%c0_1, %c0_2] : memref<520x128xf32, #tpu.memory_space<vmem>>, vector<16x32xf32>
    %2 = arith.addf %0, %1 : vector<16x32xf32>
    %c120 = arith.constant 120 : index
    %c0_3 = arith.constant 0 : index
    %3 = vector.load %arg1[%c120, %c0_3] : memref<520x128xf32, #tpu.memory_space<vmem>>, vector<32x96xf32>
    %c152 = arith.constant 152 : index
    %c0_4 = arith.constant 0 : index
    %4 = vector.load %arg1[%c152, %c0_4] : memref<520x128xf32, #tpu.memory_space<vmem>>, vector<1x96xf32>
    %c160 = arith.constant 160 : index
    %c0_5 = arith.constant 0 : index
    %5 = vector.load %arg1[%c160, %c0_5] : memref<520x128xf32, #tpu.memory_space<vmem>>, vector<32x32xf32>
    %c192 = arith.constant 192 : index
    %c0_6 = arith.constant 0 : index
    %6 = vector.load %arg1[%c192, %c0_6] : memref<520x128xf32, #tpu.memory_space<vmem>>, vector<1x32xf32>
    %c200 = arith.constant 200 : index
    %c0_7 = arith.constant 0 : index
    %7 = vector.load %arg1[%c200, %c0_7] : memref<520x128xf32, #tpu.memory_space<vmem>>, vector<32x64xf32>
    %c232 = arith.constant 232 : index
    %c0_8 = arith.constant 0 : index
    %8 = vector.load %arg1[%c232, %c0_8] : memref<520x128xf32, #tpu.memory_space<vmem>>, vector<1x64xf32>
    %c240 = arith.constant 240 : index
    %c0_9 = arith.constant 0 : index
    %9 = vector.load %arg1[%c240, %c0_9] : memref<520x128xf32, #tpu.memory_space<vmem>>, vector<64x32xf32>
    %c304 = arith.constant 304 : index
    %c0_10 = arith.constant 0 : index
    %10 = vector.load %arg1[%c304, %c0_10] : memref<520x128xf32, #tpu.memory_space<vmem>>, vector<1x32xf32>
    %c312 = arith.constant 312 : index
    %c0_11 = arith.constant 0 : index
    %11 = vector.load %arg1[%c312, %c0_11] : memref<520x128xf32, #tpu.memory_space<vmem>>, vector<4x32xf32>
    %12 = vector.extract_strided_slice %11 {offsets = [0, 0], sizes = [1, 32], strides = [1, 1]} : vector<4x32xf32> to vector<1x32xf32>
    %13 = vector.extract_strided_slice %11 {offsets = [1, 0], sizes = [1, 32], strides = [1, 1]} : vector<4x32xf32> to vector<1x32xf32>
    %14 = vector.extract_strided_slice %11 {offsets = [2, 0], sizes = [1, 32], strides = [1, 1]} : vector<4x32xf32> to vector<1x32xf32>
    %15 = vector.extract_strided_slice %11 {offsets = [3, 0], sizes = [1, 32], strides = [1, 1]} : vector<4x32xf32> to vector<1x32xf32>
    %cst = arith.constant dense<0.000000e+00> : vector<16x96xf32>
    %16 = tpu.matmul %2, %3, %cst {dimension_numbers = #tpu.dot_dimension_numbers<[1], [0], [0], [1], [0, 0, 1, 1], [], []>} : vector<16x32xf32>, vector<32x96xf32>, vector<16x96xf32> -> vector<16x96xf32>
    %17 = vector.broadcast %4 : vector<1x96xf32> to vector<16x96xf32>
    %18 = arith.addf %16, %17 : vector<16x96xf32>
    %19 = vector.extract_strided_slice %18 {offsets = [0, 0], sizes = [8, 8], strides = [1, 1]} : vector<16x96xf32> to vector<8x8xf32>
    %20 = vector.extract_strided_slice %18 {offsets = [0, 8], sizes = [8, 8], strides = [1, 1]} : vector<16x96xf32> to vector<8x8xf32>
    %21 = vector.extract_strided_slice %18 {offsets = [0, 16], sizes = [8, 8], strides = [1, 1]} : vector<16x96xf32> to vector<8x8xf32>
    %22 = vector.extract_strided_slice %18 {offsets = [0, 24], sizes = [8, 8], strides = [1, 1]} : vector<16x96xf32> to vector<8x8xf32>
    %23 = vector.extract_strided_slice %18 {offsets = [8, 0], sizes = [8, 8], strides = [1, 1]} : vector<16x96xf32> to vector<8x8xf32>
    %24 = vector.extract_strided_slice %18 {offsets = [8, 8], sizes = [8, 8], strides = [1, 1]} : vector<16x96xf32> to vector<8x8xf32>
    %25 = vector.extract_strided_slice %18 {offsets = [8, 16], sizes = [8, 8], strides = [1, 1]} : vector<16x96xf32> to vector<8x8xf32>
    %26 = vector.extract_strided_slice %18 {offsets = [8, 24], sizes = [8, 8], strides = [1, 1]} : vector<16x96xf32> to vector<8x8xf32>
    %27 = vector.shape_cast %19 : vector<8x8xf32> to vector<1x8x8xf32>
    %28 = vector.shape_cast %20 : vector<8x8xf32> to vector<1x8x8xf32>
    %29 = vector.shape_cast %21 : vector<8x8xf32> to vector<1x8x8xf32>
    %30 = vector.shape_cast %22 : vector<8x8xf32> to vector<1x8x8xf32>
    %31 = vector.shape_cast %23 : vector<8x8xf32> to vector<1x8x8xf32>
    %32 = vector.shape_cast %24 : vector<8x8xf32> to vector<1x8x8xf32>
    %33 = vector.shape_cast %25 : vector<8x8xf32> to vector<1x8x8xf32>
    %34 = vector.shape_cast %26 : vector<8x8xf32> to vector<1x8x8xf32>
    %35 = tpu.concatenate %27, %28, %29, %30, %31, %32, %33, %34 in 0 : vector<1x8x8xf32>, vector<1x8x8xf32>, vector<1x8x8xf32>, vector<1x8x8xf32>, vector<1x8x8xf32>, vector<1x8x8xf32>, vector<1x8x8xf32>, vector<1x8x8xf32> -> vector<8x8x8xf32>
    %36 = vector.extract_strided_slice %18 {offsets = [0, 32], sizes = [8, 8], strides = [1, 1]} : vector<16x96xf32> to vector<8x8xf32>
    %37 = vector.extract_strided_slice %18 {offsets = [0, 40], sizes = [8, 8], strides = [1, 1]} : vector<16x96xf32> to vector<8x8xf32>
    %38 = vector.extract_strided_slice %18 {offsets = [0, 48], sizes = [8, 8], strides = [1, 1]} : vector<16x96xf32> to vector<8x8xf32>
    %39 = vector.extract_strided_slice %18 {offsets = [0, 56], sizes = [8, 8], strides = [1, 1]} : vector<16x96xf32> to vector<8x8xf32>
    %40 = vector.extract_strided_slice %18 {offsets = [8, 32], sizes = [8, 8], strides = [1, 1]} : vector<16x96xf32> to vector<8x8xf32>
    %41 = vector.extract_strided_slice %18 {offsets = [8, 40], sizes = [8, 8], strides = [1, 1]} : vector<16x96xf32> to vector<8x8xf32>
    %42 = vector.extract_strided_slice %18 {offsets = [8, 48], sizes = [8, 8], strides = [1, 1]} : vector<16x96xf32> to vector<8x8xf32>
    %43 = vector.extract_strided_slice %18 {offsets = [8, 56], sizes = [8, 8], strides = [1, 1]} : vector<16x96xf32> to vector<8x8xf32>
    %44 = vector.shape_cast %36 : vector<8x8xf32> to vector<1x8x8xf32>
    %45 = vector.shape_cast %37 : vector<8x8xf32> to vector<1x8x8xf32>
    %46 = vector.shape_cast %38 : vector<8x8xf32> to vector<1x8x8xf32>
    %47 = vector.shape_cast %39 : vector<8x8xf32> to vector<1x8x8xf32>
    %48 = vector.shape_cast %40 : vector<8x8xf32> to vector<1x8x8xf32>
    %49 = vector.shape_cast %41 : vector<8x8xf32> to vector<1x8x8xf32>
    %50 = vector.shape_cast %42 : vector<8x8xf32> to vector<1x8x8xf32>
    %51 = vector.shape_cast %43 : vector<8x8xf32> to vector<1x8x8xf32>
    %52 = tpu.concatenate %44, %45, %46, %47, %48, %49, %50, %51 in 0 : vector<1x8x8xf32>, vector<1x8x8xf32>, vector<1x8x8xf32>, vector<1x8x8xf32>, vector<1x8x8xf32>, vector<1x8x8xf32>, vector<1x8x8xf32>, vector<1x8x8xf32> -> vector<8x8x8xf32>
    %53 = vector.extract_strided_slice %18 {offsets = [0, 64], sizes = [8, 8], strides = [1, 1]} : vector<16x96xf32> to vector<8x8xf32>
    %54 = vector.extract_strided_slice %18 {offsets = [0, 72], sizes = [8, 8], strides = [1, 1]} : vector<16x96xf32> to vector<8x8xf32>
    %55 = vector.extract_strided_slice %18 {offsets = [0, 80], sizes = [8, 8], strides = [1, 1]} : vector<16x96xf32> to vector<8x8xf32>
    %56 = vector.extract_strided_slice %18 {offsets = [0, 88], sizes = [8, 8], strides = [1, 1]} : vector<16x96xf32> to vector<8x8xf32>
    %57 = vector.extract_strided_slice %18 {offsets = [8, 64], sizes = [8, 8], strides = [1, 1]} : vector<16x96xf32> to vector<8x8xf32>
    %58 = vector.extract_strided_slice %18 {offsets = [8, 72], sizes = [8, 8], strides = [1, 1]} : vector<16x96xf32> to vector<8x8xf32>
    %59 = vector.extract_strided_slice %18 {offsets = [8, 80], sizes = [8, 8], strides = [1, 1]} : vector<16x96xf32> to vector<8x8xf32>
    %60 = vector.extract_strided_slice %18 {offsets = [8, 88], sizes = [8, 8], strides = [1, 1]} : vector<16x96xf32> to vector<8x8xf32>
    %61 = vector.shape_cast %53 : vector<8x8xf32> to vector<1x8x8xf32>
    %62 = vector.shape_cast %54 : vector<8x8xf32> to vector<1x8x8xf32>
    %63 = vector.shape_cast %55 : vector<8x8xf32> to vector<1x8x8xf32>
    %64 = vector.shape_cast %56 : vector<8x8xf32> to vector<1x8x8xf32>
    %65 = vector.shape_cast %57 : vector<8x8xf32> to vector<1x8x8xf32>
    %66 = vector.shape_cast %58 : vector<8x8xf32> to vector<1x8x8xf32>
    %67 = vector.shape_cast %59 : vector<8x8xf32> to vector<1x8x8xf32>
    %68 = vector.shape_cast %60 : vector<8x8xf32> to vector<1x8x8xf32>
    %69 = tpu.concatenate %61, %62, %63, %64, %65, %66, %67, %68 in 0 : vector<1x8x8xf32>, vector<1x8x8xf32>, vector<1x8x8xf32>, vector<1x8x8xf32>, vector<1x8x8xf32>, vector<1x8x8xf32>, vector<1x8x8xf32>, vector<1x8x8xf32> -> vector<8x8x8xf32>
    "tpu.trace_start"() <{level = 10 : i32, message = "nqe,nke->nqk"}> : () -> ()
    %cst_12 = arith.constant dense<0.000000e+00> : vector<8x8x8xf32>
    %70 = tpu.matmul %35, %52, %cst_12 {dimension_numbers = #tpu.dot_dimension_numbers<[2], [2], [1], [1], [0, 0, 0, 1, 1, 1], [0], [0]>} : vector<8x8x8xf32>, vector<8x8x8xf32>, vector<8x8x8xf32> -> vector<8x8x8xf32>
    "tpu.trace_stop"() : () -> ()
    %cst_13 = arith.constant dense<0xFF800000> : vector<8x8xf32>
    %71 = vector.multi_reduction <maximumf>, %70, %cst_13 [2] : vector<8x8x8xf32> to vector<8x8xf32>
    %72 = vector.shape_cast %71 : vector<8x8xf32> to vector<8x8x1xf32>
    %73 = vector.broadcast %72 : vector<8x8x1xf32> to vector<8x8x8xf32>
    %74 = arith.subf %70, %73 : vector<8x8x8xf32>
    %75 = math.exp %74 : vector<8x8x8xf32>
    %cst_14 = arith.constant dense<0.000000e+00> : vector<8x8xf32>
    %76 = vector.multi_reduction <add>, %75, %cst_14 [2] : vector<8x8x8xf32> to vector<8x8xf32>
    %77 = vector.shape_cast %76 : vector<8x8xf32> to vector<8x8x1xf32>
    %78 = tpu.reciprocal %77 : vector<8x8x1xf32> -> vector<8x8x1xf32>
    %79 = vector.broadcast %78 : vector<8x8x1xf32> to vector<8x8x8xf32>
    %80 = arith.mulf %75, %79 : vector<8x8x8xf32>
    "tpu.trace_start"() <{level = 10 : i32, message = "nqk,nke->nqe"}> : () -> ()
    %cst_15 = arith.constant dense<0.000000e+00> : vector<8x8x8xf32>
    %81 = tpu.matmul %80, %69, %cst_15 {dimension_numbers = #tpu.dot_dimension_numbers<[2], [1], [1], [2], [0, 0, 0, 1, 1, 2], [0], [0]>} : vector<8x8x8xf32>, vector<8x8x8xf32>, vector<8x8x8xf32> -> vector<8x8x8xf32>
    "tpu.trace_stop"() : () -> ()
    %82 = vector.extract_strided_slice %81 {offsets = [0, 0, 0], sizes = [1, 8, 8], strides = [1, 1, 1]} : vector<8x8x8xf32> to vector<1x8x8xf32>
    %83 = vector.shape_cast %82 : vector<1x8x8xf32> to vector<8x8xf32>
    %84 = vector.extract_strided_slice %81 {offsets = [1, 0, 0], sizes = [1, 8, 8], strides = [1, 1, 1]} : vector<8x8x8xf32> to vector<1x8x8xf32>
    %85 = vector.shape_cast %84 : vector<1x8x8xf32> to vector<8x8xf32>
    %86 = vector.extract_strided_slice %81 {offsets = [2, 0, 0], sizes = [1, 8, 8], strides = [1, 1, 1]} : vector<8x8x8xf32> to vector<1x8x8xf32>
    %87 = vector.shape_cast %86 : vector<1x8x8xf32> to vector<8x8xf32>
    %88 = vector.extract_strided_slice %81 {offsets = [3, 0, 0], sizes = [1, 8, 8], strides = [1, 1, 1]} : vector<8x8x8xf32> to vector<1x8x8xf32>
    %89 = vector.shape_cast %88 : vector<1x8x8xf32> to vector<8x8xf32>
    %90 = tpu.concatenate %83, %85, %87, %89 in 1 : vector<8x8xf32>, vector<8x8xf32>, vector<8x8xf32>, vector<8x8xf32> -> vector<8x32xf32>
    %91 = vector.extract_strided_slice %81 {offsets = [4, 0, 0], sizes = [1, 8, 8], strides = [1, 1, 1]} : vector<8x8x8xf32> to vector<1x8x8xf32>
    %92 = vector.shape_cast %91 : vector<1x8x8xf32> to vector<8x8xf32>
    %93 = vector.extract_strided_slice %81 {offsets = [5, 0, 0], sizes = [1, 8, 8], strides = [1, 1, 1]} : vector<8x8x8xf32> to vector<1x8x8xf32>
    %94 = vector.shape_cast %93 : vector<1x8x8xf32> to vector<8x8xf32>
    %95 = vector.extract_strided_slice %81 {offsets = [6, 0, 0], sizes = [1, 8, 8], strides = [1, 1, 1]} : vector<8x8x8xf32> to vector<1x8x8xf32>
    %96 = vector.shape_cast %95 : vector<1x8x8xf32> to vector<8x8xf32>
    %97 = vector.extract_strided_slice %81 {offsets = [7, 0, 0], sizes = [1, 8, 8], strides = [1, 1, 1]} : vector<8x8x8xf32> to vector<1x8x8xf32>
    %98 = vector.shape_cast %97 : vector<1x8x8xf32> to vector<8x8xf32>
    %99 = tpu.concatenate %92, %94, %96, %98 in 1 : vector<8x8xf32>, vector<8x8xf32>, vector<8x8xf32>, vector<8x8xf32> -> vector<8x32xf32>
    %100 = tpu.concatenate %90, %99 in 0 : vector<8x32xf32>, vector<8x32xf32> -> vector<16x32xf32>
    %cst_16 = arith.constant dense<0.000000e+00> : vector<16x32xf32>
    %101 = tpu.matmul %100, %5, %cst_16 {dimension_numbers = #tpu.dot_dimension_numbers<[1], [0], [0], [1], [0, 0, 1, 1], [], []>} : vector<16x32xf32>, vector<32x32xf32>, vector<16x32xf32> -> vector<16x32xf32>
    %102 = vector.broadcast %6 : vector<1x32xf32> to vector<16x32xf32>
    %103 = arith.addf %101, %102 : vector<16x32xf32>
    %104 = arith.addf %2, %103 : vector<16x32xf32>
    %cst_17 = arith.constant dense<0.000000e+00> : vector<16xf32>
    %105 = vector.multi_reduction <add>, %104, %cst_17 [1] : vector<16x32xf32> to vector<16xf32>
    %106 = vector.shape_cast %105 : vector<16xf32> to vector<16x1xf32>
    %cst_18 = arith.constant 3.200000e+01 : f32
    %107 = vector.broadcast %cst_18 : f32 to vector<16x1xf32>
    %108 = arith.divf %106, %107 : vector<16x1xf32>
    %109 = vector.broadcast %108 : vector<16x1xf32> to vector<16x32xf32>
    %110 = arith.subf %104, %109 : vector<16x32xf32>
    %111 = arith.mulf %110, %110 : vector<16x32xf32>
    %cst_19 = arith.constant dense<0.000000e+00> : vector<16xf32>
    %112 = vector.multi_reduction <add>, %111, %cst_19 [1] : vector<16x32xf32> to vector<16xf32>
    %113 = vector.shape_cast %112 : vector<16xf32> to vector<16x1xf32>
    %cst_20 = arith.constant 3.200000e+01 : f32
    %114 = vector.broadcast %cst_20 : f32 to vector<16x1xf32>
    %115 = arith.divf %113, %114 : vector<16x1xf32>
    %116 = vector.broadcast %108 : vector<16x1xf32> to vector<16x32xf32>
    %117 = arith.subf %104, %116 : vector<16x32xf32>
    %cst_21 = arith.constant 9.99999974E-6 : f32
    %118 = vector.broadcast %cst_21 : f32 to vector<16x1xf32>
    %119 = arith.addf %115, %118 : vector<16x1xf32>
    %120 = math.rsqrt %119 : vector<16x1xf32>
    %121 = vector.broadcast %120 : vector<16x1xf32> to vector<16x32xf32>
    %122 = arith.mulf %117, %121 : vector<16x32xf32>
    %123 = vector.broadcast %12 : vector<1x32xf32> to vector<16x32xf32>
    %124 = arith.mulf %122, %123 : vector<16x32xf32>
    %125 = vector.broadcast %13 : vector<1x32xf32> to vector<16x32xf32>
    %126 = arith.addf %124, %125 : vector<16x32xf32>
    %cst_22 = arith.constant dense<0.000000e+00> : vector<16x64xf32>
    %127 = tpu.matmul %126, %7, %cst_22 {dimension_numbers = #tpu.dot_dimension_numbers<[1], [0], [0], [1], [0, 0, 1, 1], [], []>} : vector<16x32xf32>, vector<32x64xf32>, vector<16x64xf32> -> vector<16x64xf32>
    %128 = vector.broadcast %8 : vector<1x64xf32> to vector<16x64xf32>
    %129 = arith.addf %127, %128 : vector<16x64xf32>
    %cst_23 = arith.constant 0.000000e+00 : f32
    %130 = vector.broadcast %cst_23 : f32 to vector<16x64xf32>
    %131 = arith.maximumf %129, %130 : vector<16x64xf32>
    %cst_24 = arith.constant dense<0.000000e+00> : vector<16x32xf32>
    %132 = tpu.matmul %131, %9, %cst_24 {dimension_numbers = #tpu.dot_dimension_numbers<[1], [0], [0], [1], [0, 0, 1, 1], [], []>} : vector<16x64xf32>, vector<64x32xf32>, vector<16x32xf32> -> vector<16x32xf32>
    %133 = vector.broadcast %10 : vector<1x32xf32> to vector<16x32xf32>
    %134 = arith.addf %132, %133 : vector<16x32xf32>
    %135 = arith.addf %126, %134 : vector<16x32xf32>
    %cst_25 = arith.constant dense<0.000000e+00> : vector<16xf32>
    %136 = vector.multi_reduction <add>, %135, %cst_25 [1] : vector<16x32xf32> to vector<16xf32>
    %137 = vector.shape_cast %136 : vector<16xf32> to vector<16x1xf32>
    %cst_26 = arith.constant 3.200000e+01 : f32
    %138 = vector.broadcast %cst_26 : f32 to vector<16x1xf32>
    %139 = arith.divf %137, %138 : vector<16x1xf32>
    %140 = vector.broadcast %139 : vector<16x1xf32> to vector<16x32xf32>
    %141 = arith.subf %135, %140 : vector<16x32xf32>
    %142 = arith.mulf %141, %141 : vector<16x32xf32>
    %cst_27 = arith.constant dense<0.000000e+00> : vector<16xf32>
    %143 = vector.multi_reduction <add>, %142, %cst_27 [1] : vector<16x32xf32> to vector<16xf32>
    %144 = vector.shape_cast %143 : vector<16xf32> to vector<16x1xf32>
    %cst_28 = arith.constant 3.200000e+01 : f32
    %145 = vector.broadcast %cst_28 : f32 to vector<16x1xf32>
    %146 = arith.divf %144, %145 : vector<16x1xf32>
    %147 = vector.broadcast %139 : vector<16x1xf32> to vector<16x32xf32>
    %148 = arith.subf %135, %147 : vector<16x32xf32>
    %cst_29 = arith.constant 9.99999974E-6 : f32
    %149 = vector.broadcast %cst_29 : f32 to vector<16x1xf32>
    %150 = arith.addf %146, %149 : vector<16x1xf32>
    %151 = math.rsqrt %150 : vector<16x1xf32>
    %152 = vector.broadcast %151 : vector<16x1xf32> to vector<16x32xf32>
    %153 = arith.mulf %148, %152 : vector<16x32xf32>
    %154 = vector.broadcast %14 : vector<1x32xf32> to vector<16x32xf32>
    %155 = arith.mulf %153, %154 : vector<16x32xf32>
    %156 = vector.broadcast %15 : vector<1x32xf32> to vector<16x32xf32>
    %157 = arith.addf %155, %156 : vector<16x32xf32>
    %c320 = arith.constant 320 : index
    %c0_30 = arith.constant 0 : index
    %158 = vector.load %arg1[%c320, %c0_30] : memref<520x128xf32, #tpu.memory_space<vmem>>, vector<32x96xf32>
    %c352 = arith.constant 352 : index
    %c0_31 = arith.constant 0 : index
    %159 = vector.load %arg1[%c352, %c0_31] : memref<520x128xf32, #tpu.memory_space<vmem>>, vector<1x96xf32>
    %c360 = arith.constant 360 : index
    %c0_32 = arith.constant 0 : index
    %160 = vector.load %arg1[%c360, %c0_32] : memref<520x128xf32, #tpu.memory_space<vmem>>, vector<32x32xf32>
    %c392 = arith.constant 392 : index
    %c0_33 = arith.constant 0 : index
    %161 = vector.load %arg1[%c392, %c0_33] : memref<520x128xf32, #tpu.memory_space<vmem>>, vector<1x32xf32>
    %c400 = arith.constant 400 : index
    %c0_34 = arith.constant 0 : index
    %162 = vector.load %arg1[%c400, %c0_34] : memref<520x128xf32, #tpu.memory_space<vmem>>, vector<32x64xf32>
    %c432 = arith.constant 432 : index
    %c0_35 = arith.constant 0 : index
    %163 = vector.load %arg1[%c432, %c0_35] : memref<520x128xf32, #tpu.memory_space<vmem>>, vector<1x64xf32>
    %c440 = arith.constant 440 : index
    %c0_36 = arith.constant 0 : index
    %164 = vector.load %arg1[%c440, %c0_36] : memref<520x128xf32, #tpu.memory_space<vmem>>, vector<64x32xf32>
    %c504 = arith.constant 504 : index
    %c0_37 = arith.constant 0 : index
    %165 = vector.load %arg1[%c504, %c0_37] : memref<520x128xf32, #tpu.memory_space<vmem>>, vector<1x32xf32>
    %c512 = arith.constant 512 : index
    %c0_38 = arith.constant 0 : index
    %166 = vector.load %arg1[%c512, %c0_38] : memref<520x128xf32, #tpu.memory_space<vmem>>, vector<4x32xf32>
    %167 = vector.extract_strided_slice %166 {offsets = [0, 0], sizes = [1, 32], strides = [1, 1]} : vector<4x32xf32> to vector<1x32xf32>
    %168 = vector.extract_strided_slice %166 {offsets = [1, 0], sizes = [1, 32], strides = [1, 1]} : vector<4x32xf32> to vector<1x32xf32>
    %169 = vector.extract_strided_slice %166 {offsets = [2, 0], sizes = [1, 32], strides = [1, 1]} : vector<4x32xf32> to vector<1x32xf32>
    %170 = vector.extract_strided_slice %166 {offsets = [3, 0], sizes = [1, 32], strides = [1, 1]} : vector<4x32xf32> to vector<1x32xf32>
    %cst_39 = arith.constant dense<0.000000e+00> : vector<16x96xf32>
    %171 = tpu.matmul %157, %158, %cst_39 {dimension_numbers = #tpu.dot_dimension_numbers<[1], [0], [0], [1], [0, 0, 1, 1], [], []>} : vector<16x32xf32>, vector<32x96xf32>, vector<16x96xf32> -> vector<16x96xf32>
    %172 = vector.broadcast %159 : vector<1x96xf32> to vector<16x96xf32>
    %173 = arith.addf %171, %172 : vector<16x96xf32>
    %174 = vector.extract_strided_slice %173 {offsets = [0, 0], sizes = [8, 8], strides = [1, 1]} : vector<16x96xf32> to vector<8x8xf32>
    %175 = vector.extract_strided_slice %173 {offsets = [0, 8], sizes = [8, 8], strides = [1, 1]} : vector<16x96xf32> to vector<8x8xf32>
    %176 = vector.extract_strided_slice %173 {offsets = [0, 16], sizes = [8, 8], strides = [1, 1]} : vector<16x96xf32> to vector<8x8xf32>
    %177 = vector.extract_strided_slice %173 {offsets = [0, 24], sizes = [8, 8], strides = [1, 1]} : vector<16x96xf32> to vector<8x8xf32>
    %178 = vector.extract_strided_slice %173 {offsets = [8, 0], sizes = [8, 8], strides = [1, 1]} : vector<16x96xf32> to vector<8x8xf32>
    %179 = vector.extract_strided_slice %173 {offsets = [8, 8], sizes = [8, 8], strides = [1, 1]} : vector<16x96xf32> to vector<8x8xf32>
    %180 = vector.extract_strided_slice %173 {offsets = [8, 16], sizes = [8, 8], strides = [1, 1]} : vector<16x96xf32> to vector<8x8xf32>
    %181 = vector.extract_strided_slice %173 {offsets = [8, 24], sizes = [8, 8], strides = [1, 1]} : vector<16x96xf32> to vector<8x8xf32>
    %182 = vector.shape_cast %174 : vector<8x8xf32> to vector<1x8x8xf32>
    %183 = vector.shape_cast %175 : vector<8x8xf32> to vector<1x8x8xf32>
    %184 = vector.shape_cast %176 : vector<8x8xf32> to vector<1x8x8xf32>
    %185 = vector.shape_cast %177 : vector<8x8xf32> to vector<1x8x8xf32>
    %186 = vector.shape_cast %178 : vector<8x8xf32> to vector<1x8x8xf32>
    %187 = vector.shape_cast %179 : vector<8x8xf32> to vector<1x8x8xf32>
    %188 = vector.shape_cast %180 : vector<8x8xf32> to vector<1x8x8xf32>
    %189 = vector.shape_cast %181 : vector<8x8xf32> to vector<1x8x8xf32>
    %190 = tpu.concatenate %182, %183, %184, %185, %186, %187, %188, %189 in 0 : vector<1x8x8xf32>, vector<1x8x8xf32>, vector<1x8x8xf32>, vector<1x8x8xf32>, vector<1x8x8xf32>, vector<1x8x8xf32>, vector<1x8x8xf32>, vector<1x8x8xf32> -> vector<8x8x8xf32>
    %191 = vector.extract_strided_slice %173 {offsets = [0, 32], sizes = [8, 8], strides = [1, 1]} : vector<16x96xf32> to vector<8x8xf32>
    %192 = vector.extract_strided_slice %173 {offsets = [0, 40], sizes = [8, 8], strides = [1, 1]} : vector<16x96xf32> to vector<8x8xf32>
    %193 = vector.extract_strided_slice %173 {offsets = [0, 48], sizes = [8, 8], strides = [1, 1]} : vector<16x96xf32> to vector<8x8xf32>
    %194 = vector.extract_strided_slice %173 {offsets = [0, 56], sizes = [8, 8], strides = [1, 1]} : vector<16x96xf32> to vector<8x8xf32>
    %195 = vector.extract_strided_slice %173 {offsets = [8, 32], sizes = [8, 8], strides = [1, 1]} : vector<16x96xf32> to vector<8x8xf32>
    %196 = vector.extract_strided_slice %173 {offsets = [8, 40], sizes = [8, 8], strides = [1, 1]} : vector<16x96xf32> to vector<8x8xf32>
    %197 = vector.extract_strided_slice %173 {offsets = [8, 48], sizes = [8, 8], strides = [1, 1]} : vector<16x96xf32> to vector<8x8xf32>
    %198 = vector.extract_strided_slice %173 {offsets = [8, 56], sizes = [8, 8], strides = [1, 1]} : vector<16x96xf32> to vector<8x8xf32>
    %199 = vector.shape_cast %191 : vector<8x8xf32> to vector<1x8x8xf32>
    %200 = vector.shape_cast %192 : vector<8x8xf32> to vector<1x8x8xf32>
    %201 = vector.shape_cast %193 : vector<8x8xf32> to vector<1x8x8xf32>
    %202 = vector.shape_cast %194 : vector<8x8xf32> to vector<1x8x8xf32>
    %203 = vector.shape_cast %195 : vector<8x8xf32> to vector<1x8x8xf32>
    %204 = vector.shape_cast %196 : vector<8x8xf32> to vector<1x8x8xf32>
    %205 = vector.shape_cast %197 : vector<8x8xf32> to vector<1x8x8xf32>
    %206 = vector.shape_cast %198 : vector<8x8xf32> to vector<1x8x8xf32>
    %207 = tpu.concatenate %199, %200, %201, %202, %203, %204, %205, %206 in 0 : vector<1x8x8xf32>, vector<1x8x8xf32>, vector<1x8x8xf32>, vector<1x8x8xf32>, vector<1x8x8xf32>, vector<1x8x8xf32>, vector<1x8x8xf32>, vector<1x8x8xf32> -> vector<8x8x8xf32>
    %208 = vector.extract_strided_slice %173 {offsets = [0, 64], sizes = [8, 8], strides = [1, 1]} : vector<16x96xf32> to vector<8x8xf32>
    %209 = vector.extract_strided_slice %173 {offsets = [0, 72], sizes = [8, 8], strides = [1, 1]} : vector<16x96xf32> to vector<8x8xf32>
    %210 = vector.extract_strided_slice %173 {offsets = [0, 80], sizes = [8, 8], strides = [1, 1]} : vector<16x96xf32> to vector<8x8xf32>
    %211 = vector.extract_strided_slice %173 {offsets = [0, 88], sizes = [8, 8], strides = [1, 1]} : vector<16x96xf32> to vector<8x8xf32>
    %212 = vector.extract_strided_slice %173 {offsets = [8, 64], sizes = [8, 8], strides = [1, 1]} : vector<16x96xf32> to vector<8x8xf32>
    %213 = vector.extract_strided_slice %173 {offsets = [8, 72], sizes = [8, 8], strides = [1, 1]} : vector<16x96xf32> to vector<8x8xf32>
    %214 = vector.extract_strided_slice %173 {offsets = [8, 80], sizes = [8, 8], strides = [1, 1]} : vector<16x96xf32> to vector<8x8xf32>
    %215 = vector.extract_strided_slice %173 {offsets = [8, 88], sizes = [8, 8], strides = [1, 1]} : vector<16x96xf32> to vector<8x8xf32>
    %216 = vector.shape_cast %208 : vector<8x8xf32> to vector<1x8x8xf32>
    %217 = vector.shape_cast %209 : vector<8x8xf32> to vector<1x8x8xf32>
    %218 = vector.shape_cast %210 : vector<8x8xf32> to vector<1x8x8xf32>
    %219 = vector.shape_cast %211 : vector<8x8xf32> to vector<1x8x8xf32>
    %220 = vector.shape_cast %212 : vector<8x8xf32> to vector<1x8x8xf32>
    %221 = vector.shape_cast %213 : vector<8x8xf32> to vector<1x8x8xf32>
    %222 = vector.shape_cast %214 : vector<8x8xf32> to vector<1x8x8xf32>
    %223 = vector.shape_cast %215 : vector<8x8xf32> to vector<1x8x8xf32>
    %224 = tpu.concatenate %216, %217, %218, %219, %220, %221, %222, %223 in 0 : vector<1x8x8xf32>, vector<1x8x8xf32>, vector<1x8x8xf32>, vector<1x8x8xf32>, vector<1x8x8xf32>, vector<1x8x8xf32>, vector<1x8x8xf32>, vector<1x8x8xf32> -> vector<8x8x8xf32>
    "tpu.trace_start"() <{level = 10 : i32, message = "nqe,nke->nqk"}> : () -> ()
    %cst_40 = arith.constant dense<0.000000e+00> : vector<8x8x8xf32>
    %225 = tpu.matmul %190, %207, %cst_40 {dimension_numbers = #tpu.dot_dimension_numbers<[2], [2], [1], [1], [0, 0, 0, 1, 1, 1], [0], [0]>} : vector<8x8x8xf32>, vector<8x8x8xf32>, vector<8x8x8xf32> -> vector<8x8x8xf32>
    "tpu.trace_stop"() : () -> ()
    %cst_41 = arith.constant dense<0xFF800000> : vector<8x8xf32>
    %226 = vector.multi_reduction <maximumf>, %225, %cst_41 [2] : vector<8x8x8xf32> to vector<8x8xf32>
    %227 = vector.shape_cast %226 : vector<8x8xf32> to vector<8x8x1xf32>
    %228 = vector.broadcast %227 : vector<8x8x1xf32> to vector<8x8x8xf32>
    %229 = arith.subf %225, %228 : vector<8x8x8xf32>
    %230 = math.exp %229 : vector<8x8x8xf32>
    %cst_42 = arith.constant dense<0.000000e+00> : vector<8x8xf32>
    %231 = vector.multi_reduction <add>, %230, %cst_42 [2] : vector<8x8x8xf32> to vector<8x8xf32>
    %232 = vector.shape_cast %231 : vector<8x8xf32> to vector<8x8x1xf32>
    %233 = tpu.reciprocal %232 : vector<8x8x1xf32> -> vector<8x8x1xf32>
    %234 = vector.broadcast %233 : vector<8x8x1xf32> to vector<8x8x8xf32>
    %235 = arith.mulf %230, %234 : vector<8x8x8xf32>
    "tpu.trace_start"() <{level = 10 : i32, message = "nqk,nke->nqe"}> : () -> ()
    %cst_43 = arith.constant dense<0.000000e+00> : vector<8x8x8xf32>
    %236 = tpu.matmul %235, %224, %cst_43 {dimension_numbers = #tpu.dot_dimension_numbers<[2], [1], [1], [2], [0, 0, 0, 1, 1, 2], [0], [0]>} : vector<8x8x8xf32>, vector<8x8x8xf32>, vector<8x8x8xf32> -> vector<8x8x8xf32>
    "tpu.trace_stop"() : () -> ()
    %237 = vector.extract_strided_slice %236 {offsets = [0, 0, 0], sizes = [1, 8, 8], strides = [1, 1, 1]} : vector<8x8x8xf32> to vector<1x8x8xf32>
    %238 = vector.shape_cast %237 : vector<1x8x8xf32> to vector<8x8xf32>
    %239 = vector.extract_strided_slice %236 {offsets = [1, 0, 0], sizes = [1, 8, 8], strides = [1, 1, 1]} : vector<8x8x8xf32> to vector<1x8x8xf32>
    %240 = vector.shape_cast %239 : vector<1x8x8xf32> to vector<8x8xf32>
    %241 = vector.extract_strided_slice %236 {offsets = [2, 0, 0], sizes = [1, 8, 8], strides = [1, 1, 1]} : vector<8x8x8xf32> to vector<1x8x8xf32>
    %242 = vector.shape_cast %241 : vector<1x8x8xf32> to vector<8x8xf32>
    %243 = vector.extract_strided_slice %236 {offsets = [3, 0, 0], sizes = [1, 8, 8], strides = [1, 1, 1]} : vector<8x8x8xf32> to vector<1x8x8xf32>
    %244 = vector.shape_cast %243 : vector<1x8x8xf32> to vector<8x8xf32>
    %245 = tpu.concatenate %238, %240, %242, %244 in 1 : vector<8x8xf32>, vector<8x8xf32>, vector<8x8xf32>, vector<8x8xf32> -> vector<8x32xf32>
    %246 = vector.extract_strided_slice %236 {offsets = [4, 0, 0], sizes = [1, 8, 8], strides = [1, 1, 1]} : vector<8x8x8xf32> to vector<1x8x8xf32>
    %247 = vector.shape_cast %246 : vector<1x8x8xf32> to vector<8x8xf32>
    %248 = vector.extract_strided_slice %236 {offsets = [5, 0, 0], sizes = [1, 8, 8], strides = [1, 1, 1]} : vector<8x8x8xf32> to vector<1x8x8xf32>
    %249 = vector.shape_cast %248 : vector<1x8x8xf32> to vector<8x8xf32>
    %250 = vector.extract_strided_slice %236 {offsets = [6, 0, 0], sizes = [1, 8, 8], strides = [1, 1, 1]} : vector<8x8x8xf32> to vector<1x8x8xf32>
    %251 = vector.shape_cast %250 : vector<1x8x8xf32> to vector<8x8xf32>
    %252 = vector.extract_strided_slice %236 {offsets = [7, 0, 0], sizes = [1, 8, 8], strides = [1, 1, 1]} : vector<8x8x8xf32> to vector<1x8x8xf32>
    %253 = vector.shape_cast %252 : vector<1x8x8xf32> to vector<8x8xf32>
    %254 = tpu.concatenate %247, %249, %251, %253 in 1 : vector<8x8xf32>, vector<8x8xf32>, vector<8x8xf32>, vector<8x8xf32> -> vector<8x32xf32>
    %255 = tpu.concatenate %245, %254 in 0 : vector<8x32xf32>, vector<8x32xf32> -> vector<16x32xf32>
    %cst_44 = arith.constant dense<0.000000e+00> : vector<16x32xf32>
    %256 = tpu.matmul %255, %160, %cst_44 {dimension_numbers = #tpu.dot_dimension_numbers<[1], [0], [0], [1], [0, 0, 1, 1], [], []>} : vector<16x32xf32>, vector<32x32xf32>, vector<16x32xf32> -> vector<16x32xf32>
    %257 = vector.broadcast %161 : vector<1x32xf32> to vector<16x32xf32>
    %258 = arith.addf %256, %257 : vector<16x32xf32>
    %259 = arith.addf %157, %258 : vector<16x32xf32>
    %cst_45 = arith.constant dense<0.000000e+00> : vector<16xf32>
    %260 = vector.multi_reduction <add>, %259, %cst_45 [1] : vector<16x32xf32> to vector<16xf32>
    %261 = vector.shape_cast %260 : vector<16xf32> to vector<16x1xf32>
    %cst_46 = arith.constant 3.200000e+01 : f32
    %262 = vector.broadcast %cst_46 : f32 to vector<16x1xf32>
    %263 = arith.divf %261, %262 : vector<16x1xf32>
    %264 = vector.broadcast %263 : vector<16x1xf32> to vector<16x32xf32>
    %265 = arith.subf %259, %264 : vector<16x32xf32>
    %266 = arith.mulf %265, %265 : vector<16x32xf32>
    %cst_47 = arith.constant dense<0.000000e+00> : vector<16xf32>
    %267 = vector.multi_reduction <add>, %266, %cst_47 [1] : vector<16x32xf32> to vector<16xf32>
    %268 = vector.shape_cast %267 : vector<16xf32> to vector<16x1xf32>
    %cst_48 = arith.constant 3.200000e+01 : f32
    %269 = vector.broadcast %cst_48 : f32 to vector<16x1xf32>
    %270 = arith.divf %268, %269 : vector<16x1xf32>
    %271 = vector.broadcast %263 : vector<16x1xf32> to vector<16x32xf32>
    %272 = arith.subf %259, %271 : vector<16x32xf32>
    %cst_49 = arith.constant 9.99999974E-6 : f32
    %273 = vector.broadcast %cst_49 : f32 to vector<16x1xf32>
    %274 = arith.addf %270, %273 : vector<16x1xf32>
    %275 = math.rsqrt %274 : vector<16x1xf32>
    %276 = vector.broadcast %275 : vector<16x1xf32> to vector<16x32xf32>
    %277 = arith.mulf %272, %276 : vector<16x32xf32>
    %278 = vector.broadcast %167 : vector<1x32xf32> to vector<16x32xf32>
    %279 = arith.mulf %277, %278 : vector<16x32xf32>
    %280 = vector.broadcast %168 : vector<1x32xf32> to vector<16x32xf32>
    %281 = arith.addf %279, %280 : vector<16x32xf32>
    %cst_50 = arith.constant dense<0.000000e+00> : vector<16x64xf32>
    %282 = tpu.matmul %281, %162, %cst_50 {dimension_numbers = #tpu.dot_dimension_numbers<[1], [0], [0], [1], [0, 0, 1, 1], [], []>} : vector<16x32xf32>, vector<32x64xf32>, vector<16x64xf32> -> vector<16x64xf32>
    %283 = vector.broadcast %163 : vector<1x64xf32> to vector<16x64xf32>
    %284 = arith.addf %282, %283 : vector<16x64xf32>
    %cst_51 = arith.constant 0.000000e+00 : f32
    %285 = vector.broadcast %cst_51 : f32 to vector<16x64xf32>
    %286 = arith.maximumf %284, %285 : vector<16x64xf32>
    %cst_52 = arith.constant dense<0.000000e+00> : vector<16x32xf32>
    %287 = tpu.matmul %286, %164, %cst_52 {dimension_numbers = #tpu.dot_dimension_numbers<[1], [0], [0], [1], [0, 0, 1, 1], [], []>} : vector<16x64xf32>, vector<64x32xf32>, vector<16x32xf32> -> vector<16x32xf32>
    %288 = vector.broadcast %165 : vector<1x32xf32> to vector<16x32xf32>
    %289 = arith.addf %287, %288 : vector<16x32xf32>
    %290 = arith.addf %281, %289 : vector<16x32xf32>
    %cst_53 = arith.constant dense<0.000000e+00> : vector<16xf32>
    %291 = vector.multi_reduction <add>, %290, %cst_53 [1] : vector<16x32xf32> to vector<16xf32>
    %292 = vector.shape_cast %291 : vector<16xf32> to vector<16x1xf32>
    %cst_54 = arith.constant 3.200000e+01 : f32
    %293 = vector.broadcast %cst_54 : f32 to vector<16x1xf32>
    %294 = arith.divf %292, %293 : vector<16x1xf32>
    %295 = vector.broadcast %294 : vector<16x1xf32> to vector<16x32xf32>
    %296 = arith.subf %290, %295 : vector<16x32xf32>
    %297 = arith.mulf %296, %296 : vector<16x32xf32>
    %cst_55 = arith.constant dense<0.000000e+00> : vector<16xf32>
    %298 = vector.multi_reduction <add>, %297, %cst_55 [1] : vector<16x32xf32> to vector<16xf32>
    %299 = vector.shape_cast %298 : vector<16xf32> to vector<16x1xf32>
    %cst_56 = arith.constant 3.200000e+01 : f32
    %300 = vector.broadcast %cst_56 : f32 to vector<16x1xf32>
    %301 = arith.divf %299, %300 : vector<16x1xf32>
    %302 = vector.broadcast %294 : vector<16x1xf32> to vector<16x32xf32>
    %303 = arith.subf %290, %302 : vector<16x32xf32>
    %cst_57 = arith.constant 9.99999974E-6 : f32
    %304 = vector.broadcast %cst_57 : f32 to vector<16x1xf32>
    %305 = arith.addf %301, %304 : vector<16x1xf32>
    %306 = math.rsqrt %305 : vector<16x1xf32>
    %307 = vector.broadcast %306 : vector<16x1xf32> to vector<16x32xf32>
    %308 = arith.mulf %303, %307 : vector<16x32xf32>
    %309 = vector.broadcast %169 : vector<1x32xf32> to vector<16x32xf32>
    %310 = arith.mulf %308, %309 : vector<16x32xf32>
    %311 = vector.broadcast %170 : vector<1x32xf32> to vector<16x32xf32>
    %312 = arith.addf %310, %311 : vector<16x32xf32>
    %c16 = arith.constant 16 : index
    %c0_58 = arith.constant 0 : index
    %313 = vector.load %arg1[%c16, %c0_58] : memref<520x128xf32, #tpu.memory_space<vmem>>, vector<32x40xf32>
    %cst_59 = arith.constant dense<0.000000e+00> : vector<16x40xf32>
    %314 = tpu.matmul %312, %313, %cst_59 {dimension_numbers = #tpu.dot_dimension_numbers<[1], [0], [0], [1], [0, 0, 1, 1], [], []>} : vector<16x32xf32>, vector<32x40xf32>, vector<16x40xf32> -> vector<16x40xf32>
    %c48 = arith.constant 48 : index
    %c0_60 = arith.constant 0 : index
    %315 = vector.load %arg1[%c48, %c0_60] : memref<520x128xf32, #tpu.memory_space<vmem>>, vector<16x40xf32>
    %316 = arith.mulf %314, %315 : vector<16x40xf32>
    %c64 = arith.constant 64 : index
    %c0_61 = arith.constant 0 : index
    %317 = vector.load %arg1[%c64, %c0_61] : memref<520x128xf32, #tpu.memory_space<vmem>>, vector<40x5xf32>
    %cst_62 = arith.constant dense<0.000000e+00> : vector<16x5xf32>
    %318 = tpu.matmul %316, %317, %cst_62 {dimension_numbers = #tpu.dot_dimension_numbers<[1], [0], [0], [1], [0, 0, 1, 1], [], []>} : vector<16x40xf32>, vector<40x5xf32>, vector<16x5xf32> -> vector<16x5xf32>
    %c104 = arith.constant 104 : index
    %c0_63 = arith.constant 0 : index
    %319 = vector.load %arg1[%c104, %c0_63] : memref<520x128xf32, #tpu.memory_space<vmem>>, vector<2x16xf32>
    %cst_64 = arith.constant dense<0.000000e+00> : vector<2x5xf32>
    %320 = tpu.matmul %319, %318, %cst_64 {dimension_numbers = #tpu.dot_dimension_numbers<[1], [0], [0], [1], [0, 0, 1, 1], [], []>} : vector<2x16xf32>, vector<16x5xf32>, vector<2x5xf32> -> vector<2x5xf32>
    %c112 = arith.constant 112 : index
    %c0_65 = arith.constant 0 : index
    %321 = vector.load %arg1[%c112, %c0_65] : memref<520x128xf32, #tpu.memory_space<vmem>>, vector<1x5xf32>
    %322 = vector.broadcast %321 : vector<1x5xf32> to vector<2x5xf32>
    %323 = arith.addf %320, %322 : vector<2x5xf32>
    %c0_66 = arith.constant 0 : index
    %c0_67 = arith.constant 0 : index
    %324 = vector.load %arg2[%c0_66, %c0_67] : memref<2x5xf32, #tpu.memory_space<vmem>>, vector<2x5xf32>
    tpu.vector_store %arg2[%c0_66, %c0_67], %323 {strides = array<i32>} : memref<2x5xf32, #tpu.memory_space<vmem>>, vector<2x5xf32>,
    return
  }
}

</mosaic_0001>

<llo_original>
// kernel: forward.1
$region0: #{forward.1}
  #allocation0 [shape = 'u32[]', space=smem, size = 0x4, offset = 0x4, fixed_abs, tag = 'smem constant byte address 0x4 - core index']
  #allocation1 [shape = 'u32[144,128]{1,0:T(1,128)}', space=vmem, size = 0x12000, scoped, tag = 'internal scratch']
  %s0 = inlined_call_operand.hbm [shape: f32[16,32], index: 0, kind: input, shape index: {}]
  %s1 = inlined_call_operand.hbm [shape: f32[520,128], index: 1, kind: input, shape index: {}]
  %s2 = inlined_call_operand.hbm [shape: f32[2,5], index: 2, kind: output, shape index: {}]
  %s3 = sld [smem:[#allocation0]]
  $region26: #{forward.1} parent=0
    _
  %s5 = ssub.s32 1, %s3
  %s6 = scalar_select 0, %s5, %s3
  $region1: #{forward.1} parent=0
    #allocation2 [shape = 'u8[8192]{0}', space=vmem, size = 0x2000, scoped, tag = 'input window, operand 0, single buffered']
    #allocation3 [shape = 's32[1]{0}', space=sflag, size = 0x4, scoped, tag = 'scoped memory for forward.1']
    #allocation4 [shape = 's32[1]{0}', space=sflag, size = 0x4, scoped, tag = 'scoped memory for forward.1']
    #allocation5 [shape = 'u8[266240]{0}', space=vmem, size = 0x41000, scoped, tag = 'input window, operand 1, single buffered']
    #allocation6 [shape = 's32[1]{0}', space=sflag, size = 0x4, scoped, tag = 'scoped memory for forward.1']
    #allocation7 [shape = 'u8[1024]{0}', space=vmem, size = 0x400, scoped, tag = 'output window, operand 0, single buffered']
    %7 = vsyncpa [#allocation3], 0
    %8 = vsyncpa [#allocation6], 0
    %9 = vsyncpa [#allocation4], 0
    // Predicated region
    $region2: #{forward.1} parent=1 // pred_check
      _
    $region3: #{forward.1} parent=1 // pred_check_branch
      %11 = sbr.rel (0) target = $region5
    $region4: #{forward.1} parent=1 // pred_region
      %s13 = ssub.s32 256, 256
      %14 = vsyncadd [#allocation3], %s13
      %s15 = sshll.u32 [#allocation2], 4
      %s16 = int_to_ptr.vmem [resolvable:$true] %s15
      %21 = dma.hbm_to_vmem [thread:$0]  %s0, 256, %s16, [#allocation3], 128, 128, 8
    $region5: #{forward.1} parent=1 // pred_fallthru
      _
    // Predicated region
    $region6: #{forward.1} parent=1 // pred_check
      _
    $region7: #{forward.1} parent=1 // pred_check_branch
      %23 = sbr.rel (0) target = $region9
    $region8: #{forward.1} parent=1 // pred_region
      %s25 = ssub.s32 8320, 8320
      %26 = vsyncadd [#allocation6], %s25
      %s27 = sshll.u32 [#allocation5], 4
      %s28 = int_to_ptr.vmem [resolvable:$true] %s27
      %33 = dma.hbm_to_vmem [thread:$0]  %s1, 8320, %s28, [#allocation6], 128, 128, 8
    $region9: #{forward.1} parent=1 // pred_fallthru
      _
    // Predicated region
    $region10: #{forward.1} parent=1 // pred_check
      _
    $region11: #{forward.1} parent=1 // pred_check_branch
      %35 = sbr.rel (0) target = $region13
    $region12: #{forward.1} parent=1 // pred_region
      %36 = dma.done [#allocation3], 256
    $region13: #{forward.1} parent=1 // pred_fallthru
      _
    // Predicated region
    $region14: #{forward.1} parent=1 // pred_check
      _
    $region15: #{forward.1} parent=1 // pred_check_branch
      %38 = sbr.rel (0) target = $region17
    $region16: #{forward.1} parent=1 // pred_region
      %39 = dma.done [#allocation6], 8320
    $region17: #{forward.1} parent=1 // pred_fallthru
      _
    %v40 = vld [vmem:[#allocation2] sm:$0xff]
    %v41 = vld [vmem:[#allocation2 + $0x8] sm:$0xff]
    %v42 = vld [vmem:[#allocation5] sm:$0xff]
    %v43 = vld [vmem:[#allocation5 + $0x8] sm:$0xff]
    %v44 = vadd.f32 %v40, %v42
    %v45 = vadd.f32 %v41, %v43
    %v46 = vld [vmem:[#allocation5 + $0x78] sm:$0xff]
    %v47 = vld [vmem:[#allocation5 + $0x80] sm:$0xff]
    %v48 = vld [vmem:[#allocation5 + $0x88] sm:$0xff]
    %v49 = vld [vmem:[#allocation5 + $0x90] sm:$0xff]
    %v50 = vld [vmem:[#allocation5 + $0x98] sm:$0x1]
    %v51 = vld [vmem:[#allocation5 + $0xa0] sm:$0xff]
    %v52 = vld [vmem:[#allocation5 + $0xa8] sm:$0xff]
    %v53 = vld [vmem:[#allocation5 + $0xb0] sm:$0xff]
    %v54 = vld [vmem:[#allocation5 + $0xb8] sm:$0xff]
    %v55 = vld [vmem:[#allocation5 + $0xc0] sm:$0x1]
    %v56 = vld [vmem:[#allocation5 + $0xc8] sm:$0xff]
    %v57 = vld [vmem:[#allocation5 + $0xd0] sm:$0xff]
    %v58 = vld [vmem:[#allocation5 + $0xd8] sm:$0xff]
    %v59 = vld [vmem:[#allocation5 + $0xe0] sm:$0xff]
    %v60 = vld [vmem:[#allocation5 + $0xe8] sm:$0x1]
    %v61 = vld [vmem:[#allocation5 + $0xf0] sm:$0xff]
    %v62 = vld [vmem:[#allocation5 + $0xf8] sm:$0xff]
    %v63 = vld [vmem:[#allocation5 + $0x100] sm:$0xff]
    %v64 = vld [vmem:[#allocation5 + $0x108] sm:$0xff]
    %v65 = vld [vmem:[#allocation5 + $0x110] sm:$0xff]
    %v66 = vld [vmem:[#allocation5 + $0x118] sm:$0xff]
    %v67 = vld [vmem:[#allocation5 + $0x120] sm:$0xff]
    %v68 = vld [vmem:[#allocation5 + $0x128] sm:$0xff]
    %v69 = vld [vmem:[#allocation5 + $0x130] sm:$0x1]
    %v70 = vld [vmem:[#allocation5 + $0x138] sm:$0xf]
    %v71 = vlaneseq
    %v72 = vshrl.u32 %v71, 7
    %v73 = vsub.s32 0, %v72
    %v74 = vrot.slane %v50, %v73
    %vm75 = vcmask 261120
    %v77 = vsel %vm75, %v44, 0
    %v80 = vsel %vm75, %v45, 0
    %82 = vmatprep.subr.mxu0 0.0
    %83 = vmatpush1.msra.mxu0 %v46
    %84 = vmatprep.subr.mxu0 0.0
    %85 = vmatpush1.msra.mxu0 %v47
    %86 = vmatprep.subr.mxu0 0.0
    %87 = vmatpush1.msra.mxu0 %v48
    %88 = vmatprep.subr.mxu0 0.0
    %89 = vmatpush1.msra.mxu0 %v49
    %90 = vmatprep.subr.mxu0 0.0
    %91 = vmatpush1.msra.mxu0 0.0
    %92 = vmatprep.subr.mxu0 0.0
    %93 = vmatpush1.msra.mxu0 0.0
    %94 = vmatprep.subr.mxu0 0.0
    %95 = vmatpush1.msra.mxu0 0.0
    %96 = vmatprep.subr.mxu0 0.0
    %97 = vmatpush1.msra.mxu0 0.0
    %98 = vmatprep.subr.mxu0 0.0
    %99 = vmatpush1.msra.mxu0 0.0
    %100 = vmatprep.subr.mxu0 0.0
    %101 = vmatpush1.msra.mxu0 0.0
    %102 = vmatprep.subr.mxu0 0.0
    %103 = vmatpush1.msra.mxu0 0.0
    %104 = vmatprep.subr.mxu0 0.0
    %105 = vmatpush1.msra.mxu0 0.0
    %106 = vmatprep.subr.mxu0 0.0
    %107 = vmatpush1.msra.mxu0 0.0
    %108 = vmatprep.subr.mxu0 0.0
    %109 = vmatpush1.msra.mxu0 0.0
    %110 = vmatprep.subr.mxu0 0.0
    %111 = vmatpush1.msra.mxu0 0.0
    %112 = vmatprep.subr.mxu0 0.0
    %113 = vmatpush1.msra.mxu0 0.0
    %114 = vmatprep.subr.mxu0 0.0
    %115 = vmatpush1.msra.mxu0 0.0
    %116 = vmatprep.subr.mxu0 0.0
    %117 = vmatpush1.msra.mxu0 0.0
    %118 = vmatprep.subr.mxu0 0.0
    %119 = vmatpush1.msra.mxu0 0.0
    %120 = vmatprep.subr.mxu0 0.0
    %121 = vmatpush1.msra.mxu0 0.0
    %122 = vmatprep.subr.mxu0 0.0
    %123 = vmatpush1.msra.mxu0 0.0
    %124 = vmatprep.subr.mxu0 0.0
    %125 = vmatpush1.msra.mxu0 0.0
    %126 = vmatprep.subr.mxu0 0.0
    %127 = vmatpush1.msra.mxu0 0.0
    %128 = vmatprep.subr.mxu0 0.0
    %129 = vmatpush1.msra.mxu0 0.0
    %130 = vmatprep.subr.mxu0 0.0
    %131 = vmatpush1.msra.mxu0 0.0
    %132 = vmatprep.subr.mxu0 0.0
    %133 = vmatpush1.msra.mxu0 0.0
    %134 = vmatprep.subr.mxu0 0.0
    %135 = vmatpush1.msra.mxu0 0.0
    %136 = vmatprep.subr.mxu0 0.0
    %137 = vmatpush1.msra.mxu0 0.0
    %138 = vmatprep.subr.mxu0 0.0
    %139 = vmatpush1.msra.mxu0 0.0
    %140 = vmatprep.subr.mxu0 0.0
    %141 = vmatpush1.msra.mxu0 0.0
    %142 = vmatprep.subr.mxu0 0.0
    %143 = vmatpush1.msra.mxu0 0.0
    %144 = vmatprep.subr.mxu0 0.0
    %145 = vmatpush1.msra.mxu0 0.0
    %146 = vmatprep.mubr.f32.mxu0 0.0
    %147 = vmatmul.mubr.f32.gmra.mrb[0].mxu0 %v77
    %v148 = vpop.f32.mrb[0].mxu0
    %v149 = vadd.f32 %v74, %v148
    %v150 = vpop.f32.mrb[0].mxu0
    %151 = vmatprep.mubr.f32.mxu0 0.0
    %152 = vmatmul.mubr.f32.gmra.mrb[0].mxu0 %v80
    %v153 = vpop.f32.mrb[0].mxu0
    %v154 = vadd.f32 %v74, %v153
    %v155 = vpop.f32.mrb[0].mxu0
    %156 = vdwg.mxu0
    %158 = vrot.lane.b32.xlu0 %v149, 120
    %v159 = vpop.permute.xlu0 %158
    %160 = vrot.lane.b32.xlu0 %v149, 112
    %v161 = vpop.permute.xlu0 %160
    %162 = vrot.lane.b32.xlu0 %v149, 104
    %v163 = vpop.permute.xlu0 %162
    %165 = vrot.lane.b32.xlu0 %v154, 120
    %v166 = vpop.permute.xlu0 %165
    %167 = vrot.lane.b32.xlu0 %v154, 112
    %v168 = vpop.permute.xlu0 %167
    %169 = vrot.lane.b32.xlu0 %v154, 104
    %v170 = vpop.permute.xlu0 %169
    %171 = vrot.lane.b32.xlu0 %v149, 96
    %v172 = vpop.permute.xlu0 %171
    %vm173 = vcmask 64512
    %v174 = vsel %vm173, %v149, 0
    %v176 = vsel %vm173, %v172, 0
    %178 = vmatprep.subr.mxu0 0.0
    %179 = vmatpush1.xpose.msra.mxu0 %v176
    %180 = vmatprep.subr.mxu0 0.0
    %181 = vmatpush1.xpose.msra.mxu0 0.0
    %182 = vmatprep.subr.mxu0 0.0
    %183 = vmatpush1.xpose.msra.mxu0 0.0
    %184 = vmatprep.subr.mxu0 0.0
    %185 = vmatpush1.xpose.msra.mxu0 0.0
    %186 = vmatprep.subr.mxu0 0.0
    %187 = vmatpush1.xpose.msra.mxu0 0.0
    %188 = vmatprep.subr.mxu0 0.0
    %189 = vmatpush1.xpose.msra.mxu0 0.0
    %190 = vmatprep.subr.mxu0 0.0
    %191 = vmatpush1.xpose.msra.mxu0 0.0
    %192 = vmatprep.subr.mxu0 0.0
    %193 = vmatpush1.xpose.msra.mxu0 0.0
    %194 = vmatprep.subr.mxu0 0.0
    %195 = vmatpush1.xpose.msra.mxu0 0.0
    %196 = vmatprep.subr.mxu0 0.0
    %197 = vmatpush1.xpose.msra.mxu0 0.0
    %198 = vmatprep.subr.mxu0 0.0
    %199 = vmatpush1.xpose.msra.mxu0 0.0
    %200 = vmatprep.subr.mxu0 0.0
    %201 = vmatpush1.xpose.msra.mxu0 0.0
    %202 = vmatprep.subr.mxu0 0.0
    %203 = vmatpush1.xpose.msra.mxu0 0.0
    %204 = vmatprep.subr.mxu0 0.0
    %205 = vmatpush1.xpose.msra.mxu0 0.0
    %206 = vmatprep.subr.mxu0 0.0
    %207 = vmatpush1.xpose.msra.mxu0 0.0
    %208 = vmatprep.subr.mxu0 0.0
    %209 = vmatpush1.xpose.msra.mxu0 0.0
    %210 = vmatprep.subr.mxu0 0.0
    %211 = vmatpush1.xpose.msra.mxu0 0.0
    %212 = vmatprep.subr.mxu0 0.0
    %213 = vmatpush1.xpose.msra.mxu0 0.0
    %214 = vmatprep.subr.mxu0 0.0
    %215 = vmatpush1.xpose.msra.mxu0 0.0
    %216 = vmatprep.subr.mxu0 0.0
    %217 = vmatpush1.xpose.msra.mxu0 0.0
    %218 = vmatprep.subr.mxu0 0.0
    %219 = vmatpush1.xpose.msra.mxu0 0.0
    %220 = vmatprep.subr.mxu0 0.0
    %221 = vmatpush1.xpose.msra.mxu0 0.0
    %222 = vmatprep.subr.mxu0 0.0
    %223 = vmatpush1.xpose.msra.mxu0 0.0
    %224 = vmatprep.subr.mxu0 0.0
    %225 = vmatpush1.xpose.msra.mxu0 0.0
    %226 = vmatprep.subr.mxu0 0.0
    %227 = vmatpush1.xpose.msra.mxu0 0.0
    %228 = vmatprep.subr.mxu0 0.0
    %229 = vmatpush1.xpose.msra.mxu0 0.0
    %230 = vmatprep.subr.mxu0 0.0
    %231 = vmatpush1.xpose.msra.mxu0 0.0
    %232 = vmatprep.subr.mxu0 0.0
    %233 = vmatpush1.xpose.msra.mxu0 0.0
    %234 = vmatprep.subr.mxu0 0.0
    %235 = vmatpush1.xpose.msra.mxu0 0.0
    %236 = vmatprep.subr.mxu0 0.0
    %237 = vmatpush1.xpose.msra.mxu0 0.0
    %238 = vmatprep.subr.mxu0 0.0
    %239 = vmatpush1.xpose.msra.mxu0 0.0
    %240 = vmatprep.subr.mxu0 0.0
    %241 = vmatpush1.xpose.msra.mxu0 0.0
    %242 = vmatprep.mubr.f32.mxu0 0.0
    %243 = vmatmul.mubr.f32.gmra.mrb[0].mxu0 %v174
    %v244 = vpop.f32.mrb[0].mxu0
    %v245 = vadd.f32 0.0, %v244
    %v246 = vpop.f32.mrb[0].mxu0
    %247 = vdwg.mxu0
    %248 = vrot.lane.b32.xlu0 %v159, 96
    %v249 = vpop.permute.xlu0 %248
    %v250 = vsel %vm173, %v159, 0
    %v252 = vsel %vm173, %v249, 0
    %254 = vmatprep.subr.mxu0 0.0
    %255 = vmatpush1.xpose.msra.mxu0 %v252
    %256 = vmatprep.subr.mxu0 0.0
    %257 = vmatpush1.xpose.msra.mxu0 0.0
    %258 = vmatprep.subr.mxu0 0.0
    %259 = vmatpush1.xpose.msra.mxu0 0.0
    %260 = vmatprep.subr.mxu0 0.0
    %261 = vmatpush1.xpose.msra.mxu0 0.0
    %262 = vmatprep.subr.mxu0 0.0
    %263 = vmatpush1.xpose.msra.mxu0 0.0
    %264 = vmatprep.subr.mxu0 0.0
    %265 = vmatpush1.xpose.msra.mxu0 0.0
    %266 = vmatprep.subr.mxu0 0.0
    %267 = vmatpush1.xpose.msra.mxu0 0.0
    %268 = vmatprep.subr.mxu0 0.0
    %269 = vmatpush1.xpose.msra.mxu0 0.0
    %270 = vmatprep.subr.mxu0 0.0
    %271 = vmatpush1.xpose.msra.mxu0 0.0
    %272 = vmatprep.subr.mxu0 0.0
    %273 = vmatpush1.xpose.msra.mxu0 0.0
    %274 = vmatprep.subr.mxu0 0.0
    %275 = vmatpush1.xpose.msra.mxu0 0.0
    %276 = vmatprep.subr.mxu0 0.0
    %277 = vmatpush1.xpose.msra.mxu0 0.0
    %278 = vmatprep.subr.mxu0 0.0
    %279 = vmatpush1.xpose.msra.mxu0 0.0
    %280 = vmatprep.subr.mxu0 0.0
    %281 = vmatpush1.xpose.msra.mxu0 0.0
    %282 = vmatprep.subr.mxu0 0.0
    %283 = vmatpush1.xpose.msra.mxu0 0.0
    %284 = vmatprep.subr.mxu0 0.0
    %285 = vmatpush1.xpose.msra.mxu0 0.0
    %286 = vmatprep.subr.mxu0 0.0
    %287 = vmatpush1.xpose.msra.mxu0 0.0
    %288 = vmatprep.subr.mxu0 0.0
    %289 = vmatpush1.xpose.msra.mxu0 0.0
    %290 = vmatprep.subr.mxu0 0.0
    %291 = vmatpush1.xpose.msra.mxu0 0.0
    %292 = vmatprep.subr.mxu0 0.0
    %293 = vmatpush1.xpose.msra.mxu0 0.0
    %294 = vmatprep.subr.mxu0 0.0
    %295 = vmatpush1.xpose.msra.mxu0 0.0
    %296 = vmatprep.subr.mxu0 0.0
    %297 = vmatpush1.xpose.msra.mxu0 0.0
    %298 = vmatprep.subr.mxu0 0.0
    %299 = vmatpush1.xpose.msra.mxu0 0.0
    %300 = vmatprep.subr.mxu0 0.0
    %301 = vmatpush1.xpose.msra.mxu0 0.0
    %302 = vmatprep.subr.mxu0 0.0
    %303 = vmatpush1.xpose.msra.mxu0 0.0
    %304 = vmatprep.subr.mxu0 0.0
    %305 = vmatpush1.xpose.msra.mxu0 0.0
    %306 = vmatprep.subr.mxu0 0.0
    %307 = vmatpush1.xpose.msra.mxu0 0.0
    %308 = vmatprep.subr.mxu0 0.0
    %309 = vmatpush1.xpose.msra.mxu0 0.0
    %310 = vmatprep.subr.mxu0 0.0
    %311 = vmatpush1.xpose.msra.mxu0 0.0
    %312 = vmatprep.subr.mxu0 0.0
    %313 = vmatpush1.xpose.msra.mxu0 0.0
    %314 = vmatprep.subr.mxu0 0.0
    %315 = vmatpush1.xpose.msra.mxu0 0.0
    %316 = vmatprep.subr.mxu0 0.0
    %317 = vmatpush1.xpose.msra.mxu0 0.0
    %318 = vmatprep.mubr.f32.mxu0 0.0
    %319 = vmatmul.mubr.f32.gmra.mrb[0].mxu0 %v250
    %v320 = vpop.f32.mrb[0].mxu0
    %v321 = vadd.f32 0.0, %v320
    %v322 = vpop.f32.mrb[0].mxu0
    %323 = vdwg.mxu0
    %324 = vrot.lane.b32.xlu0 %v161, 96
    %v325 = vpop.permute.xlu0 %324
    %v326 = vsel %vm173, %v161, 0
    %v328 = vsel %vm173, %v325, 0
    %330 = vmatprep.subr.mxu0 0.0
    %331 = vmatpush1.xpose.msra.mxu0 %v328
    %332 = vmatprep.subr.mxu0 0.0
    %333 = vmatpush1.xpose.msra.mxu0 0.0
    %334 = vmatprep.subr.mxu0 0.0
    %335 = vmatpush1.xpose.msra.mxu0 0.0
    %336 = vmatprep.subr.mxu0 0.0
    %337 = vmatpush1.xpose.msra.mxu0 0.0
    %338 = vmatprep.subr.mxu0 0.0
    %339 = vmatpush1.xpose.msra.mxu0 0.0
    %340 = vmatprep.subr.mxu0 0.0
    %341 = vmatpush1.xpose.msra.mxu0 0.0
    %342 = vmatprep.subr.mxu0 0.0
    %343 = vmatpush1.xpose.msra.mxu0 0.0
    %344 = vmatprep.subr.mxu0 0.0
    %345 = vmatpush1.xpose.msra.mxu0 0.0
    %346 = vmatprep.subr.mxu0 0.0
    %347 = vmatpush1.xpose.msra.mxu0 0.0
    %348 = vmatprep.subr.mxu0 0.0
    %349 = vmatpush1.xpose.msra.mxu0 0.0
    %350 = vmatprep.subr.mxu0 0.0
    %351 = vmatpush1.xpose.msra.mxu0 0.0
    %352 = vmatprep.subr.mxu0 0.0
    %353 = vmatpush1.xpose.msra.mxu0 0.0
    %354 = vmatprep.subr.mxu0 0.0
    %355 = vmatpush1.xpose.msra.mxu0 0.0
    %356 = vmatprep.subr.mxu0 0.0
    %357 = vmatpush1.xpose.msra.mxu0 0.0
    %358 = vmatprep.subr.mxu0 0.0
    %359 = vmatpush1.xpose.msra.mxu0 0.0
    %360 = vmatprep.subr.mxu0 0.0
    %361 = vmatpush1.xpose.msra.mxu0 0.0
    %362 = vmatprep.subr.mxu0 0.0
    %363 = vmatpush1.xpose.msra.mxu0 0.0
    %364 = vmatprep.subr.mxu0 0.0
    %365 = vmatpush1.xpose.msra.mxu0 0.0
    %366 = vmatprep.subr.mxu0 0.0
    %367 = vmatpush1.xpose.msra.mxu0 0.0
    %368 = vmatprep.subr.mxu0 0.0
    %369 = vmatpush1.xpose.msra.mxu0 0.0
    %370 = vmatprep.subr.mxu0 0.0
    %371 = vmatpush1.xpose.msra.mxu0 0.0
    %372 = vmatprep.subr.mxu0 0.0
    %373 = vmatpush1.xpose.msra.mxu0 0.0
    %374 = vmatprep.subr.mxu0 0.0
    %375 = vmatpush1.xpose.msra.mxu0 0.0
    %376 = vmatprep.subr.mxu0 0.0
    %377 = vmatpush1.xpose.msra.mxu0 0.0
    %378 = vmatprep.subr.mxu0 0.0
    %379 = vmatpush1.xpose.msra.mxu0 0.0
    %380 = vmatprep.subr.mxu0 0.0
    %381 = vmatpush1.xpose.msra.mxu0 0.0
    %382 = vmatprep.subr.mxu0 0.0
    %383 = vmatpush1.xpose.msra.mxu0 0.0
    %384 = vmatprep.subr.mxu0 0.0
    %385 = vmatpush1.xpose.msra.mxu0 0.0
    %386 = vmatprep.subr.mxu0 0.0
    %387 = vmatpush1.xpose.msra.mxu0 0.0
    %388 = vmatprep.subr.mxu0 0.0
    %389 = vmatpush1.xpose.msra.mxu0 0.0
    %390 = vmatprep.subr.mxu0 0.0
    %391 = vmatpush1.xpose.msra.mxu0 0.0
    %392 = vmatprep.subr.mxu0 0.0
    %393 = vmatpush1.xpose.msra.mxu0 0.0
    %394 = vmatprep.mubr.f32.mxu0 0.0
    %395 = vmatmul.mubr.f32.gmra.mrb[0].mxu0 %v326
    %v396 = vpop.f32.mrb[0].mxu0
    %v397 = vadd.f32 0.0, %v396
    %v398 = vpop.f32.mrb[0].mxu0
    %399 = vdwg.mxu0
    %400 = vrot.lane.b32.xlu0 %v163, 96
    %v401 = vpop.permute.xlu0 %400
    %v402 = vsel %vm173, %v163, 0
    %v404 = vsel %vm173, %v401, 0
    %406 = vmatprep.subr.mxu0 0.0
    %407 = vmatpush1.xpose.msra.mxu0 %v404
    %408 = vmatprep.subr.mxu0 0.0
    %409 = vmatpush1.xpose.msra.mxu0 0.0
    %410 = vmatprep.subr.mxu0 0.0
    %411 = vmatpush1.xpose.msra.mxu0 0.0
    %412 = vmatprep.subr.mxu0 0.0
    %413 = vmatpush1.xpose.msra.mxu0 0.0
    %414 = vmatprep.subr.mxu0 0.0
    %415 = vmatpush1.xpose.msra.mxu0 0.0
    %416 = vmatprep.subr.mxu0 0.0
    %417 = vmatpush1.xpose.msra.mxu0 0.0
    %418 = vmatprep.subr.mxu0 0.0
    %419 = vmatpush1.xpose.msra.mxu0 0.0
    %420 = vmatprep.subr.mxu0 0.0
    %421 = vmatpush1.xpose.msra.mxu0 0.0
    %422 = vmatprep.subr.mxu0 0.0
    %423 = vmatpush1.xpose.msra.mxu0 0.0
    %424 = vmatprep.subr.mxu0 0.0
    %425 = vmatpush1.xpose.msra.mxu0 0.0
    %426 = vmatprep.subr.mxu0 0.0
    %427 = vmatpush1.xpose.msra.mxu0 0.0
    %428 = vmatprep.subr.mxu0 0.0
    %429 = vmatpush1.xpose.msra.mxu0 0.0
    %430 = vmatprep.subr.mxu0 0.0
    %431 = vmatpush1.xpose.msra.mxu0 0.0
    %432 = vmatprep.subr.mxu0 0.0
    %433 = vmatpush1.xpose.msra.mxu0 0.0
    %434 = vmatprep.subr.mxu0 0.0
    %435 = vmatpush1.xpose.msra.mxu0 0.0
    %436 = vmatprep.subr.mxu0 0.0
    %437 = vmatpush1.xpose.msra.mxu0 0.0
    %438 = vmatprep.subr.mxu0 0.0
    %439 = vmatpush1.xpose.msra.mxu0 0.0
    %440 = vmatprep.subr.mxu0 0.0
    %441 = vmatpush1.xpose.msra.mxu0 0.0
    %442 = vmatprep.subr.mxu0 0.0
    %443 = vmatpush1.xpose.msra.mxu0 0.0
    %444 = vmatprep.subr.mxu0 0.0
    %445 = vmatpush1.xpose.msra.mxu0 0.0
    %446 = vmatprep.subr.mxu0 0.0
    %447 = vmatpush1.xpose.msra.mxu0 0.0
    %448 = vmatprep.subr.mxu0 0.0
    %449 = vmatpush1.xpose.msra.mxu0 0.0
    %450 = vmatprep.subr.mxu0 0.0
    %451 = vmatpush1.xpose.msra.mxu0 0.0
    %452 = vmatprep.subr.mxu0 0.0
    %453 = vmatpush1.xpose.msra.mxu0 0.0
    %454 = vmatprep.subr.mxu0 0.0
    %455 = vmatpush1.xpose.msra.mxu0 0.0
    %456 = vmatprep.subr.mxu0 0.0
    %457 = vmatpush1.xpose.msra.mxu0 0.0
    %458 = vmatprep.subr.mxu0 0.0
    %459 = vmatpush1.xpose.msra.mxu0 0.0
    %460 = vmatprep.subr.mxu0 0.0
    %461 = vmatpush1.xpose.msra.mxu0 0.0
    %462 = vmatprep.subr.mxu0 0.0
    %463 = vmatpush1.xpose.msra.mxu0 0.0
    %464 = vmatprep.subr.mxu0 0.0
    %465 = vmatpush1.xpose.msra.mxu0 0.0
    %466 = vmatprep.subr.mxu0 0.0
    %467 = vmatpush1.xpose.msra.mxu0 0.0
    %468 = vmatprep.subr.mxu0 0.0
    %469 = vmatpush1.xpose.msra.mxu0 0.0
    %470 = vmatprep.mubr.f32.mxu0 0.0
    %471 = vmatmul.mubr.f32.gmra.mrb[0].mxu0 %v402
    %v472 = vpop.f32.mrb[0].mxu0
    %v473 = vadd.f32 0.0, %v472
    %v474 = vpop.f32.mrb[0].mxu0
    %475 = vdwg.mxu0
    %476 = vrot.lane.b32.xlu0 %v154, 96
    %v477 = vpop.permute.xlu0 %476
    %v478 = vsel %vm173, %v154, 0
    %v480 = vsel %vm173, %v477, 0
    %482 = vmatprep.subr.mxu0 0.0
    %483 = vmatpush1.xpose.msra.mxu0 %v480
    %484 = vmatprep.subr.mxu0 0.0
    %485 = vmatpush1.xpose.msra.mxu0 0.0
    %486 = vmatprep.subr.mxu0 0.0
    %487 = vmatpush1.xpose.msra.mxu0 0.0
    %488 = vmatprep.subr.mxu0 0.0
    %489 = vmatpush1.xpose.msra.mxu0 0.0
    %490 = vmatprep.subr.mxu0 0.0
    %491 = vmatpush1.xpose.msra.mxu0 0.0
    %492 = vmatprep.subr.mxu0 0.0
    %493 = vmatpush1.xpose.msra.mxu0 0.0
    %494 = vmatprep.subr.mxu0 0.0
    %495 = vmatpush1.xpose.msra.mxu0 0.0
    %496 = vmatprep.subr.mxu0 0.0
    %497 = vmatpush1.xpose.msra.mxu0 0.0
    %498 = vmatprep.subr.mxu0 0.0
    %499 = vmatpush1.xpose.msra.mxu0 0.0
    %500 = vmatprep.subr.mxu0 0.0
    %501 = vmatpush1.xpose.msra.mxu0 0.0
    %502 = vmatprep.subr.mxu0 0.0
    %503 = vmatpush1.xpose.msra.mxu0 0.0
    %504 = vmatprep.subr.mxu0 0.0
    %505 = vmatpush1.xpose.msra.mxu0 0.0
    %506 = vmatprep.subr.mxu0 0.0
    %507 = vmatpush1.xpose.msra.mxu0 0.0
    %508 = vmatprep.subr.mxu0 0.0
    %509 = vmatpush1.xpose.msra.mxu0 0.0
    %510 = vmatprep.subr.mxu0 0.0
    %511 = vmatpush1.xpose.msra.mxu0 0.0
    %512 = vmatprep.subr.mxu0 0.0
    %513 = vmatpush1.xpose.msra.mxu0 0.0
    %514 = vmatprep.subr.mxu0 0.0
    %515 = vmatpush1.xpose.msra.mxu0 0.0
    %516 = vmatprep.subr.mxu0 0.0
    %517 = vmatpush1.xpose.msra.mxu0 0.0
    %518 = vmatprep.subr.mxu0 0.0
    %519 = vmatpush1.xpose.msra.mxu0 0.0
    %520 = vmatprep.subr.mxu0 0.0
    %521 = vmatpush1.xpose.msra.mxu0 0.0
    %522 = vmatprep.subr.mxu0 0.0
    %523 = vmatpush1.xpose.msra.mxu0 0.0
    %524 = vmatprep.subr.mxu0 0.0
    %525 = vmatpush1.xpose.msra.mxu0 0.0
    %526 = vmatprep.subr.mxu0 0.0
    %527 = vmatpush1.xpose.msra.mxu0 0.0
    %528 = vmatprep.subr.mxu0 0.0
    %529 = vmatpush1.xpose.msra.mxu0 0.0
    %530 = vmatprep.subr.mxu0 0.0
    %531 = vmatpush1.xpose.msra.mxu0 0.0
    %532 = vmatprep.subr.mxu0 0.0
    %533 = vmatpush1.xpose.msra.mxu0 0.0
    %534 = vmatprep.subr.mxu0 0.0
    %535 = vmatpush1.xpose.msra.mxu0 0.0
    %536 = vmatprep.subr.mxu0 0.0
    %537 = vmatpush1.xpose.msra.mxu0 0.0
    %538 = vmatprep.subr.mxu0 0.0
    %539 = vmatpush1.xpose.msra.mxu0 0.0
    %540 = vmatprep.subr.mxu0 0.0
    %541 = vmatpush1.xpose.msra.mxu0 0.0
    %542 = vmatprep.subr.mxu0 0.0
    %543 = vmatpush1.xpose.msra.mxu0 0.0
    %544 = vmatprep.subr.mxu0 0.0
    %545 = vmatpush1.xpose.msra.mxu0 0.0
    %546 = vmatprep.mubr.f32.mxu0 0.0
    %547 = vmatmul.mubr.f32.gmra.mrb[0].mxu0 %v478
    %v548 = vpop.f32.mrb[0].mxu0
    %v549 = vadd.f32 0.0, %v548
    %v550 = vpop.f32.mrb[0].mxu0
    %551 = vdwg.mxu0
    %552 = vrot.lane.b32.xlu0 %v166, 96
    %v553 = vpop.permute.xlu0 %552
    %v554 = vsel %vm173, %v166, 0
    %v556 = vsel %vm173, %v553, 0
    %558 = vmatprep.subr.mxu0 0.0
    %559 = vmatpush1.xpose.msra.mxu0 %v556
    %560 = vmatprep.subr.mxu0 0.0
    %561 = vmatpush1.xpose.msra.mxu0 0.0
    %562 = vmatprep.subr.mxu0 0.0
    %563 = vmatpush1.xpose.msra.mxu0 0.0
    %564 = vmatprep.subr.mxu0 0.0
    %565 = vmatpush1.xpose.msra.mxu0 0.0
    %566 = vmatprep.subr.mxu0 0.0
    %567 = vmatpush1.xpose.msra.mxu0 0.0
    %568 = vmatprep.subr.mxu0 0.0
    %569 = vmatpush1.xpose.msra.mxu0 0.0
    %570 = vmatprep.subr.mxu0 0.0
    %571 = vmatpush1.xpose.msra.mxu0 0.0
    %572 = vmatprep.subr.mxu0 0.0
    %573 = vmatpush1.xpose.msra.mxu0 0.0
    %574 = vmatprep.subr.mxu0 0.0
    %575 = vmatpush1.xpose.msra.mxu0 0.0
    %576 = vmatprep.subr.mxu0 0.0
    %577 = vmatpush1.xpose.msra.mxu0 0.0
    %578 = vmatprep.subr.mxu0 0.0
    %579 = vmatpush1.xpose.msra.mxu0 0.0
    %580 = vmatprep.subr.mxu0 0.0
    %581 = vmatpush1.xpose.msra.mxu0 0.0
    %582 = vmatprep.subr.mxu0 0.0
    %583 = vmatpush1.xpose.msra.mxu0 0.0
    %584 = vmatprep.subr.mxu0 0.0
    %585 = vmatpush1.xpose.msra.mxu0 0.0
    %586 = vmatprep.subr.mxu0 0.0
    %587 = vmatpush1.xpose.msra.mxu0 0.0
    %588 = vmatprep.subr.mxu0 0.0
    %589 = vmatpush1.xpose.msra.mxu0 0.0
    %590 = vmatprep.subr.mxu0 0.0
    %591 = vmatpush1.xpose.msra.mxu0 0.0
    %592 = vmatprep.subr.mxu0 0.0
    %593 = vmatpush1.xpose.msra.mxu0 0.0
    %594 = vmatprep.subr.mxu0 0.0
    %595 = vmatpush1.xpose.msra.mxu0 0.0
    %596 = vmatprep.subr.mxu0 0.0
    %597 = vmatpush1.xpose.msra.mxu0 0.0
    %598 = vmatprep.subr.mxu0 0.0
    %599 = vmatpush1.xpose.msra.mxu0 0.0
    %600 = vmatprep.subr.mxu0 0.0
    %601 = vmatpush1.xpose.msra.mxu0 0.0
    %602 = vmatprep.subr.mxu0 0.0
    %603 = vmatpush1.xpose.msra.mxu0 0.0
    %604 = vmatprep.subr.mxu0 0.0
    %605 = vmatpush1.xpose.msra.mxu0 0.0
    %606 = vmatprep.subr.mxu0 0.0
    %607 = vmatpush1.xpose.msra.mxu0 0.0
    %608 = vmatprep.subr.mxu0 0.0
    %609 = vmatpush1.xpose.msra.mxu0 0.0
    %610 = vmatprep.subr.mxu0 0.0
    %611 = vmatpush1.xpose.msra.mxu0 0.0
    %612 = vmatprep.subr.mxu0 0.0
    %613 = vmatpush1.xpose.msra.mxu0 0.0
    %614 = vmatprep.subr.mxu0 0.0
    %615 = vmatpush1.xpose.msra.mxu0 0.0
    %616 = vmatprep.subr.mxu0 0.0
    %617 = vmatpush1.xpose.msra.mxu0 0.0
    %618 = vmatprep.subr.mxu0 0.0
    %619 = vmatpush1.xpose.msra.mxu0 0.0
    %620 = vmatprep.subr.mxu0 0.0
    %621 = vmatpush1.xpose.msra.mxu0 0.0
    %622 = vmatprep.mubr.f32.mxu0 0.0
    %623 = vmatmul.mubr.f32.gmra.mrb[0].mxu0 %v554
    %v624 = vpop.f32.mrb[0].mxu0
    %v625 = vadd.f32 0.0, %v624
    %v626 = vpop.f32.mrb[0].mxu0
    %627 = vdwg.mxu0
    %628 = vrot.lane.b32.xlu0 %v168, 96
    %v629 = vpop.permute.xlu0 %628
    %v630 = vsel %vm173, %v168, 0
    %v632 = vsel %vm173, %v629, 0
    %634 = vmatprep.subr.mxu0 0.0
    %635 = vmatpush1.xpose.msra.mxu0 %v632
    %636 = vmatprep.subr.mxu0 0.0
    %637 = vmatpush1.xpose.msra.mxu0 0.0
    %638 = vmatprep.subr.mxu0 0.0
    %639 = vmatpush1.xpose.msra.mxu0 0.0
    %640 = vmatprep.subr.mxu0 0.0
    %641 = vmatpush1.xpose.msra.mxu0 0.0
    %642 = vmatprep.subr.mxu0 0.0
    %643 = vmatpush1.xpose.msra.mxu0 0.0
    %644 = vmatprep.subr.mxu0 0.0
    %645 = vmatpush1.xpose.msra.mxu0 0.0
    %646 = vmatprep.subr.mxu0 0.0
    %647 = vmatpush1.xpose.msra.mxu0 0.0
    %648 = vmatprep.subr.mxu0 0.0
    %649 = vmatpush1.xpose.msra.mxu0 0.0
    %650 = vmatprep.subr.mxu0 0.0
    %651 = vmatpush1.xpose.msra.mxu0 0.0
    %652 = vmatprep.subr.mxu0 0.0
    %653 = vmatpush1.xpose.msra.mxu0 0.0
    %654 = vmatprep.subr.mxu0 0.0
    %655 = vmatpush1.xpose.msra.mxu0 0.0
    %656 = vmatprep.subr.mxu0 0.0
    %657 = vmatpush1.xpose.msra.mxu0 0.0
    %658 = vmatprep.subr.mxu0 0.0
    %659 = vmatpush1.xpose.msra.mxu0 0.0
    %660 = vmatprep.subr.mxu0 0.0
    %661 = vmatpush1.xpose.msra.mxu0 0.0
    %662 = vmatprep.subr.mxu0 0.0
    %663 = vmatpush1.xpose.msra.mxu0 0.0
    %664 = vmatprep.subr.mxu0 0.0
    %665 = vmatpush1.xpose.msra.mxu0 0.0
    %666 = vmatprep.subr.mxu0 0.0
    %667 = vmatpush1.xpose.msra.mxu0 0.0
    %668 = vmatprep.subr.mxu0 0.0
    %669 = vmatpush1.xpose.msra.mxu0 0.0
    %670 = vmatprep.subr.mxu0 0.0
    %671 = vmatpush1.xpose.msra.mxu0 0.0
    %672 = vmatprep.subr.mxu0 0.0
    %673 = vmatpush1.xpose.msra.mxu0 0.0
    %674 = vmatprep.subr.mxu0 0.0
    %675 = vmatpush1.xpose.msra.mxu0 0.0
    %676 = vmatprep.subr.mxu0 0.0
    %677 = vmatpush1.xpose.msra.mxu0 0.0
    %678 = vmatprep.subr.mxu0 0.0
    %679 = vmatpush1.xpose.msra.mxu0 0.0
    %680 = vmatprep.subr.mxu0 0.0
    %681 = vmatpush1.xpose.msra.mxu0 0.0
    %682 = vmatprep.subr.mxu0 0.0
    %683 = vmatpush1.xpose.msra.mxu0 0.0
    %684 = vmatprep.subr.mxu0 0.0
    %685 = vmatpush1.xpose.msra.mxu0 0.0
    %686 = vmatprep.subr.mxu0 0.0
    %687 = vmatpush1.xpose.msra.mxu0 0.0
    %688 = vmatprep.subr.mxu0 0.0
    %689 = vmatpush1.xpose.msra.mxu0 0.0
    %690 = vmatprep.subr.mxu0 0.0
    %691 = vmatpush1.xpose.msra.mxu0 0.0
    %692 = vmatprep.subr.mxu0 0.0
    %693 = vmatpush1.xpose.msra.mxu0 0.0
    %694 = vmatprep.subr.mxu0 0.0
    %695 = vmatpush1.xpose.msra.mxu0 0.0
    %696 = vmatprep.subr.mxu0 0.0
    %697 = vmatpush1.xpose.msra.mxu0 0.0
    %698 = vmatprep.mubr.f32.mxu0 0.0
    %699 = vmatmul.mubr.f32.gmra.mrb[0].mxu0 %v630
    %v700 = vpop.f32.mrb[0].mxu0
    %v701 = vadd.f32 0.0, %v700
    %v702 = vpop.f32.mrb[0].mxu0
    %703 = vdwg.mxu0
    %704 = vrot.lane.b32.xlu0 %v170, 96
    %v705 = vpop.permute.xlu0 %704
    %v706 = vsel %vm173, %v170, 0
    %v708 = vsel %vm173, %v705, 0
    %710 = vmatprep.subr.mxu0 0.0
    %711 = vmatpush1.xpose.msra.mxu0 %v708
    %712 = vmatprep.subr.mxu0 0.0
    %713 = vmatpush1.xpose.msra.mxu0 0.0
    %714 = vmatprep.subr.mxu0 0.0
    %715 = vmatpush1.xpose.msra.mxu0 0.0
    %716 = vmatprep.subr.mxu0 0.0
    %717 = vmatpush1.xpose.msra.mxu0 0.0
    %718 = vmatprep.subr.mxu0 0.0
    %719 = vmatpush1.xpose.msra.mxu0 0.0
    %720 = vmatprep.subr.mxu0 0.0
    %721 = vmatpush1.xpose.msra.mxu0 0.0
    %722 = vmatprep.subr.mxu0 0.0
    %723 = vmatpush1.xpose.msra.mxu0 0.0
    %724 = vmatprep.subr.mxu0 0.0
    %725 = vmatpush1.xpose.msra.mxu0 0.0
    %726 = vmatprep.subr.mxu0 0.0
    %727 = vmatpush1.xpose.msra.mxu0 0.0
    %728 = vmatprep.subr.mxu0 0.0
    %729 = vmatpush1.xpose.msra.mxu0 0.0
    %730 = vmatprep.subr.mxu0 0.0
    %731 = vmatpush1.xpose.msra.mxu0 0.0
    %732 = vmatprep.subr.mxu0 0.0
    %733 = vmatpush1.xpose.msra.mxu0 0.0
    %734 = vmatprep.subr.mxu0 0.0
    %735 = vmatpush1.xpose.msra.mxu0 0.0
    %736 = vmatprep.subr.mxu0 0.0
    %737 = vmatpush1.xpose.msra.mxu0 0.0
    %738 = vmatprep.subr.mxu0 0.0
    %739 = vmatpush1.xpose.msra.mxu0 0.0
    %740 = vmatprep.subr.mxu0 0.0
    %741 = vmatpush1.xpose.msra.mxu0 0.0
    %742 = vmatprep.subr.mxu0 0.0
    %743 = vmatpush1.xpose.msra.mxu0 0.0
    %744 = vmatprep.subr.mxu0 0.0
    %745 = vmatpush1.xpose.msra.mxu0 0.0
    %746 = vmatprep.subr.mxu0 0.0
    %747 = vmatpush1.xpose.msra.mxu0 0.0
    %748 = vmatprep.subr.mxu0 0.0
    %749 = vmatpush1.xpose.msra.mxu0 0.0
    %750 = vmatprep.subr.mxu0 0.0
    %751 = vmatpush1.xpose.msra.mxu0 0.0
    %752 = vmatprep.subr.mxu0 0.0
    %753 = vmatpush1.xpose.msra.mxu0 0.0
    %754 = vmatprep.subr.mxu0 0.0
    %755 = vmatpush1.xpose.msra.mxu0 0.0
    %756 = vmatprep.subr.mxu0 0.0
    %757 = vmatpush1.xpose.msra.mxu0 0.0
    %758 = vmatprep.subr.mxu0 0.0
    %759 = vmatpush1.xpose.msra.mxu0 0.0
    %760 = vmatprep.subr.mxu0 0.0
    %761 = vmatpush1.xpose.msra.mxu0 0.0
    %762 = vmatprep.subr.mxu0 0.0
    %763 = vmatpush1.xpose.msra.mxu0 0.0
    %764 = vmatprep.subr.mxu0 0.0
    %765 = vmatpush1.xpose.msra.mxu0 0.0
    %766 = vmatprep.subr.mxu0 0.0
    %767 = vmatpush1.xpose.msra.mxu0 0.0
    %768 = vmatprep.subr.mxu0 0.0
    %769 = vmatpush1.xpose.msra.mxu0 0.0
    %770 = vmatprep.subr.mxu0 0.0
    %771 = vmatpush1.xpose.msra.mxu0 0.0
    %772 = vmatprep.subr.mxu0 0.0
    %773 = vmatpush1.xpose.msra.mxu0 0.0
    %774 = vmatprep.mubr.f32.mxu0 0.0
    %775 = vmatmul.mubr.f32.gmra.mrb[0].mxu0 %v706
    %v776 = vpop.f32.mrb[0].mxu0
    %v777 = vadd.f32 0.0, %v776
    %v778 = vpop.f32.mrb[0].mxu0
    %779 = vdwg.mxu0
    %v780 = vsel %vm173, %v245, -inf
    %781 = vmax.xlane.f32.xlu0 %v780
    %v782 = vpop.xlane.xlu0 %781
    %v783 = vsel %vm173, %v321, -inf
    %784 = vmax.xlane.f32.xlu0 %v783
    %v785 = vpop.xlane.xlu0 %784
    %v786 = vsel %vm173, %v397, -inf
    %787 = vmax.xlane.f32.xlu0 %v786
    %v788 = vpop.xlane.xlu0 %787
    %v789 = vsel %vm173, %v473, -inf
    %790 = vmax.xlane.f32.xlu0 %v789
    %v791 = vpop.xlane.xlu0 %790
    %v792 = vsel %vm173, %v549, -inf
    %793 = vmax.xlane.f32.xlu0 %v792
    %v794 = vpop.xlane.xlu0 %793
    %v795 = vsel %vm173, %v625, -inf
    %796 = vmax.xlane.f32.xlu0 %v795
    %v797 = vpop.xlane.xlu0 %796
    %v798 = vsel %vm173, %v701, -inf
    %799 = vmax.xlane.f32.xlu0 %v798
    %v800 = vpop.xlane.xlu0 %799
    %v801 = vsel %vm173, %v777, -inf
    %802 = vmax.xlane.f32.xlu0 %v801
    %v803 = vpop.xlane.xlu0 %802
    %v804 = vsub.f32 %v245, %v782
    %v805 = vsub.f32 %v321, %v785
    %v806 = vsub.f32 %v397, %v788
    %v807 = vsub.f32 %v473, %v791
    %v808 = vsub.f32 %v549, %v794
    %v809 = vsub.f32 %v625, %v797
    %v810 = vsub.f32 %v701, %v800
    %v811 = vsub.f32 %v777, %v803
    %v812 = vmul.f32 %v804, 1.442695
    %v813 = vpow.pop %v812
    %v814 = vmul.f32 %v805, 1.442695
    %v815 = vpow.pop %v814
    %v816 = vmul.f32 %v806, 1.442695
    %v817 = vpow.pop %v816
    %v818 = vmul.f32 %v807, 1.442695
    %v819 = vpow.pop %v818
    %v820 = vmul.f32 %v808, 1.442695
    %v821 = vpow.pop %v820
    %v822 = vmul.f32 %v809, 1.442695
    %v823 = vpow.pop %v822
    %v824 = vmul.f32 %v810, 1.442695
    %v825 = vpow.pop %v824
    %v826 = vmul.f32 %v811, 1.442695
    %v827 = vpow.pop %v826
    %v828 = vsel %vm173, %v813, 0.0
    %829 = vadd.xlane.f32.xlu0 %v828
    %v830 = vpop.xlane.xlu0 %829
    %v831 = vsel %vm173, %v815, 0.0
    %832 = vadd.xlane.f32.xlu0 %v831
    %v833 = vpop.xlane.xlu0 %832
    %v834 = vsel %vm173, %v817, 0.0
    %835 = vadd.xlane.f32.xlu0 %v834
    %v836 = vpop.xlane.xlu0 %835
    %v837 = vsel %vm173, %v819, 0.0
    %838 = vadd.xlane.f32.xlu0 %v837
    %v839 = vpop.xlane.xlu0 %838
    %v840 = vsel %vm173, %v821, 0.0
    %841 = vadd.xlane.f32.xlu0 %v840
    %v842 = vpop.xlane.xlu0 %841
    %v843 = vsel %vm173, %v823, 0.0
    %844 = vadd.xlane.f32.xlu0 %v843
    %v845 = vpop.xlane.xlu0 %844
    %v846 = vsel %vm173, %v825, 0.0
    %847 = vadd.xlane.f32.xlu0 %v846
    %v848 = vpop.xlane.xlu0 %847
    %v849 = vsel %vm173, %v827, 0.0
    %850 = vadd.xlane.f32.xlu0 %v849
    %v851 = vpop.xlane.xlu0 %850
    %v852 = vrcp.pop %v830
    %v853 = vrcp.pop %v833
    %v854 = vrcp.pop %v836
    %v855 = vrcp.pop %v839
    %v856 = vrcp.pop %v842
    %v857 = vrcp.pop %v845
    %v858 = vrcp.pop %v848
    %v859 = vrcp.pop %v851
    %v860 = vmul.f32 %v813, %v852
    %v861 = vmul.f32 %v815, %v853
    %v862 = vmul.f32 %v817, %v854
    %v863 = vmul.f32 %v819, %v855
    %v864 = vmul.f32 %v821, %v856
    %v865 = vmul.f32 %v823, %v857
    %v866 = vmul.f32 %v825, %v858
    %v867 = vmul.f32 %v827, %v859
    %868 = vrot.lane.b32.xlu0 %v149, 64
    %v869 = vpop.permute.xlu0 %868
    %v872 = vsel %vm173, %v860, 0
    %874 = vmatprep.subr.mxu0 0.0
    %875 = vmatpush1.msra.mxu0 %v869
    %876 = vmatprep.subr.mxu0 0.0
    %877 = vmatpush1.msra.mxu0 0.0
    %878 = vmatprep.subr.mxu0 0.0
    %879 = vmatpush1.msra.mxu0 0.0
    %880 = vmatprep.subr.mxu0 0.0
    %881 = vmatpush1.msra.mxu0 0.0
    %882 = vmatprep.subr.mxu0 0.0
    %883 = vmatpush1.msra.mxu0 0.0
    %884 = vmatprep.subr.mxu0 0.0
    %885 = vmatpush1.msra.mxu0 0.0
    %886 = vmatprep.subr.mxu0 0.0
    %887 = vmatpush1.msra.mxu0 0.0
    %888 = vmatprep.subr.mxu0 0.0
    %889 = vmatpush1.msra.mxu0 0.0
    %890 = vmatprep.subr.mxu0 0.0
    %891 = vmatpush1.msra.mxu0 0.0
    %892 = vmatprep.subr.mxu0 0.0
    %893 = vmatpush1.msra.mxu0 0.0
    %894 = vmatprep.subr.mxu0 0.0
    %895 = vmatpush1.msra.mxu0 0.0
    %896 = vmatprep.subr.mxu0 0.0
    %897 = vmatpush1.msra.mxu0 0.0
    %898 = vmatprep.subr.mxu0 0.0
    %899 = vmatpush1.msra.mxu0 0.0
    %900 = vmatprep.subr.mxu0 0.0
    %901 = vmatpush1.msra.mxu0 0.0
    %902 = vmatprep.subr.mxu0 0.0
    %903 = vmatpush1.msra.mxu0 0.0
    %904 = vmatprep.subr.mxu0 0.0
    %905 = vmatpush1.msra.mxu0 0.0
    %906 = vmatprep.subr.mxu0 0.0
    %907 = vmatpush1.msra.mxu0 0.0
    %908 = vmatprep.subr.mxu0 0.0
    %909 = vmatpush1.msra.mxu0 0.0
    %910 = vmatprep.subr.mxu0 0.0
    %911 = vmatpush1.msra.mxu0 0.0
    %912 = vmatprep.subr.mxu0 0.0
    %913 = vmatpush1.msra.mxu0 0.0
    %914 = vmatprep.subr.mxu0 0.0
    %915 = vmatpush1.msra.mxu0 0.0
    %916 = vmatprep.subr.mxu0 0.0
    %917 = vmatpush1.msra.mxu0 0.0
    %918 = vmatprep.subr.mxu0 0.0
    %919 = vmatpush1.msra.mxu0 0.0
    %920 = vmatprep.subr.mxu0 0.0
    %921 = vmatpush1.msra.mxu0 0.0
    %922 = vmatprep.subr.mxu0 0.0
    %923 = vmatpush1.msra.mxu0 0.0
    %924 = vmatprep.subr.mxu0 0.0
    %925 = vmatpush1.msra.mxu0 0.0
    %926 = vmatprep.subr.mxu0 0.0
    %927 = vmatpush1.msra.mxu0 0.0
    %928 = vmatprep.subr.mxu0 0.0
    %929 = vmatpush1.msra.mxu0 0.0
    %930 = vmatprep.subr.mxu0 0.0
    %931 = vmatpush1.msra.mxu0 0.0
    %932 = vmatprep.subr.mxu0 0.0
    %933 = vmatpush1.msra.mxu0 0.0
    %934 = vmatprep.subr.mxu0 0.0
    %935 = vmatpush1.msra.mxu0 0.0
    %936 = vmatprep.subr.mxu0 0.0
    %937 = vmatpush1.msra.mxu0 0.0
    %938 = vmatprep.mubr.f32.mxu0 0.0
    %939 = vmatmul.mubr.f32.gmra.mrb[0].mxu0 %v872
    %v940 = vpop.f32.mrb[0].mxu0
    %v941 = vadd.f32 0.0, %v940
    %v942 = vpop.f32.mrb[0].mxu0
    %943 = vdwg.mxu0
    %944 = vrot.lane.b32.xlu0 %v159, 64
    %v945 = vpop.permute.xlu0 %944
    %v948 = vsel %vm173, %v861, 0
    %950 = vmatprep.subr.mxu0 0.0
    %951 = vmatpush1.msra.mxu0 %v945
    %952 = vmatprep.subr.mxu0 0.0
    %953 = vmatpush1.msra.mxu0 0.0
    %954 = vmatprep.subr.mxu0 0.0
    %955 = vmatpush1.msra.mxu0 0.0
    %956 = vmatprep.subr.mxu0 0.0
    %957 = vmatpush1.msra.mxu0 0.0
    %958 = vmatprep.subr.mxu0 0.0
    %959 = vmatpush1.msra.mxu0 0.0
    %960 = vmatprep.subr.mxu0 0.0
    %961 = vmatpush1.msra.mxu0 0.0
    %962 = vmatprep.subr.mxu0 0.0
    %963 = vmatpush1.msra.mxu0 0.0
    %964 = vmatprep.subr.mxu0 0.0
    %965 = vmatpush1.msra.mxu0 0.0
    %966 = vmatprep.subr.mxu0 0.0
    %967 = vmatpush1.msra.mxu0 0.0
    %968 = vmatprep.subr.mxu0 0.0
    %969 = vmatpush1.msra.mxu0 0.0
    %970 = vmatprep.subr.mxu0 0.0
    %971 = vmatpush1.msra.mxu0 0.0
    %972 = vmatprep.subr.mxu0 0.0
    %973 = vmatpush1.msra.mxu0 0.0
    %974 = vmatprep.subr.mxu0 0.0
    %975 = vmatpush1.msra.mxu0 0.0
    %976 = vmatprep.subr.mxu0 0.0
    %977 = vmatpush1.msra.mxu0 0.0
    %978 = vmatprep.subr.mxu0 0.0
    %979 = vmatpush1.msra.mxu0 0.0
    %980 = vmatprep.subr.mxu0 0.0
    %981 = vmatpush1.msra.mxu0 0.0
    %982 = vmatprep.subr.mxu0 0.0
    %983 = vmatpush1.msra.mxu0 0.0
    %984 = vmatprep.subr.mxu0 0.0
    %985 = vmatpush1.msra.mxu0 0.0
    %986 = vmatprep.subr.mxu0 0.0
    %987 = vmatpush1.msra.mxu0 0.0
    %988 = vmatprep.subr.mxu0 0.0
    %989 = vmatpush1.msra.mxu0 0.0
    %990 = vmatprep.subr.mxu0 0.0
    %991 = vmatpush1.msra.mxu0 0.0
    %992 = vmatprep.subr.mxu0 0.0
    %993 = vmatpush1.msra.mxu0 0.0
    %994 = vmatprep.subr.mxu0 0.0
    %995 = vmatpush1.msra.mxu0 0.0
    %996 = vmatprep.subr.mxu0 0.0
    %997 = vmatpush1.msra.mxu0 0.0
    %998 = vmatprep.subr.mxu0 0.0
    %999 = vmatpush1.msra.mxu0 0.0
    %1000 = vmatprep.subr.mxu0 0.0
    %1001 = vmatpush1.msra.mxu0 0.0
    %1002 = vmatprep.subr.mxu0 0.0
    %1003 = vmatpush1.msra.mxu0 0.0
    %1004 = vmatprep.subr.mxu0 0.0
    %1005 = vmatpush1.msra.mxu0 0.0
    %1006 = vmatprep.subr.mxu0 0.0
    %1007 = vmatpush1.msra.mxu0 0.0
    %1008 = vmatprep.subr.mxu0 0.0
    %1009 = vmatpush1.msra.mxu0 0.0
    %1010 = vmatprep.subr.mxu0 0.0
    %1011 = vmatpush1.msra.mxu0 0.0
    %1012 = vmatprep.subr.mxu0 0.0
    %1013 = vmatpush1.msra.mxu0 0.0
    %1014 = vmatprep.mubr.f32.mxu0 0.0
    %1015 = vmatmul.mubr.f32.gmra.mrb[0].mxu0 %v948
    %v1016 = vpop.f32.mrb[0].mxu0
    %v1017 = vadd.f32 0.0, %v1016
    %v1018 = vpop.f32.mrb[0].mxu0
    %1019 = vdwg.mxu0
    %1020 = vrot.lane.b32.xlu0 %v161, 64
    %v1021 = vpop.permute.xlu0 %1020
    %v1024 = vsel %vm173, %v862, 0
    %1026 = vmatprep.subr.mxu0 0.0
    %1027 = vmatpush1.msra.mxu0 %v1021
    %1028 = vmatprep.subr.mxu0 0.0
    %1029 = vmatpush1.msra.mxu0 0.0
    %1030 = vmatprep.subr.mxu0 0.0
    %1031 = vmatpush1.msra.mxu0 0.0
    %1032 = vmatprep.subr.mxu0 0.0
    %1033 = vmatpush1.msra.mxu0 0.0
    %1034 = vmatprep.subr.mxu0 0.0
    %1035 = vmatpush1.msra.mxu0 0.0
    %1036 = vmatprep.subr.mxu0 0.0
    %1037 = vmatpush1.msra.mxu0 0.0
    %1038 = vmatprep.subr.mxu0 0.0
    %1039 = vmatpush1.msra.mxu0 0.0
    %1040 = vmatprep.subr.mxu0 0.0
    %1041 = vmatpush1.msra.mxu0 0.0
    %1042 = vmatprep.subr.mxu0 0.0
    %1043 = vmatpush1.msra.mxu0 0.0
    %1044 = vmatprep.subr.mxu0 0.0
    %1045 = vmatpush1.msra.mxu0 0.0
    %1046 = vmatprep.subr.mxu0 0.0
    %1047 = vmatpush1.msra.mxu0 0.0
    %1048 = vmatprep.subr.mxu0 0.0
    %1049 = vmatpush1.msra.mxu0 0.0
    %1050 = vmatprep.subr.mxu0 0.0
    %1051 = vmatpush1.msra.mxu0 0.0
    %1052 = vmatprep.subr.mxu0 0.0
    %1053 = vmatpush1.msra.mxu0 0.0
    %1054 = vmatprep.subr.mxu0 0.0
    %1055 = vmatpush1.msra.mxu0 0.0
    %1056 = vmatprep.subr.mxu0 0.0
    %1057 = vmatpush1.msra.mxu0 0.0
    %1058 = vmatprep.subr.mxu0 0.0
    %1059 = vmatpush1.msra.mxu0 0.0
    %1060 = vmatprep.subr.mxu0 0.0
    %1061 = vmatpush1.msra.mxu0 0.0
    %1062 = vmatprep.subr.mxu0 0.0
    %1063 = vmatpush1.msra.mxu0 0.0
    %1064 = vmatprep.subr.mxu0 0.0
    %1065 = vmatpush1.msra.mxu0 0.0
    %1066 = vmatprep.subr.mxu0 0.0
    %1067 = vmatpush1.msra.mxu0 0.0
    %1068 = vmatprep.subr.mxu0 0.0
    %1069 = vmatpush1.msra.mxu0 0.0
    %1070 = vmatprep.subr.mxu0 0.0
    %1071 = vmatpush1.msra.mxu0 0.0
    %1072 = vmatprep.subr.mxu0 0.0
    %1073 = vmatpush1.msra.mxu0 0.0
    %1074 = vmatprep.subr.mxu0 0.0
    %1075 = vmatpush1.msra.mxu0 0.0
    %1076 = vmatprep.subr.mxu0 0.0
    %1077 = vmatpush1.msra.mxu0 0.0
    %1078 = vmatprep.subr.mxu0 0.0
    %1079 = vmatpush1.msra.mxu0 0.0
    %1080 = vmatprep.subr.mxu0 0.0
    %1081 = vmatpush1.msra.mxu0 0.0
    %1082 = vmatprep.subr.mxu0 0.0
    %1083 = vmatpush1.msra.mxu0 0.0
    %1084 = vmatprep.subr.mxu0 0.0
    %1085 = vmatpush1.msra.mxu0 0.0
    %1086 = vmatprep.subr.mxu0 0.0
    %1087 = vmatpush1.msra.mxu0 0.0
    %1088 = vmatprep.subr.mxu0 0.0
    %1089 = vmatpush1.msra.mxu0 0.0
    %1090 = vmatprep.mubr.f32.mxu0 0.0
    %1091 = vmatmul.mubr.f32.gmra.mrb[0].mxu0 %v1024
    %v1092 = vpop.f32.mrb[0].mxu0
    %v1093 = vadd.f32 0.0, %v1092
    %v1094 = vpop.f32.mrb[0].mxu0
    %1095 = vdwg.mxu0
    %1096 = vrot.lane.b32.xlu0 %v163, 64
    %v1097 = vpop.permute.xlu0 %1096
    %v1100 = vsel %vm173, %v863, 0
    %1102 = vmatprep.subr.mxu0 0.0
    %1103 = vmatpush1.msra.mxu0 %v1097
    %1104 = vmatprep.subr.mxu0 0.0
    %1105 = vmatpush1.msra.mxu0 0.0
    %1106 = vmatprep.subr.mxu0 0.0
    %1107 = vmatpush1.msra.mxu0 0.0
    %1108 = vmatprep.subr.mxu0 0.0
    %1109 = vmatpush1.msra.mxu0 0.0
    %1110 = vmatprep.subr.mxu0 0.0
    %1111 = vmatpush1.msra.mxu0 0.0
    %1112 = vmatprep.subr.mxu0 0.0
    %1113 = vmatpush1.msra.mxu0 0.0
    %1114 = vmatprep.subr.mxu0 0.0
    %1115 = vmatpush1.msra.mxu0 0.0
    %1116 = vmatprep.subr.mxu0 0.0
    %1117 = vmatpush1.msra.mxu0 0.0
    %1118 = vmatprep.subr.mxu0 0.0
    %1119 = vmatpush1.msra.mxu0 0.0
    %1120 = vmatprep.subr.mxu0 0.0
    %1121 = vmatpush1.msra.mxu0 0.0
    %1122 = vmatprep.subr.mxu0 0.0
    %1123 = vmatpush1.msra.mxu0 0.0
    %1124 = vmatprep.subr.mxu0 0.0
    %1125 = vmatpush1.msra.mxu0 0.0
    %1126 = vmatprep.subr.mxu0 0.0
    %1127 = vmatpush1.msra.mxu0 0.0
    %1128 = vmatprep.subr.mxu0 0.0
    %1129 = vmatpush1.msra.mxu0 0.0
    %1130 = vmatprep.subr.mxu0 0.0
    %1131 = vmatpush1.msra.mxu0 0.0
    %1132 = vmatprep.subr.mxu0 0.0
    %1133 = vmatpush1.msra.mxu0 0.0
    %1134 = vmatprep.subr.mxu0 0.0
    %1135 = vmatpush1.msra.mxu0 0.0
    %1136 = vmatprep.subr.mxu0 0.0
    %1137 = vmatpush1.msra.mxu0 0.0
    %1138 = vmatprep.subr.mxu0 0.0
    %1139 = vmatpush1.msra.mxu0 0.0
    %1140 = vmatprep.subr.mxu0 0.0
    %1141 = vmatpush1.msra.mxu0 0.0
    %1142 = vmatprep.subr.mxu0 0.0
    %1143 = vmatpush1.msra.mxu0 0.0
    %1144 = vmatprep.subr.mxu0 0.0
    %1145 = vmatpush1.msra.mxu0 0.0
    %1146 = vmatprep.subr.mxu0 0.0
    %1147 = vmatpush1.msra.mxu0 0.0
    %1148 = vmatprep.subr.mxu0 0.0
    %1149 = vmatpush1.msra.mxu0 0.0
    %1150 = vmatprep.subr.mxu0 0.0
    %1151 = vmatpush1.msra.mxu0 0.0
    %1152 = vmatprep.subr.mxu0 0.0
    %1153 = vmatpush1.msra.mxu0 0.0
    %1154 = vmatprep.subr.mxu0 0.0
    %1155 = vmatpush1.msra.mxu0 0.0
    %1156 = vmatprep.subr.mxu0 0.0
    %1157 = vmatpush1.msra.mxu0 0.0
    %1158 = vmatprep.subr.mxu0 0.0
    %1159 = vmatpush1.msra.mxu0 0.0
    %1160 = vmatprep.subr.mxu0 0.0
    %1161 = vmatpush1.msra.mxu0 0.0
    %1162 = vmatprep.subr.mxu0 0.0
    %1163 = vmatpush1.msra.mxu0 0.0
    %1164 = vmatprep.subr.mxu0 0.0
    %1165 = vmatpush1.msra.mxu0 0.0
    %1166 = vmatprep.mubr.f32.mxu0 0.0
    %1167 = vmatmul.mubr.f32.gmra.mrb[0].mxu0 %v1100
    %v1168 = vpop.f32.mrb[0].mxu0
    %v1169 = vadd.f32 0.0, %v1168
    %v1170 = vpop.f32.mrb[0].mxu0
    %1171 = vdwg.mxu0
    %1172 = vrot.lane.b32.xlu0 %v154, 64
    %v1173 = vpop.permute.xlu0 %1172
    %v1176 = vsel %vm173, %v864, 0
    %1178 = vmatprep.subr.mxu0 0.0
    %1179 = vmatpush1.msra.mxu0 %v1173
    %1180 = vmatprep.subr.mxu0 0.0
    %1181 = vmatpush1.msra.mxu0 0.0
    %1182 = vmatprep.subr.mxu0 0.0
    %1183 = vmatpush1.msra.mxu0 0.0
    %1184 = vmatprep.subr.mxu0 0.0
    %1185 = vmatpush1.msra.mxu0 0.0
    %1186 = vmatprep.subr.mxu0 0.0
    %1187 = vmatpush1.msra.mxu0 0.0
    %1188 = vmatprep.subr.mxu0 0.0
    %1189 = vmatpush1.msra.mxu0 0.0
    %1190 = vmatprep.subr.mxu0 0.0
    %1191 = vmatpush1.msra.mxu0 0.0
    %1192 = vmatprep.subr.mxu0 0.0
    %1193 = vmatpush1.msra.mxu0 0.0
    %1194 = vmatprep.subr.mxu0 0.0
    %1195 = vmatpush1.msra.mxu0 0.0
    %1196 = vmatprep.subr.mxu0 0.0
    %1197 = vmatpush1.msra.mxu0 0.0
    %1198 = vmatprep.subr.mxu0 0.0
    %1199 = vmatpush1.msra.mxu0 0.0
    %1200 = vmatprep.subr.mxu0 0.0
    %1201 = vmatpush1.msra.mxu0 0.0
    %1202 = vmatprep.subr.mxu0 0.0
    %1203 = vmatpush1.msra.mxu0 0.0
    %1204 = vmatprep.subr.mxu0 0.0
    %1205 = vmatpush1.msra.mxu0 0.0
    %1206 = vmatprep.subr.mxu0 0.0
    %1207 = vmatpush1.msra.mxu0 0.0
    %1208 = vmatprep.subr.mxu0 0.0
    %1209 = vmatpush1.msra.mxu0 0.0
    %1210 = vmatprep.subr.mxu0 0.0
    %1211 = vmatpush1.msra.mxu0 0.0
    %1212 = vmatprep.subr.mxu0 0.0
    %1213 = vmatpush1.msra.mxu0 0.0
    %1214 = vmatprep.subr.mxu0 0.0
    %1215 = vmatpush1.msra.mxu0 0.0
    %1216 = vmatprep.subr.mxu0 0.0
    %1217 = vmatpush1.msra.mxu0 0.0
    %1218 = vmatprep.subr.mxu0 0.0
    %1219 = vmatpush1.msra.mxu0 0.0
    %1220 = vmatprep.subr.mxu0 0.0
    %1221 = vmatpush1.msra.mxu0 0.0
    %1222 = vmatprep.subr.mxu0 0.0
    %1223 = vmatpush1.msra.mxu0 0.0
    %1224 = vmatprep.subr.mxu0 0.0
    %1225 = vmatpush1.msra.mxu0 0.0
    %1226 = vmatprep.subr.mxu0 0.0
    %1227 = vmatpush1.msra.mxu0 0.0
    %1228 = vmatprep.subr.mxu0 0.0
    %1229 = vmatpush1.msra.mxu0 0.0
    %1230 = vmatprep.subr.mxu0 0.0
    %1231 = vmatpush1.msra.mxu0 0.0
    %1232 = vmatprep.subr.mxu0 0.0
    %1233 = vmatpush1.msra.mxu0 0.0
    %1234 = vmatprep.subr.mxu0 0.0
    %1235 = vmatpush1.msra.mxu0 0.0
    %1236 = vmatprep.subr.mxu0 0.0
    %1237 = vmatpush1.msra.mxu0 0.0
    %1238 = vmatprep.subr.mxu0 0.0
    %1239 = vmatpush1.msra.mxu0 0.0
    %1240 = vmatprep.subr.mxu0 0.0
    %1241 = vmatpush1.msra.mxu0 0.0
    %1242 = vmatprep.mubr.f32.mxu0 0.0
    %1243 = vmatmul.mubr.f32.gmra.mrb[0].mxu0 %v1176
    %v1244 = vpop.f32.mrb[0].mxu0
    %v1245 = vadd.f32 0.0, %v1244
    %v1246 = vpop.f32.mrb[0].mxu0
    %1247 = vdwg.mxu0
    %1248 = vrot.lane.b32.xlu0 %v166, 64
    %v1249 = vpop.permute.xlu0 %1248
    %v1252 = vsel %vm173, %v865, 0
    %1254 = vmatprep.subr.mxu0 0.0
    %1255 = vmatpush1.msra.mxu0 %v1249
    %1256 = vmatprep.subr.mxu0 0.0
    %1257 = vmatpush1.msra.mxu0 0.0
    %1258 = vmatprep.subr.mxu0 0.0
    %1259 = vmatpush1.msra.mxu0 0.0
    %1260 = vmatprep.subr.mxu0 0.0
    %1261 = vmatpush1.msra.mxu0 0.0
    %1262 = vmatprep.subr.mxu0 0.0
    %1263 = vmatpush1.msra.mxu0 0.0
    %1264 = vmatprep.subr.mxu0 0.0
    %1265 = vmatpush1.msra.mxu0 0.0
    %1266 = vmatprep.subr.mxu0 0.0
    %1267 = vmatpush1.msra.mxu0 0.0
    %1268 = vmatprep.subr.mxu0 0.0
    %1269 = vmatpush1.msra.mxu0 0.0
    %1270 = vmatprep.subr.mxu0 0.0
    %1271 = vmatpush1.msra.mxu0 0.0
    %1272 = vmatprep.subr.mxu0 0.0
    %1273 = vmatpush1.msra.mxu0 0.0
    %1274 = vmatprep.subr.mxu0 0.0
    %1275 = vmatpush1.msra.mxu0 0.0
    %1276 = vmatprep.subr.mxu0 0.0
    %1277 = vmatpush1.msra.mxu0 0.0
    %1278 = vmatprep.subr.mxu0 0.0
    %1279 = vmatpush1.msra.mxu0 0.0
    %1280 = vmatprep.subr.mxu0 0.0
    %1281 = vmatpush1.msra.mxu0 0.0
    %1282 = vmatprep.subr.mxu0 0.0
    %1283 = vmatpush1.msra.mxu0 0.0
    %1284 = vmatprep.subr.mxu0 0.0
    %1285 = vmatpush1.msra.mxu0 0.0
    %1286 = vmatprep.subr.mxu0 0.0
    %1287 = vmatpush1.msra.mxu0 0.0
    %1288 = vmatprep.subr.mxu0 0.0
    %1289 = vmatpush1.msra.mxu0 0.0
    %1290 = vmatprep.subr.mxu0 0.0
    %1291 = vmatpush1.msra.mxu0 0.0
    %1292 = vmatprep.subr.mxu0 0.0
    %1293 = vmatpush1.msra.mxu0 0.0
    %1294 = vmatprep.subr.mxu0 0.0
    %1295 = vmatpush1.msra.mxu0 0.0
    %1296 = vmatprep.subr.mxu0 0.0
    %1297 = vmatpush1.msra.mxu0 0.0
    %1298 = vmatprep.subr.mxu0 0.0
    %1299 = vmatpush1.msra.mxu0 0.0
    %1300 = vmatprep.subr.mxu0 0.0
    %1301 = vmatpush1.msra.mxu0 0.0
    %1302 = vmatprep.subr.mxu0 0.0
    %1303 = vmatpush1.msra.mxu0 0.0
    %1304 = vmatprep.subr.mxu0 0.0
    %1305 = vmatpush1.msra.mxu0 0.0
    %1306 = vmatprep.subr.mxu0 0.0
    %1307 = vmatpush1.msra.mxu0 0.0
    %1308 = vmatprep.subr.mxu0 0.0
    %1309 = vmatpush1.msra.mxu0 0.0
    %1310 = vmatprep.subr.mxu0 0.0
    %1311 = vmatpush1.msra.mxu0 0.0
    %1312 = vmatprep.subr.mxu0 0.0
    %1313 = vmatpush1.msra.mxu0 0.0
    %1314 = vmatprep.subr.mxu0 0.0
    %1315 = vmatpush1.msra.mxu0 0.0
    %1316 = vmatprep.subr.mxu0 0.0
    %1317 = vmatpush1.msra.mxu0 0.0
    %1318 = vmatprep.mubr.f32.mxu0 0.0
    %1319 = vmatmul.mubr.f32.gmra.mrb[0].mxu0 %v1252
    %v1320 = vpop.f32.mrb[0].mxu0
    %v1321 = vadd.f32 0.0, %v1320
    %v1322 = vpop.f32.mrb[0].mxu0
    %1323 = vdwg.mxu0
    %1324 = vrot.lane.b32.xlu0 %v168, 64
    %v1325 = vpop.permute.xlu0 %1324
    %v1328 = vsel %vm173, %v866, 0
    %1330 = vmatprep.subr.mxu0 0.0
    %1331 = vmatpush1.msra.mxu0 %v1325
    %1332 = vmatprep.subr.mxu0 0.0
    %1333 = vmatpush1.msra.mxu0 0.0
    %1334 = vmatprep.subr.mxu0 0.0
    %1335 = vmatpush1.msra.mxu0 0.0
    %1336 = vmatprep.subr.mxu0 0.0
    %1337 = vmatpush1.msra.mxu0 0.0
    %1338 = vmatprep.subr.mxu0 0.0
    %1339 = vmatpush1.msra.mxu0 0.0
    %1340 = vmatprep.subr.mxu0 0.0
    %1341 = vmatpush1.msra.mxu0 0.0
    %1342 = vmatprep.subr.mxu0 0.0
    %1343 = vmatpush1.msra.mxu0 0.0
    %1344 = vmatprep.subr.mxu0 0.0
    %1345 = vmatpush1.msra.mxu0 0.0
    %1346 = vmatprep.subr.mxu0 0.0
    %1347 = vmatpush1.msra.mxu0 0.0
    %1348 = vmatprep.subr.mxu0 0.0
    %1349 = vmatpush1.msra.mxu0 0.0
    %1350 = vmatprep.subr.mxu0 0.0
    %1351 = vmatpush1.msra.mxu0 0.0
    %1352 = vmatprep.subr.mxu0 0.0
    %1353 = vmatpush1.msra.mxu0 0.0
    %1354 = vmatprep.subr.mxu0 0.0
    %1355 = vmatpush1.msra.mxu0 0.0
    %1356 = vmatprep.subr.mxu0 0.0
    %1357 = vmatpush1.msra.mxu0 0.0
    %1358 = vmatprep.subr.mxu0 0.0
    %1359 = vmatpush1.msra.mxu0 0.0
    %1360 = vmatprep.subr.mxu0 0.0
    %1361 = vmatpush1.msra.mxu0 0.0
    %1362 = vmatprep.subr.mxu0 0.0
    %1363 = vmatpush1.msra.mxu0 0.0
    %1364 = vmatprep.subr.mxu0 0.0
    %1365 = vmatpush1.msra.mxu0 0.0
    %1366 = vmatprep.subr.mxu0 0.0
    %1367 = vmatpush1.msra.mxu0 0.0
    %1368 = vmatprep.subr.mxu0 0.0
    %1369 = vmatpush1.msra.mxu0 0.0
    %1370 = vmatprep.subr.mxu0 0.0
    %1371 = vmatpush1.msra.mxu0 0.0
    %1372 = vmatprep.subr.mxu0 0.0
    %1373 = vmatpush1.msra.mxu0 0.0
    %1374 = vmatprep.subr.mxu0 0.0
    %1375 = vmatpush1.msra.mxu0 0.0
    %1376 = vmatprep.subr.mxu0 0.0
    %1377 = vmatpush1.msra.mxu0 0.0
    %1378 = vmatprep.subr.mxu0 0.0
    %1379 = vmatpush1.msra.mxu0 0.0
    %1380 = vmatprep.subr.mxu0 0.0
    %1381 = vmatpush1.msra.mxu0 0.0
    %1382 = vmatprep.subr.mxu0 0.0
    %1383 = vmatpush1.msra.mxu0 0.0
    %1384 = vmatprep.subr.mxu0 0.0
    %1385 = vmatpush1.msra.mxu0 0.0
    %1386 = vmatprep.subr.mxu0 0.0
    %1387 = vmatpush1.msra.mxu0 0.0
    %1388 = vmatprep.subr.mxu0 0.0
    %1389 = vmatpush1.msra.mxu0 0.0
    %1390 = vmatprep.subr.mxu0 0.0
    %1391 = vmatpush1.msra.mxu0 0.0
    %1392 = vmatprep.subr.mxu0 0.0
    %1393 = vmatpush1.msra.mxu0 0.0
    %1394 = vmatprep.mubr.f32.mxu0 0.0
    %1395 = vmatmul.mubr.f32.gmra.mrb[0].mxu0 %v1328
    %v1396 = vpop.f32.mrb[0].mxu0
    %v1397 = vadd.f32 0.0, %v1396
    %v1398 = vpop.f32.mrb[0].mxu0
    %1399 = vdwg.mxu0
    %1400 = vrot.lane.b32.xlu0 %v170, 64
    %v1401 = vpop.permute.xlu0 %1400
    %v1404 = vsel %vm173, %v867, 0
    %1406 = vmatprep.subr.mxu0 0.0
    %1407 = vmatpush1.msra.mxu0 %v1401
    %1408 = vmatprep.subr.mxu0 0.0
    %1409 = vmatpush1.msra.mxu0 0.0
    %1410 = vmatprep.subr.mxu0 0.0
    %1411 = vmatpush1.msra.mxu0 0.0
    %1412 = vmatprep.subr.mxu0 0.0
    %1413 = vmatpush1.msra.mxu0 0.0
    %1414 = vmatprep.subr.mxu0 0.0
    %1415 = vmatpush1.msra.mxu0 0.0
    %1416 = vmatprep.subr.mxu0 0.0
    %1417 = vmatpush1.msra.mxu0 0.0
    %1418 = vmatprep.subr.mxu0 0.0
    %1419 = vmatpush1.msra.mxu0 0.0
    %1420 = vmatprep.subr.mxu0 0.0
    %1421 = vmatpush1.msra.mxu0 0.0
    %1422 = vmatprep.subr.mxu0 0.0
    %1423 = vmatpush1.msra.mxu0 0.0
    %1424 = vmatprep.subr.mxu0 0.0
    %1425 = vmatpush1.msra.mxu0 0.0
    %1426 = vmatprep.subr.mxu0 0.0
    %1427 = vmatpush1.msra.mxu0 0.0
    %1428 = vmatprep.subr.mxu0 0.0
    %1429 = vmatpush1.msra.mxu0 0.0
    %1430 = vmatprep.subr.mxu0 0.0
    %1431 = vmatpush1.msra.mxu0 0.0
    %1432 = vmatprep.subr.mxu0 0.0
    %1433 = vmatpush1.msra.mxu0 0.0
    %1434 = vmatprep.subr.mxu0 0.0
    %1435 = vmatpush1.msra.mxu0 0.0
    %1436 = vmatprep.subr.mxu0 0.0
    %1437 = vmatpush1.msra.mxu0 0.0
    %1438 = vmatprep.subr.mxu0 0.0
    %1439 = vmatpush1.msra.mxu0 0.0
    %1440 = vmatprep.subr.mxu0 0.0
    %1441 = vmatpush1.msra.mxu0 0.0
    %1442 = vmatprep.subr.mxu0 0.0
    %1443 = vmatpush1.msra.mxu0 0.0
    %1444 = vmatprep.subr.mxu0 0.0
    %1445 = vmatpush1.msra.mxu0 0.0
    %1446 = vmatprep.subr.mxu0 0.0
    %1447 = vmatpush1.msra.mxu0 0.0
    %1448 = vmatprep.subr.mxu0 0.0
    %1449 = vmatpush1.msra.mxu0 0.0
    %1450 = vmatprep.subr.mxu0 0.0
    %1451 = vmatpush1.msra.mxu0 0.0
    %1452 = vmatprep.subr.mxu0 0.0
    %1453 = vmatpush1.msra.mxu0 0.0
    %1454 = vmatprep.subr.mxu0 0.0
    %1455 = vmatpush1.msra.mxu0 0.0
    %1456 = vmatprep.subr.mxu0 0.0
    %1457 = vmatpush1.msra.mxu0 0.0
    %1458 = vmatprep.subr.mxu0 0.0
    %1459 = vmatpush1.msra.mxu0 0.0
    %1460 = vmatprep.subr.mxu0 0.0
    %1461 = vmatpush1.msra.mxu0 0.0
    %1462 = vmatprep.subr.mxu0 0.0
    %1463 = vmatpush1.msra.mxu0 0.0
    %1464 = vmatprep.subr.mxu0 0.0
    %1465 = vmatpush1.msra.mxu0 0.0
    %1466 = vmatprep.subr.mxu0 0.0
    %1467 = vmatpush1.msra.mxu0 0.0
    %1468 = vmatprep.subr.mxu0 0.0
    %1469 = vmatpush1.msra.mxu0 0.0
    %1470 = vmatprep.mubr.f32.mxu0 0.0
    %1471 = vmatmul.mubr.f32.gmra.mrb[0].mxu0 %v1404
    %v1472 = vpop.f32.mrb[0].mxu0
    %v1473 = vadd.f32 0.0, %v1472
    %v1474 = vpop.f32.mrb[0].mxu0
    %1475 = vdwg.mxu0
    %1477 = vrot.lane.b32.xlu0 %v1017, 8
    %v1478 = vpop.permute.xlu0 %1477
    %1481 = vrot.lane.b32.xlu0 %v1093, 16
    %v1482 = vpop.permute.xlu0 %1481
    %1485 = vrot.lane.b32.xlu0 %v1169, 24
    %v1486 = vpop.permute.xlu0 %1485
    %v1488 = vsel %vm173, %v941, %v1478
    %vm1489 = vcmask 130048
    %v1490 = vsel %vm1489, %v1488, %v1482
    %vm1491 = vcmask 195584
    %v1492 = vsel %vm1491, %v1490, %v1486
    %1494 = vrot.lane.b32.xlu0 %v1321, 8
    %v1495 = vpop.permute.xlu0 %1494
    %1498 = vrot.lane.b32.xlu0 %v1397, 16
    %v1499 = vpop.permute.xlu0 %1498
    %1502 = vrot.lane.b32.xlu0 %v1473, 24
    %v1503 = vpop.permute.xlu0 %1502
    %v1505 = vsel %vm173, %v1245, %v1495
    %v1506 = vsel %vm1489, %v1505, %v1499
    %v1507 = vsel %vm1491, %v1506, %v1503
    %v1508 = vlaneseq
    %v1509 = vshrl.u32 %v1508, 7
    %v1510 = vsub.s32 0, %v1509
    %v1511 = vrot.slane %v55, %v1510
    %v1513 = vsel %vm75, %v1492, 0
    %v1516 = vsel %vm75, %v1507, 0
    %1518 = vmatprep.subr.mxu0 0.0
    %1519 = vmatpush1.msra.mxu0 %v51
    %1520 = vmatprep.subr.mxu0 0.0
    %1521 = vmatpush1.msra.mxu0 %v52
    %1522 = vmatprep.subr.mxu0 0.0
    %1523 = vmatpush1.msra.mxu0 %v53
    %1524 = vmatprep.subr.mxu0 0.0
    %1525 = vmatpush1.msra.mxu0 %v54
    %1526 = vmatprep.subr.mxu0 0.0
    %1527 = vmatpush1.msra.mxu0 0.0
    %1528 = vmatprep.subr.mxu0 0.0
    %1529 = vmatpush1.msra.mxu0 0.0
    %1530 = vmatprep.subr.mxu0 0.0
    %1531 = vmatpush1.msra.mxu0 0.0
    %1532 = vmatprep.subr.mxu0 0.0
    %1533 = vmatpush1.msra.mxu0 0.0
    %1534 = vmatprep.subr.mxu0 0.0
    %1535 = vmatpush1.msra.mxu0 0.0
    %1536 = vmatprep.subr.mxu0 0.0
    %1537 = vmatpush1.msra.mxu0 0.0
    %1538 = vmatprep.subr.mxu0 0.0
    %1539 = vmatpush1.msra.mxu0 0.0
    %1540 = vmatprep.subr.mxu0 0.0
    %1541 = vmatpush1.msra.mxu0 0.0
    %1542 = vmatprep.subr.mxu0 0.0
    %1543 = vmatpush1.msra.mxu0 0.0
    %1544 = vmatprep.subr.mxu0 0.0
    %1545 = vmatpush1.msra.mxu0 0.0
    %1546 = vmatprep.subr.mxu0 0.0
    %1547 = vmatpush1.msra.mxu0 0.0
    %1548 = vmatprep.subr.mxu0 0.0
    %1549 = vmatpush1.msra.mxu0 0.0
    %1550 = vmatprep.subr.mxu0 0.0
    %1551 = vmatpush1.msra.mxu0 0.0
    %1552 = vmatprep.subr.mxu0 0.0
    %1553 = vmatpush1.msra.mxu0 0.0
    %1554 = vmatprep.subr.mxu0 0.0
    %1555 = vmatpush1.msra.mxu0 0.0
    %1556 = vmatprep.subr.mxu0 0.0
    %1557 = vmatpush1.msra.mxu0 0.0
    %1558 = vmatprep.subr.mxu0 0.0
    %1559 = vmatpush1.msra.mxu0 0.0
    %1560 = vmatprep.subr.mxu0 0.0
    %1561 = vmatpush1.msra.mxu0 0.0
    %1562 = vmatprep.subr.mxu0 0.0
    %1563 = vmatpush1.msra.mxu0 0.0
    %1564 = vmatprep.subr.mxu0 0.0
    %1565 = vmatpush1.msra.mxu0 0.0
    %1566 = vmatprep.subr.mxu0 0.0
    %1567 = vmatpush1.msra.mxu0 0.0
    %1568 = vmatprep.subr.mxu0 0.0
    %1569 = vmatpush1.msra.mxu0 0.0
    %1570 = vmatprep.subr.mxu0 0.0
    %1571 = vmatpush1.msra.mxu0 0.0
    %1572 = vmatprep.subr.mxu0 0.0
    %1573 = vmatpush1.msra.mxu0 0.0
    %1574 = vmatprep.subr.mxu0 0.0
    %1575 = vmatpush1.msra.mxu0 0.0
    %1576 = vmatprep.subr.mxu0 0.0
    %1577 = vmatpush1.msra.mxu0 0.0
    %1578 = vmatprep.subr.mxu0 0.0
    %1579 = vmatpush1.msra.mxu0 0.0
    %1580 = vmatprep.subr.mxu0 0.0
    %1581 = vmatpush1.msra.mxu0 0.0
    %1582 = vmatprep.mubr.f32.mxu0 0.0
    %1583 = vmatmul.mubr.f32.gmra.mrb[0].mxu0 %v1513
    %v1584 = vpop.f32.mrb[0].mxu0
    %v1585 = vadd.f32 %v1511, %v1584
    %v1586 = vpop.f32.mrb[0].mxu0
    %1587 = vmatprep.mubr.f32.mxu0 0.0
    %1588 = vmatmul.mubr.f32.gmra.mrb[0].mxu0 %v1516
    %v1589 = vpop.f32.mrb[0].mxu0
    %v1590 = vadd.f32 %v1511, %v1589
    %v1591 = vpop.f32.mrb[0].mxu0
    %1592 = vdwg.mxu0
    %v1593 = vadd.f32 %v44, %v1585
    %v1594 = vadd.f32 %v45, %v1590
    %v1595 = vsel %vm75, %v1593, 0.0
    %1596 = vadd.xlane.f32.xlu0 %v1595
    %v1597 = vpop.xlane.xlu0 %1596
    %v1598 = vsel %vm75, %v1594, 0.0
    %1599 = vadd.xlane.f32.xlu0 %v1598
    %v1600 = vpop.xlane.xlu0 %1599
    %v1601 = vrcp.pop 32.0
    %v1602 = vmul.f32 %v1597, %v1601
    %v1603 = vmul.f32 %v1600, %v1601
    %v1604 = vsub.f32 %v1593, %v1602
    %v1605 = vsub.f32 %v1594, %v1603
    %v1606 = vmul.f32 %v1604, %v1604
    %v1607 = vmul.f32 %v1605, %v1605
    %v1608 = vsel %vm75, %v1606, 0.0
    %1609 = vadd.xlane.f32.xlu0 %v1608
    %v1610 = vpop.xlane.xlu0 %1609
    %v1611 = vsel %vm75, %v1607, 0.0
    %1612 = vadd.xlane.f32.xlu0 %v1611
    %v1613 = vpop.xlane.xlu0 %1612
    %v1614 = vmul.f32 %v1610, %v1601
    %v1615 = vmul.f32 %v1613, %v1601
    %v1616 = vadd.f32 %v1614, 1e-05
    %v1617 = vadd.f32 %v1615, 1e-05
    %v1618 = vrsqrt.pop %v1616
    %v1619 = vrsqrt.pop %v1617
    %v1620 = vmul.f32 %v1604, %v1618
    %v1621 = vmul.f32 %v1605, %v1619
    %v1622 = vlaneseq
    %v1623 = vshrl.u32 %v1622, 7
    %v1624 = vsub.s32 0, %v1623
    %v1625 = vrot.slane %v70, %v1624
    %v1626 = vmul.f32 %v1620, %v1625
    %v1627 = vmul.f32 %v1621, %v1625
    %v1628 = vlaneseq
    %v1629 = vshrl.u32 %v1628, 7
    %v1630 = vsub.s32 1, %v1629
    %v1631 = vrot.slane %v70, %v1630
    %v1632 = vadd.f32 %v1626, %v1631
    %v1633 = vadd.f32 %v1627, %v1631
    %v1634 = vlaneseq
    %v1635 = vshrl.u32 %v1634, 7
    %v1636 = vsub.s32 0, %v1635
    %v1637 = vrot.slane %v60, %v1636
    %v1639 = vsel %vm75, %v1632, 0
    %v1642 = vsel %vm75, %v1633, 0
    %1644 = vmatprep.subr.mxu0 0.0
    %1645 = vmatpush1.msra.mxu0 %v56
    %1646 = vmatprep.subr.mxu0 0.0
    %1647 = vmatpush1.msra.mxu0 %v57
    %1648 = vmatprep.subr.mxu0 0.0
    %1649 = vmatpush1.msra.mxu0 %v58
    %1650 = vmatprep.subr.mxu0 0.0
    %1651 = vmatpush1.msra.mxu0 %v59
    %1652 = vmatprep.subr.mxu0 0.0
    %1653 = vmatpush1.msra.mxu0 0.0
    %1654 = vmatprep.subr.mxu0 0.0
    %1655 = vmatpush1.msra.mxu0 0.0
    %1656 = vmatprep.subr.mxu0 0.0
    %1657 = vmatpush1.msra.mxu0 0.0
    %1658 = vmatprep.subr.mxu0 0.0
    %1659 = vmatpush1.msra.mxu0 0.0
    %1660 = vmatprep.subr.mxu0 0.0
    %1661 = vmatpush1.msra.mxu0 0.0
    %1662 = vmatprep.subr.mxu0 0.0
    %1663 = vmatpush1.msra.mxu0 0.0
    %1664 = vmatprep.subr.mxu0 0.0
    %1665 = vmatpush1.msra.mxu0 0.0
    %1666 = vmatprep.subr.mxu0 0.0
    %1667 = vmatpush1.msra.mxu0 0.0
    %1668 = vmatprep.subr.mxu0 0.0
    %1669 = vmatpush1.msra.mxu0 0.0
    %1670 = vmatprep.subr.mxu0 0.0
    %1671 = vmatpush1.msra.mxu0 0.0
    %1672 = vmatprep.subr.mxu0 0.0
    %1673 = vmatpush1.msra.mxu0 0.0
    %1674 = vmatprep.subr.mxu0 0.0
    %1675 = vmatpush1.msra.mxu0 0.0
    %1676 = vmatprep.subr.mxu0 0.0
    %1677 = vmatpush1.msra.mxu0 0.0
    %1678 = vmatprep.subr.mxu0 0.0
    %1679 = vmatpush1.msra.mxu0 0.0
    %1680 = vmatprep.subr.mxu0 0.0
    %1681 = vmatpush1.msra.mxu0 0.0
    %1682 = vmatprep.subr.mxu0 0.0
    %1683 = vmatpush1.msra.mxu0 0.0
    %1684 = vmatprep.subr.mxu0 0.0
    %1685 = vmatpush1.msra.mxu0 0.0
    %1686 = vmatprep.subr.mxu0 0.0
    %1687 = vmatpush1.msra.mxu0 0.0
    %1688 = vmatprep.subr.mxu0 0.0
    %1689 = vmatpush1.msra.mxu0 0.0
    %1690 = vmatprep.subr.mxu0 0.0
    %1691 = vmatpush1.msra.mxu0 0.0
    %1692 = vmatprep.subr.mxu0 0.0
    %1693 = vmatpush1.msra.mxu0 0.0
    %1694 = vmatprep.subr.mxu0 0.0
    %1695 = vmatpush1.msra.mxu0 0.0
    %1696 = vmatprep.subr.mxu0 0.0
    %1697 = vmatpush1.msra.mxu0 0.0
    %1698 = vmatprep.subr.mxu0 0.0
    %1699 = vmatpush1.msra.mxu0 0.0
    %1700 = vmatprep.subr.mxu0 0.0
    %1701 = vmatpush1.msra.mxu0 0.0
    %1702 = vmatprep.subr.mxu0 0.0
    %1703 = vmatpush1.msra.mxu0 0.0
    %1704 = vmatprep.subr.mxu0 0.0
    %1705 = vmatpush1.msra.mxu0 0.0
    %1706 = vmatprep.subr.mxu0 0.0
    %1707 = vmatpush1.msra.mxu0 0.0
    %1708 = vmatprep.mubr.f32.mxu0 0.0
    %1709 = vmatmul.mubr.f32.gmra.mrb[0].mxu0 %v1639
    %v1710 = vpop.f32.mrb[0].mxu0
    %v1711 = vadd.f32 %v1637, %v1710
    %v1712 = vpop.f32.mrb[0].mxu0
    %1713 = vmatprep.mubr.f32.mxu0 0.0
    %1714 = vmatmul.mubr.f32.gmra.mrb[0].mxu0 %v1642
    %v1715 = vpop.f32.mrb[0].mxu0
    %v1716 = vadd.f32 %v1637, %v1715
    %v1717 = vpop.f32.mrb[0].mxu0
    %1718 = vdwg.mxu0
    %v1719 = vmax.f32 %v1711, 0.0
    %v1720 = vmax.f32 %v1716, 0.0
    %v1721 = vlaneseq
    %v1722 = vshrl.u32 %v1721, 7
    %v1723 = vsub.s32 0, %v1722
    %v1724 = vrot.slane %v69, %v1723
    %vm1725 = vcmask 523264
    %v1727 = vsel %vm1725, %v1719, 0
    %v1730 = vsel %vm1725, %v1720, 0
    %1732 = vmatprep.subr.mxu0 0.0
    %1733 = vmatpush1.msra.mxu0 %v61
    %1734 = vmatprep.subr.mxu0 0.0
    %1735 = vmatpush1.msra.mxu0 %v62
    %1736 = vmatprep.subr.mxu0 0.0
    %1737 = vmatpush1.msra.mxu0 %v63
    %1738 = vmatprep.subr.mxu0 0.0
    %1739 = vmatpush1.msra.mxu0 %v64
    %1740 = vmatprep.subr.mxu0 0.0
    %1741 = vmatpush1.msra.mxu0 %v65
    %1742 = vmatprep.subr.mxu0 0.0
    %1743 = vmatpush1.msra.mxu0 %v66
    %1744 = vmatprep.subr.mxu0 0.0
    %1745 = vmatpush1.msra.mxu0 %v67
    %1746 = vmatprep.subr.mxu0 0.0
    %1747 = vmatpush1.msra.mxu0 %v68
    %1748 = vmatprep.subr.mxu0 0.0
    %1749 = vmatpush1.msra.mxu0 0.0
    %1750 = vmatprep.subr.mxu0 0.0
    %1751 = vmatpush1.msra.mxu0 0.0
    %1752 = vmatprep.subr.mxu0 0.0
    %1753 = vmatpush1.msra.mxu0 0.0
    %1754 = vmatprep.subr.mxu0 0.0
    %1755 = vmatpush1.msra.mxu0 0.0
    %1756 = vmatprep.subr.mxu0 0.0
    %1757 = vmatpush1.msra.mxu0 0.0
    %1758 = vmatprep.subr.mxu0 0.0
    %1759 = vmatpush1.msra.mxu0 0.0
    %1760 = vmatprep.subr.mxu0 0.0
    %1761 = vmatpush1.msra.mxu0 0.0
    %1762 = vmatprep.subr.mxu0 0.0
    %1763 = vmatpush1.msra.mxu0 0.0
    %1764 = vmatprep.subr.mxu0 0.0
    %1765 = vmatpush1.msra.mxu0 0.0
    %1766 = vmatprep.subr.mxu0 0.0
    %1767 = vmatpush1.msra.mxu0 0.0
    %1768 = vmatprep.subr.mxu0 0.0
    %1769 = vmatpush1.msra.mxu0 0.0
    %1770 = vmatprep.subr.mxu0 0.0
    %1771 = vmatpush1.msra.mxu0 0.0
    %1772 = vmatprep.subr.mxu0 0.0
    %1773 = vmatpush1.msra.mxu0 0.0
    %1774 = vmatprep.subr.mxu0 0.0
    %1775 = vmatpush1.msra.mxu0 0.0
    %1776 = vmatprep.subr.mxu0 0.0
    %1777 = vmatpush1.msra.mxu0 0.0
    %1778 = vmatprep.subr.mxu0 0.0
    %1779 = vmatpush1.msra.mxu0 0.0
    %1780 = vmatprep.subr.mxu0 0.0
    %1781 = vmatpush1.msra.mxu0 0.0
    %1782 = vmatprep.subr.mxu0 0.0
    %1783 = vmatpush1.msra.mxu0 0.0
    %1784 = vmatprep.subr.mxu0 0.0
    %1785 = vmatpush1.msra.mxu0 0.0
    %1786 = vmatprep.subr.mxu0 0.0
    %1787 = vmatpush1.msra.mxu0 0.0
    %1788 = vmatprep.subr.mxu0 0.0
    %1789 = vmatpush1.msra.mxu0 0.0
    %1790 = vmatprep.subr.mxu0 0.0
    %1791 = vmatpush1.msra.mxu0 0.0
    %1792 = vmatprep.subr.mxu0 0.0
    %1793 = vmatpush1.msra.mxu0 0.0
    %1794 = vmatprep.subr.mxu0 0.0
    %1795 = vmatpush1.msra.mxu0 0.0
    %1796 = vmatprep.mubr.f32.mxu0 0.0
    %1797 = vmatmul.mubr.f32.gmra.mrb[0].mxu0 %v1727
    %v1798 = vpop.f32.mrb[0].mxu0
    %v1799 = vadd.f32 %v1724, %v1798
    %v1800 = vpop.f32.mrb[0].mxu0
    %1801 = vmatprep.mubr.f32.mxu0 0.0
    %1802 = vmatmul.mubr.f32.gmra.mrb[0].mxu0 %v1730
    %v1803 = vpop.f32.mrb[0].mxu0
    %v1804 = vadd.f32 %v1724, %v1803
    %v1805 = vpop.f32.mrb[0].mxu0
    %1806 = vdwg.mxu0
    %v1807 = vadd.f32 %v1632, %v1799
    %v1808 = vadd.f32 %v1633, %v1804
    %v1809 = vsel %vm75, %v1807, 0.0
    %1810 = vadd.xlane.f32.xlu0 %v1809
    %v1811 = vpop.xlane.xlu0 %1810
    %v1812 = vsel %vm75, %v1808, 0.0
    %1813 = vadd.xlane.f32.xlu0 %v1812
    %v1814 = vpop.xlane.xlu0 %1813
    %v1815 = vmul.f32 %v1811, %v1601
    %v1816 = vmul.f32 %v1814, %v1601
    %v1817 = vsub.f32 %v1807, %v1815
    %v1818 = vsub.f32 %v1808, %v1816
    %v1819 = vmul.f32 %v1817, %v1817
    %v1820 = vmul.f32 %v1818, %v1818
    %v1821 = vsel %vm75, %v1819, 0.0
    %1822 = vadd.xlane.f32.xlu0 %v1821
    %v1823 = vpop.xlane.xlu0 %1822
    %v1824 = vsel %vm75, %v1820, 0.0
    %1825 = vadd.xlane.f32.xlu0 %v1824
    %v1826 = vpop.xlane.xlu0 %1825
    %v1827 = vmul.f32 %v1823, %v1601
    %v1828 = vmul.f32 %v1826, %v1601
    %v1829 = vadd.f32 %v1827, 1e-05
    %v1830 = vadd.f32 %v1828, 1e-05
    %v1831 = vrsqrt.pop %v1829
    %v1832 = vrsqrt.pop %v1830
    %v1833 = vmul.f32 %v1817, %v1831
    %v1834 = vmul.f32 %v1818, %v1832
    %v1835 = vlaneseq
    %v1836 = vshrl.u32 %v1835, 7
    %v1837 = vsub.s32 2, %v1836
    %v1838 = vrot.slane %v70, %v1837
    %v1839 = vmul.f32 %v1833, %v1838
    %v1840 = vmul.f32 %v1834, %v1838
    %v1841 = vlaneseq
    %v1842 = vshrl.u32 %v1841, 7
    %v1843 = vsub.s32 3, %v1842
    %v1844 = vrot.slane %v70, %v1843
    %v1845 = vadd.f32 %v1839, %v1844
    %v1846 = vadd.f32 %v1840, %v1844
    %v1847 = vld [vmem:[#allocation5 + $0x140] sm:$0xff]
    %v1848 = vld [vmem:[#allocation5 + $0x148] sm:$0xff]
    %v1849 = vld [vmem:[#allocation5 + $0x150] sm:$0xff]
    %v1850 = vld [vmem:[#allocation5 + $0x158] sm:$0xff]
    %v1851 = vld [vmem:[#allocation5 + $0x160] sm:$0x1]
    %v1852 = vld [vmem:[#allocation5 + $0x168] sm:$0xff]
    %v1853 = vld [vmem:[#allocation5 + $0x170] sm:$0xff]
    %v1854 = vld [vmem:[#allocation5 + $0x178] sm:$0xff]
    %v1855 = vld [vmem:[#allocation5 + $0x180] sm:$0xff]
    %v1856 = vld [vmem:[#allocation5 + $0x188] sm:$0x1]
    %v1857 = vld [vmem:[#allocation5 + $0x190] sm:$0xff]
    %v1858 = vld [vmem:[#allocation5 + $0x198] sm:$0xff]
    %v1859 = vld [vmem:[#allocation5 + $0x1a0] sm:$0xff]
    %v1860 = vld [vmem:[#allocation5 + $0x1a8] sm:$0xff]
    %v1861 = vld [vmem:[#allocation5 + $0x1b0] sm:$0x1]
    %v1862 = vld [vmem:[#allocation5 + $0x1b8] sm:$0xff]
    %v1863 = vld [vmem:[#allocation5 + $0x1c0] sm:$0xff]
    %v1864 = vld [vmem:[#allocation5 + $0x1c8] sm:$0xff]
    %v1865 = vld [vmem:[#allocation5 + $0x1d0] sm:$0xff]
    %v1866 = vld [vmem:[#allocation5 + $0x1d8] sm:$0xff]
    %v1867 = vld [vmem:[#allocation5 + $0x1e0] sm:$0xff]
    %v1868 = vld [vmem:[#allocation5 + $0x1e8] sm:$0xff]
    %v1869 = vld [vmem:[#allocation5 + $0x1f0] sm:$0xff]
    %v1870 = vld [vmem:[#allocation5 + $0x1f8] sm:$0x1]
    %v1871 = vld [vmem:[#allocation5 + $0x200] sm:$0xf]
    %v1872 = vlaneseq
    %v1873 = vshrl.u32 %v1872, 7
    %v1874 = vsub.s32 0, %v1873
    %v1875 = vrot.slane %v1851, %v1874
    %v1877 = vsel %vm75, %v1845, 0
    %v1880 = vsel %vm75, %v1846, 0
    %1882 = vmatprep.subr.mxu0 0.0
    %1883 = vmatpush1.msra.mxu0 %v1847
    %1884 = vmatprep.subr.mxu0 0.0
    %1885 = vmatpush1.msra.mxu0 %v1848
    %1886 = vmatprep.subr.mxu0 0.0
    %1887 = vmatpush1.msra.mxu0 %v1849
    %1888 = vmatprep.subr.mxu0 0.0
    %1889 = vmatpush1.msra.mxu0 %v1850
    %1890 = vmatprep.subr.mxu0 0.0
    %1891 = vmatpush1.msra.mxu0 0.0
    %1892 = vmatprep.subr.mxu0 0.0
    %1893 = vmatpush1.msra.mxu0 0.0
    %1894 = vmatprep.subr.mxu0 0.0
    %1895 = vmatpush1.msra.mxu0 0.0
    %1896 = vmatprep.subr.mxu0 0.0
    %1897 = vmatpush1.msra.mxu0 0.0
    %1898 = vmatprep.subr.mxu0 0.0
    %1899 = vmatpush1.msra.mxu0 0.0
    %1900 = vmatprep.subr.mxu0 0.0
    %1901 = vmatpush1.msra.mxu0 0.0
    %1902 = vmatprep.subr.mxu0 0.0
    %1903 = vmatpush1.msra.mxu0 0.0
    %1904 = vmatprep.subr.mxu0 0.0
    %1905 = vmatpush1.msra.mxu0 0.0
    %1906 = vmatprep.subr.mxu0 0.0
    %1907 = vmatpush1.msra.mxu0 0.0
    %1908 = vmatprep.subr.mxu0 0.0
    %1909 = vmatpush1.msra.mxu0 0.0
    %1910 = vmatprep.subr.mxu0 0.0
    %1911 = vmatpush1.msra.mxu0 0.0
    %1912 = vmatprep.subr.mxu0 0.0
    %1913 = vmatpush1.msra.mxu0 0.0
    %1914 = vmatprep.subr.mxu0 0.0
    %1915 = vmatpush1.msra.mxu0 0.0
    %1916 = vmatprep.subr.mxu0 0.0
    %1917 = vmatpush1.msra.mxu0 0.0
    %1918 = vmatprep.subr.mxu0 0.0
    %1919 = vmatpush1.msra.mxu0 0.0
    %1920 = vmatprep.subr.mxu0 0.0
    %1921 = vmatpush1.msra.mxu0 0.0
    %1922 = vmatprep.subr.mxu0 0.0
    %1923 = vmatpush1.msra.mxu0 0.0
    %1924 = vmatprep.subr.mxu0 0.0
    %1925 = vmatpush1.msra.mxu0 0.0
    %1926 = vmatprep.subr.mxu0 0.0
    %1927 = vmatpush1.msra.mxu0 0.0
    %1928 = vmatprep.subr.mxu0 0.0
    %1929 = vmatpush1.msra.mxu0 0.0
    %1930 = vmatprep.subr.mxu0 0.0
    %1931 = vmatpush1.msra.mxu0 0.0
    %1932 = vmatprep.subr.mxu0 0.0
    %1933 = vmatpush1.msra.mxu0 0.0
    %1934 = vmatprep.subr.mxu0 0.0
    %1935 = vmatpush1.msra.mxu0 0.0
    %1936 = vmatprep.subr.mxu0 0.0
    %1937 = vmatpush1.msra.mxu0 0.0
    %1938 = vmatprep.subr.mxu0 0.0
    %1939 = vmatpush1.msra.mxu0 0.0
    %1940 = vmatprep.subr.mxu0 0.0
    %1941 = vmatpush1.msra.mxu0 0.0
    %1942 = vmatprep.subr.mxu0 0.0
    %1943 = vmatpush1.msra.mxu0 0.0
    %1944 = vmatprep.subr.mxu0 0.0
    %1945 = vmatpush1.msra.mxu0 0.0
    %1946 = vmatprep.mubr.f32.mxu0 0.0
    %1947 = vmatmul.mubr.f32.gmra.mrb[0].mxu0 %v1877
    %v1948 = vpop.f32.mrb[0].mxu0
    %v1949 = vadd.f32 %v1875, %v1948
    %v1950 = vpop.f32.mrb[0].mxu0
    %1951 = vmatprep.mubr.f32.mxu0 0.0
    %1952 = vmatmul.mubr.f32.gmra.mrb[0].mxu0 %v1880
    %v1953 = vpop.f32.mrb[0].mxu0
    %v1954 = vadd.f32 %v1875, %v1953
    %v1955 = vpop.f32.mrb[0].mxu0
    %1956 = vdwg.mxu0
    %1958 = vrot.lane.b32.xlu0 %v1949, 120
    %v1959 = vpop.permute.xlu0 %1958
    %1960 = vrot.lane.b32.xlu0 %v1949, 112
    %v1961 = vpop.permute.xlu0 %1960
    %1962 = vrot.lane.b32.xlu0 %v1949, 104
    %v1963 = vpop.permute.xlu0 %1962
    %1965 = vrot.lane.b32.xlu0 %v1954, 120
    %v1966 = vpop.permute.xlu0 %1965
    %1967 = vrot.lane.b32.xlu0 %v1954, 112
    %v1968 = vpop.permute.xlu0 %1967
    %1969 = vrot.lane.b32.xlu0 %v1954, 104
    %v1970 = vpop.permute.xlu0 %1969
    %1971 = vrot.lane.b32.xlu0 %v1949, 96
    %v1972 = vpop.permute.xlu0 %1971
    %v1973 = vsel %vm173, %v1949, 0
    %v1975 = vsel %vm173, %v1972, 0
    %1977 = vmatprep.subr.mxu0 0.0
    %1978 = vmatpush1.xpose.msra.mxu0 %v1975
    %1979 = vmatprep.subr.mxu0 0.0
    %1980 = vmatpush1.xpose.msra.mxu0 0.0
    %1981 = vmatprep.subr.mxu0 0.0
    %1982 = vmatpush1.xpose.msra.mxu0 0.0
    %1983 = vmatprep.subr.mxu0 0.0
    %1984 = vmatpush1.xpose.msra.mxu0 0.0
    %1985 = vmatprep.subr.mxu0 0.0
    %1986 = vmatpush1.xpose.msra.mxu0 0.0
    %1987 = vmatprep.subr.mxu0 0.0
    %1988 = vmatpush1.xpose.msra.mxu0 0.0
    %1989 = vmatprep.subr.mxu0 0.0
    %1990 = vmatpush1.xpose.msra.mxu0 0.0
    %1991 = vmatprep.subr.mxu0 0.0
    %1992 = vmatpush1.xpose.msra.mxu0 0.0
    %1993 = vmatprep.subr.mxu0 0.0
    %1994 = vmatpush1.xpose.msra.mxu0 0.0
    %1995 = vmatprep.subr.mxu0 0.0
    %1996 = vmatpush1.xpose.msra.mxu0 0.0
    %1997 = vmatprep.subr.mxu0 0.0
    %1998 = vmatpush1.xpose.msra.mxu0 0.0
    %1999 = vmatprep.subr.mxu0 0.0
    %2000 = vmatpush1.xpose.msra.mxu0 0.0
    %2001 = vmatprep.subr.mxu0 0.0
    %2002 = vmatpush1.xpose.msra.mxu0 0.0
    %2003 = vmatprep.subr.mxu0 0.0
    %2004 = vmatpush1.xpose.msra.mxu0 0.0
    %2005 = vmatprep.subr.mxu0 0.0
    %2006 = vmatpush1.xpose.msra.mxu0 0.0
    %2007 = vmatprep.subr.mxu0 0.0
    %2008 = vmatpush1.xpose.msra.mxu0 0.0
    %2009 = vmatprep.subr.mxu0 0.0
    %2010 = vmatpush1.xpose.msra.mxu0 0.0
    %2011 = vmatprep.subr.mxu0 0.0
    %2012 = vmatpush1.xpose.msra.mxu0 0.0
    %2013 = vmatprep.subr.mxu0 0.0
    %2014 = vmatpush1.xpose.msra.mxu0 0.0
    %2015 = vmatprep.subr.mxu0 0.0
    %2016 = vmatpush1.xpose.msra.mxu0 0.0
    %2017 = vmatprep.subr.mxu0 0.0
    %2018 = vmatpush1.xpose.msra.mxu0 0.0
    %2019 = vmatprep.subr.mxu0 0.0
    %2020 = vmatpush1.xpose.msra.mxu0 0.0
    %2021 = vmatprep.subr.mxu0 0.0
    %2022 = vmatpush1.xpose.msra.mxu0 0.0
    %2023 = vmatprep.subr.mxu0 0.0
    %2024 = vmatpush1.xpose.msra.mxu0 0.0
    %2025 = vmatprep.subr.mxu0 0.0
    %2026 = vmatpush1.xpose.msra.mxu0 0.0
    %2027 = vmatprep.subr.mxu0 0.0
    %2028 = vmatpush1.xpose.msra.mxu0 0.0
    %2029 = vmatprep.subr.mxu0 0.0
    %2030 = vmatpush1.xpose.msra.mxu0 0.0
    %2031 = vmatprep.subr.mxu0 0.0
    %2032 = vmatpush1.xpose.msra.mxu0 0.0
    %2033 = vmatprep.subr.mxu0 0.0
    %2034 = vmatpush1.xpose.msra.mxu0 0.0
    %2035 = vmatprep.subr.mxu0 0.0
    %2036 = vmatpush1.xpose.msra.mxu0 0.0
    %2037 = vmatprep.subr.mxu0 0.0
    %2038 = vmatpush1.xpose.msra.mxu0 0.0
    %2039 = vmatprep.subr.mxu0 0.0
    %2040 = vmatpush1.xpose.msra.mxu0 0.0
    %2041 = vmatprep.mubr.f32.mxu0 0.0
    %2042 = vmatmul.mubr.f32.gmra.mrb[0].mxu0 %v1973
    %v2043 = vpop.f32.mrb[0].mxu0
    %v2044 = vadd.f32 0.0, %v2043
    %v2045 = vpop.f32.mrb[0].mxu0
    %2046 = vdwg.mxu0
    %2047 = vrot.lane.b32.xlu0 %v1959, 96
    %v2048 = vpop.permute.xlu0 %2047
    %v2049 = vsel %vm173, %v1959, 0
    %v2051 = vsel %vm173, %v2048, 0
    %2053 = vmatprep.subr.mxu0 0.0
    %2054 = vmatpush1.xpose.msra.mxu0 %v2051
    %2055 = vmatprep.subr.mxu0 0.0
    %2056 = vmatpush1.xpose.msra.mxu0 0.0
    %2057 = vmatprep.subr.mxu0 0.0
    %2058 = vmatpush1.xpose.msra.mxu0 0.0
    %2059 = vmatprep.subr.mxu0 0.0
    %2060 = vmatpush1.xpose.msra.mxu0 0.0
    %2061 = vmatprep.subr.mxu0 0.0
    %2062 = vmatpush1.xpose.msra.mxu0 0.0
    %2063 = vmatprep.subr.mxu0 0.0
    %2064 = vmatpush1.xpose.msra.mxu0 0.0
    %2065 = vmatprep.subr.mxu0 0.0
    %2066 = vmatpush1.xpose.msra.mxu0 0.0
    %2067 = vmatprep.subr.mxu0 0.0
    %2068 = vmatpush1.xpose.msra.mxu0 0.0
    %2069 = vmatprep.subr.mxu0 0.0
    %2070 = vmatpush1.xpose.msra.mxu0 0.0
    %2071 = vmatprep.subr.mxu0 0.0
    %2072 = vmatpush1.xpose.msra.mxu0 0.0
    %2073 = vmatprep.subr.mxu0 0.0
    %2074 = vmatpush1.xpose.msra.mxu0 0.0
    %2075 = vmatprep.subr.mxu0 0.0
    %2076 = vmatpush1.xpose.msra.mxu0 0.0
    %2077 = vmatprep.subr.mxu0 0.0
    %2078 = vmatpush1.xpose.msra.mxu0 0.0
    %2079 = vmatprep.subr.mxu0 0.0
    %2080 = vmatpush1.xpose.msra.mxu0 0.0
    %2081 = vmatprep.subr.mxu0 0.0
    %2082 = vmatpush1.xpose.msra.mxu0 0.0
    %2083 = vmatprep.subr.mxu0 0.0
    %2084 = vmatpush1.xpose.msra.mxu0 0.0
    %2085 = vmatprep.subr.mxu0 0.0
    %2086 = vmatpush1.xpose.msra.mxu0 0.0
    %2087 = vmatprep.subr.mxu0 0.0
    %2088 = vmatpush1.xpose.msra.mxu0 0.0
    %2089 = vmatprep.subr.mxu0 0.0
    %2090 = vmatpush1.xpose.msra.mxu0 0.0
    %2091 = vmatprep.subr.mxu0 0.0
    %2092 = vmatpush1.xpose.msra.mxu0 0.0
    %2093 = vmatprep.subr.mxu0 0.0
    %2094 = vmatpush1.xpose.msra.mxu0 0.0
    %2095 = vmatprep.subr.mxu0 0.0
    %2096 = vmatpush1.xpose.msra.mxu0 0.0
    %2097 = vmatprep.subr.mxu0 0.0
    %2098 = vmatpush1.xpose.msra.mxu0 0.0
    %2099 = vmatprep.subr.mxu0 0.0
    %2100 = vmatpush1.xpose.msra.mxu0 0.0
    %2101 = vmatprep.subr.mxu0 0.0
    %2102 = vmatpush1.xpose.msra.mxu0 0.0
    %2103 = vmatprep.subr.mxu0 0.0
    %2104 = vmatpush1.xpose.msra.mxu0 0.0
    %2105 = vmatprep.subr.mxu0 0.0
    %2106 = vmatpush1.xpose.msra.mxu0 0.0
    %2107 = vmatprep.subr.mxu0 0.0
    %2108 = vmatpush1.xpose.msra.mxu0 0.0
    %2109 = vmatprep.subr.mxu0 0.0
    %2110 = vmatpush1.xpose.msra.mxu0 0.0
    %2111 = vmatprep.subr.mxu0 0.0
    %2112 = vmatpush1.xpose.msra.mxu0 0.0
    %2113 = vmatprep.subr.mxu0 0.0
    %2114 = vmatpush1.xpose.msra.mxu0 0.0
    %2115 = vmatprep.subr.mxu0 0.0
    %2116 = vmatpush1.xpose.msra.mxu0 0.0
    %2117 = vmatprep.mubr.f32.mxu0 0.0
    %2118 = vmatmul.mubr.f32.gmra.mrb[0].mxu0 %v2049
    %v2119 = vpop.f32.mrb[0].mxu0
    %v2120 = vadd.f32 0.0, %v2119
    %v2121 = vpop.f32.mrb[0].mxu0
    %2122 = vdwg.mxu0
    %2123 = vrot.lane.b32.xlu0 %v1961, 96
    %v2124 = vpop.permute.xlu0 %2123
    %v2125 = vsel %vm173, %v1961, 0
    %v2127 = vsel %vm173, %v2124, 0
    %2129 = vmatprep.subr.mxu0 0.0
    %2130 = vmatpush1.xpose.msra.mxu0 %v2127
    %2131 = vmatprep.subr.mxu0 0.0
    %2132 = vmatpush1.xpose.msra.mxu0 0.0
    %2133 = vmatprep.subr.mxu0 0.0
    %2134 = vmatpush1.xpose.msra.mxu0 0.0
    %2135 = vmatprep.subr.mxu0 0.0
    %2136 = vmatpush1.xpose.msra.mxu0 0.0
    %2137 = vmatprep.subr.mxu0 0.0
    %2138 = vmatpush1.xpose.msra.mxu0 0.0
    %2139 = vmatprep.subr.mxu0 0.0
    %2140 = vmatpush1.xpose.msra.mxu0 0.0
    %2141 = vmatprep.subr.mxu0 0.0
    %2142 = vmatpush1.xpose.msra.mxu0 0.0
    %2143 = vmatprep.subr.mxu0 0.0
    %2144 = vmatpush1.xpose.msra.mxu0 0.0
    %2145 = vmatprep.subr.mxu0 0.0
    %2146 = vmatpush1.xpose.msra.mxu0 0.0
    %2147 = vmatprep.subr.mxu0 0.0
    %2148 = vmatpush1.xpose.msra.mxu0 0.0
    %2149 = vmatprep.subr.mxu0 0.0
    %2150 = vmatpush1.xpose.msra.mxu0 0.0
    %2151 = vmatprep.subr.mxu0 0.0
    %2152 = vmatpush1.xpose.msra.mxu0 0.0
    %2153 = vmatprep.subr.mxu0 0.0
    %2154 = vmatpush1.xpose.msra.mxu0 0.0
    %2155 = vmatprep.subr.mxu0 0.0
    %2156 = vmatpush1.xpose.msra.mxu0 0.0
    %2157 = vmatprep.subr.mxu0 0.0
    %2158 = vmatpush1.xpose.msra.mxu0 0.0
    %2159 = vmatprep.subr.mxu0 0.0
    %2160 = vmatpush1.xpose.msra.mxu0 0.0
    %2161 = vmatprep.subr.mxu0 0.0
    %2162 = vmatpush1.xpose.msra.mxu0 0.0
    %2163 = vmatprep.subr.mxu0 0.0
    %2164 = vmatpush1.xpose.msra.mxu0 0.0
    %2165 = vmatprep.subr.mxu0 0.0
    %2166 = vmatpush1.xpose.msra.mxu0 0.0
    %2167 = vmatprep.subr.mxu0 0.0
    %2168 = vmatpush1.xpose.msra.mxu0 0.0
    %2169 = vmatprep.subr.mxu0 0.0
    %2170 = vmatpush1.xpose.msra.mxu0 0.0
    %2171 = vmatprep.subr.mxu0 0.0
    %2172 = vmatpush1.xpose.msra.mxu0 0.0
    %2173 = vmatprep.subr.mxu0 0.0
    %2174 = vmatpush1.xpose.msra.mxu0 0.0
    %2175 = vmatprep.subr.mxu0 0.0
    %2176 = vmatpush1.xpose.msra.mxu0 0.0
    %2177 = vmatprep.subr.mxu0 0.0
    %2178 = vmatpush1.xpose.msra.mxu0 0.0
    %2179 = vmatprep.subr.mxu0 0.0
    %2180 = vmatpush1.xpose.msra.mxu0 0.0
    %2181 = vmatprep.subr.mxu0 0.0
    %2182 = vmatpush1.xpose.msra.mxu0 0.0
    %2183 = vmatprep.subr.mxu0 0.0
    %2184 = vmatpush1.xpose.msra.mxu0 0.0
    %2185 = vmatprep.subr.mxu0 0.0
    %2186 = vmatpush1.xpose.msra.mxu0 0.0
    %2187 = vmatprep.subr.mxu0 0.0
    %2188 = vmatpush1.xpose.msra.mxu0 0.0
    %2189 = vmatprep.subr.mxu0 0.0
    %2190 = vmatpush1.xpose.msra.mxu0 0.0
    %2191 = vmatprep.subr.mxu0 0.0
    %2192 = vmatpush1.xpose.msra.mxu0 0.0
    %2193 = vmatprep.mubr.f32.mxu0 0.0
    %2194 = vmatmul.mubr.f32.gmra.mrb[0].mxu0 %v2125
    %v2195 = vpop.f32.mrb[0].mxu0
    %v2196 = vadd.f32 0.0, %v2195
    %v2197 = vpop.f32.mrb[0].mxu0
    %2198 = vdwg.mxu0
    %2199 = vrot.lane.b32.xlu0 %v1963, 96
    %v2200 = vpop.permute.xlu0 %2199
    %v2201 = vsel %vm173, %v1963, 0
    %v2203 = vsel %vm173, %v2200, 0
    %2205 = vmatprep.subr.mxu0 0.0
    %2206 = vmatpush1.xpose.msra.mxu0 %v2203
    %2207 = vmatprep.subr.mxu0 0.0
    %2208 = vmatpush1.xpose.msra.mxu0 0.0
    %2209 = vmatprep.subr.mxu0 0.0
    %2210 = vmatpush1.xpose.msra.mxu0 0.0
    %2211 = vmatprep.subr.mxu0 0.0
    %2212 = vmatpush1.xpose.msra.mxu0 0.0
    %2213 = vmatprep.subr.mxu0 0.0
    %2214 = vmatpush1.xpose.msra.mxu0 0.0
    %2215 = vmatprep.subr.mxu0 0.0
    %2216 = vmatpush1.xpose.msra.mxu0 0.0
    %2217 = vmatprep.subr.mxu0 0.0
    %2218 = vmatpush1.xpose.msra.mxu0 0.0
    %2219 = vmatprep.subr.mxu0 0.0
    %2220 = vmatpush1.xpose.msra.mxu0 0.0
    %2221 = vmatprep.subr.mxu0 0.0
    %2222 = vmatpush1.xpose.msra.mxu0 0.0
    %2223 = vmatprep.subr.mxu0 0.0
    %2224 = vmatpush1.xpose.msra.mxu0 0.0
    %2225 = vmatprep.subr.mxu0 0.0
    %2226 = vmatpush1.xpose.msra.mxu0 0.0
    %2227 = vmatprep.subr.mxu0 0.0
    %2228 = vmatpush1.xpose.msra.mxu0 0.0
    %2229 = vmatprep.subr.mxu0 0.0
    %2230 = vmatpush1.xpose.msra.mxu0 0.0
    %2231 = vmatprep.subr.mxu0 0.0
    %2232 = vmatpush1.xpose.msra.mxu0 0.0
    %2233 = vmatprep.subr.mxu0 0.0
    %2234 = vmatpush1.xpose.msra.mxu0 0.0
    %2235 = vmatprep.subr.mxu0 0.0
    %2236 = vmatpush1.xpose.msra.mxu0 0.0
    %2237 = vmatprep.subr.mxu0 0.0
    %2238 = vmatpush1.xpose.msra.mxu0 0.0
    %2239 = vmatprep.subr.mxu0 0.0
    %2240 = vmatpush1.xpose.msra.mxu0 0.0
    %2241 = vmatprep.subr.mxu0 0.0
    %2242 = vmatpush1.xpose.msra.mxu0 0.0
    %2243 = vmatprep.subr.mxu0 0.0
    %2244 = vmatpush1.xpose.msra.mxu0 0.0
    %2245 = vmatprep.subr.mxu0 0.0
    %2246 = vmatpush1.xpose.msra.mxu0 0.0
    %2247 = vmatprep.subr.mxu0 0.0
    %2248 = vmatpush1.xpose.msra.mxu0 0.0
    %2249 = vmatprep.subr.mxu0 0.0
    %2250 = vmatpush1.xpose.msra.mxu0 0.0
    %2251 = vmatprep.subr.mxu0 0.0
    %2252 = vmatpush1.xpose.msra.mxu0 0.0
    %2253 = vmatprep.subr.mxu0 0.0
    %2254 = vmatpush1.xpose.msra.mxu0 0.0
    %2255 = vmatprep.subr.mxu0 0.0
    %2256 = vmatpush1.xpose.msra.mxu0 0.0
    %2257 = vmatprep.subr.mxu0 0.0
    %2258 = vmatpush1.xpose.msra.mxu0 0.0
    %2259 = vmatprep.subr.mxu0 0.0
    %2260 = vmatpush1.xpose.msra.mxu0 0.0
    %2261 = vmatprep.subr.mxu0 0.0
    %2262 = vmatpush1.xpose.msra.mxu0 0.0
    %2263 = vmatprep.subr.mxu0 0.0
    %2264 = vmatpush1.xpose.msra.mxu0 0.0
    %2265 = vmatprep.subr.mxu0 0.0
    %2266 = vmatpush1.xpose.msra.mxu0 0.0
    %2267 = vmatprep.subr.mxu0 0.0
    %2268 = vmatpush1.xpose.msra.mxu0 0.0
    %2269 = vmatprep.mubr.f32.mxu0 0.0
    %2270 = vmatmul.mubr.f32.gmra.mrb[0].mxu0 %v2201
    %v2271 = vpop.f32.mrb[0].mxu0
    %v2272 = vadd.f32 0.0, %v2271
    %v2273 = vpop.f32.mrb[0].mxu0
    %2274 = vdwg.mxu0
    %2275 = vrot.lane.b32.xlu0 %v1954, 96
    %v2276 = vpop.permute.xlu0 %2275
    %v2277 = vsel %vm173, %v1954, 0
    %v2279 = vsel %vm173, %v2276, 0
    %2281 = vmatprep.subr.mxu0 0.0
    %2282 = vmatpush1.xpose.msra.mxu0 %v2279
    %2283 = vmatprep.subr.mxu0 0.0
    %2284 = vmatpush1.xpose.msra.mxu0 0.0
    %2285 = vmatprep.subr.mxu0 0.0
    %2286 = vmatpush1.xpose.msra.mxu0 0.0
    %2287 = vmatprep.subr.mxu0 0.0
    %2288 = vmatpush1.xpose.msra.mxu0 0.0
    %2289 = vmatprep.subr.mxu0 0.0
    %2290 = vmatpush1.xpose.msra.mxu0 0.0
    %2291 = vmatprep.subr.mxu0 0.0
    %2292 = vmatpush1.xpose.msra.mxu0 0.0
    %2293 = vmatprep.subr.mxu0 0.0
    %2294 = vmatpush1.xpose.msra.mxu0 0.0
    %2295 = vmatprep.subr.mxu0 0.0
    %2296 = vmatpush1.xpose.msra.mxu0 0.0
    %2297 = vmatprep.subr.mxu0 0.0
    %2298 = vmatpush1.xpose.msra.mxu0 0.0
    %2299 = vmatprep.subr.mxu0 0.0
    %2300 = vmatpush1.xpose.msra.mxu0 0.0
    %2301 = vmatprep.subr.mxu0 0.0
    %2302 = vmatpush1.xpose.msra.mxu0 0.0
    %2303 = vmatprep.subr.mxu0 0.0
    %2304 = vmatpush1.xpose.msra.mxu0 0.0
    %2305 = vmatprep.subr.mxu0 0.0
    %2306 = vmatpush1.xpose.msra.mxu0 0.0
    %2307 = vmatprep.subr.mxu0 0.0
    %2308 = vmatpush1.xpose.msra.mxu0 0.0
    %2309 = vmatprep.subr.mxu0 0.0
    %2310 = vmatpush1.xpose.msra.mxu0 0.0
    %2311 = vmatprep.subr.mxu0 0.0
    %2312 = vmatpush1.xpose.msra.mxu0 0.0
    %2313 = vmatprep.subr.mxu0 0.0
    %2314 = vmatpush1.xpose.msra.mxu0 0.0
    %2315 = vmatprep.subr.mxu0 0.0
    %2316 = vmatpush1.xpose.msra.mxu0 0.0
    %2317 = vmatprep.subr.mxu0 0.0
    %2318 = vmatpush1.xpose.msra.mxu0 0.0
    %2319 = vmatprep.subr.mxu0 0.0
    %2320 = vmatpush1.xpose.msra.mxu0 0.0
    %2321 = vmatprep.subr.mxu0 0.0
    %2322 = vmatpush1.xpose.msra.mxu0 0.0
    %2323 = vmatprep.subr.mxu0 0.0
    %2324 = vmatpush1.xpose.msra.mxu0 0.0
    %2325 = vmatprep.subr.mxu0 0.0
    %2326 = vmatpush1.xpose.msra.mxu0 0.0
    %2327 = vmatprep.subr.mxu0 0.0
    %2328 = vmatpush1.xpose.msra.mxu0 0.0
    %2329 = vmatprep.subr.mxu0 0.0
    %2330 = vmatpush1.xpose.msra.mxu0 0.0
    %2331 = vmatprep.subr.mxu0 0.0
    %2332 = vmatpush1.xpose.msra.mxu0 0.0
    %2333 = vmatprep.subr.mxu0 0.0
    %2334 = vmatpush1.xpose.msra.mxu0 0.0
    %2335 = vmatprep.subr.mxu0 0.0
    %2336 = vmatpush1.xpose.msra.mxu0 0.0
    %2337 = vmatprep.subr.mxu0 0.0
    %2338 = vmatpush1.xpose.msra.mxu0 0.0
    %2339 = vmatprep.subr.mxu0 0.0
    %2340 = vmatpush1.xpose.msra.mxu0 0.0
    %2341 = vmatprep.subr.mxu0 0.0
    %2342 = vmatpush1.xpose.msra.mxu0 0.0
    %2343 = vmatprep.subr.mxu0 0.0
    %2344 = vmatpush1.xpose.msra.mxu0 0.0
    %2345 = vmatprep.mubr.f32.mxu0 0.0
    %2346 = vmatmul.mubr.f32.gmra.mrb[0].mxu0 %v2277
    %v2347 = vpop.f32.mrb[0].mxu0
    %v2348 = vadd.f32 0.0, %v2347
    %v2349 = vpop.f32.mrb[0].mxu0
    %2350 = vdwg.mxu0
    %2351 = vrot.lane.b32.xlu0 %v1966, 96
    %v2352 = vpop.permute.xlu0 %2351
    %v2353 = vsel %vm173, %v1966, 0
    %v2355 = vsel %vm173, %v2352, 0
    %2357 = vmatprep.subr.mxu0 0.0
    %2358 = vmatpush1.xpose.msra.mxu0 %v2355
    %2359 = vmatprep.subr.mxu0 0.0
    %2360 = vmatpush1.xpose.msra.mxu0 0.0
    %2361 = vmatprep.subr.mxu0 0.0
    %2362 = vmatpush1.xpose.msra.mxu0 0.0
    %2363 = vmatprep.subr.mxu0 0.0
    %2364 = vmatpush1.xpose.msra.mxu0 0.0
    %2365 = vmatprep.subr.mxu0 0.0
    %2366 = vmatpush1.xpose.msra.mxu0 0.0
    %2367 = vmatprep.subr.mxu0 0.0
    %2368 = vmatpush1.xpose.msra.mxu0 0.0
    %2369 = vmatprep.subr.mxu0 0.0
    %2370 = vmatpush1.xpose.msra.mxu0 0.0
    %2371 = vmatprep.subr.mxu0 0.0
    %2372 = vmatpush1.xpose.msra.mxu0 0.0
    %2373 = vmatprep.subr.mxu0 0.0
    %2374 = vmatpush1.xpose.msra.mxu0 0.0
    %2375 = vmatprep.subr.mxu0 0.0
    %2376 = vmatpush1.xpose.msra.mxu0 0.0
    %2377 = vmatprep.subr.mxu0 0.0
    %2378 = vmatpush1.xpose.msra.mxu0 0.0
    %2379 = vmatprep.subr.mxu0 0.0
    %2380 = vmatpush1.xpose.msra.mxu0 0.0
    %2381 = vmatprep.subr.mxu0 0.0
    %2382 = vmatpush1.xpose.msra.mxu0 0.0
    %2383 = vmatprep.subr.mxu0 0.0
    %2384 = vmatpush1.xpose.msra.mxu0 0.0
    %2385 = vmatprep.subr.mxu0 0.0
    %2386 = vmatpush1.xpose.msra.mxu0 0.0
    %2387 = vmatprep.subr.mxu0 0.0
    %2388 = vmatpush1.xpose.msra.mxu0 0.0
    %2389 = vmatprep.subr.mxu0 0.0
    %2390 = vmatpush1.xpose.msra.mxu0 0.0
    %2391 = vmatprep.subr.mxu0 0.0
    %2392 = vmatpush1.xpose.msra.mxu0 0.0
    %2393 = vmatprep.subr.mxu0 0.0
    %2394 = vmatpush1.xpose.msra.mxu0 0.0
    %2395 = vmatprep.subr.mxu0 0.0
    %2396 = vmatpush1.xpose.msra.mxu0 0.0
    %2397 = vmatprep.subr.mxu0 0.0
    %2398 = vmatpush1.xpose.msra.mxu0 0.0
    %2399 = vmatprep.subr.mxu0 0.0
    %2400 = vmatpush1.xpose.msra.mxu0 0.0
    %2401 = vmatprep.subr.mxu0 0.0
    %2402 = vmatpush1.xpose.msra.mxu0 0.0
    %2403 = vmatprep.subr.mxu0 0.0
    %2404 = vmatpush1.xpose.msra.mxu0 0.0
    %2405 = vmatprep.subr.mxu0 0.0
    %2406 = vmatpush1.xpose.msra.mxu0 0.0
    %2407 = vmatprep.subr.mxu0 0.0
    %2408 = vmatpush1.xpose.msra.mxu0 0.0
    %2409 = vmatprep.subr.mxu0 0.0
    %2410 = vmatpush1.xpose.msra.mxu0 0.0
    %2411 = vmatprep.subr.mxu0 0.0
    %2412 = vmatpush1.xpose.msra.mxu0 0.0
    %2413 = vmatprep.subr.mxu0 0.0
    %2414 = vmatpush1.xpose.msra.mxu0 0.0
    %2415 = vmatprep.subr.mxu0 0.0
    %2416 = vmatpush1.xpose.msra.mxu0 0.0
    %2417 = vmatprep.subr.mxu0 0.0
    %2418 = vmatpush1.xpose.msra.mxu0 0.0
    %2419 = vmatprep.subr.mxu0 0.0
    %2420 = vmatpush1.xpose.msra.mxu0 0.0
    %2421 = vmatprep.mubr.f32.mxu0 0.0
    %2422 = vmatmul.mubr.f32.gmra.mrb[0].mxu0 %v2353
    %v2423 = vpop.f32.mrb[0].mxu0
    %v2424 = vadd.f32 0.0, %v2423
    %v2425 = vpop.f32.mrb[0].mxu0
    %2426 = vdwg.mxu0
    %2427 = vrot.lane.b32.xlu0 %v1968, 96
    %v2428 = vpop.permute.xlu0 %2427
    %v2429 = vsel %vm173, %v1968, 0
    %v2431 = vsel %vm173, %v2428, 0
    %2433 = vmatprep.subr.mxu0 0.0
    %2434 = vmatpush1.xpose.msra.mxu0 %v2431
    %2435 = vmatprep.subr.mxu0 0.0
    %2436 = vmatpush1.xpose.msra.mxu0 0.0
    %2437 = vmatprep.subr.mxu0 0.0
    %2438 = vmatpush1.xpose.msra.mxu0 0.0
    %2439 = vmatprep.subr.mxu0 0.0
    %2440 = vmatpush1.xpose.msra.mxu0 0.0
    %2441 = vmatprep.subr.mxu0 0.0
    %2442 = vmatpush1.xpose.msra.mxu0 0.0
    %2443 = vmatprep.subr.mxu0 0.0
    %2444 = vmatpush1.xpose.msra.mxu0 0.0
    %2445 = vmatprep.subr.mxu0 0.0
    %2446 = vmatpush1.xpose.msra.mxu0 0.0
    %2447 = vmatprep.subr.mxu0 0.0
    %2448 = vmatpush1.xpose.msra.mxu0 0.0
    %2449 = vmatprep.subr.mxu0 0.0
    %2450 = vmatpush1.xpose.msra.mxu0 0.0
    %2451 = vmatprep.subr.mxu0 0.0
    %2452 = vmatpush1.xpose.msra.mxu0 0.0
    %2453 = vmatprep.subr.mxu0 0.0
    %2454 = vmatpush1.xpose.msra.mxu0 0.0
    %2455 = vmatprep.subr.mxu0 0.0
    %2456 = vmatpush1.xpose.msra.mxu0 0.0
    %2457 = vmatprep.subr.mxu0 0.0
    %2458 = vmatpush1.xpose.msra.mxu0 0.0
    %2459 = vmatprep.subr.mxu0 0.0
    %2460 = vmatpush1.xpose.msra.mxu0 0.0
    %2461 = vmatprep.subr.mxu0 0.0
    %2462 = vmatpush1.xpose.msra.mxu0 0.0
    %2463 = vmatprep.subr.mxu0 0.0
    %2464 = vmatpush1.xpose.msra.mxu0 0.0
    %2465 = vmatprep.subr.mxu0 0.0
    %2466 = vmatpush1.xpose.msra.mxu0 0.0
    %2467 = vmatprep.subr.mxu0 0.0
    %2468 = vmatpush1.xpose.msra.mxu0 0.0
    %2469 = vmatprep.subr.mxu0 0.0
    %2470 = vmatpush1.xpose.msra.mxu0 0.0
    %2471 = vmatprep.subr.mxu0 0.0
    %2472 = vmatpush1.xpose.msra.mxu0 0.0
    %2473 = vmatprep.subr.mxu0 0.0
    %2474 = vmatpush1.xpose.msra.mxu0 0.0
    %2475 = vmatprep.subr.mxu0 0.0
    %2476 = vmatpush1.xpose.msra.mxu0 0.0
    %2477 = vmatprep.subr.mxu0 0.0
    %2478 = vmatpush1.xpose.msra.mxu0 0.0
    %2479 = vmatprep.subr.mxu0 0.0
    %2480 = vmatpush1.xpose.msra.mxu0 0.0
    %2481 = vmatprep.subr.mxu0 0.0
    %2482 = vmatpush1.xpose.msra.mxu0 0.0
    %2483 = vmatprep.subr.mxu0 0.0
    %2484 = vmatpush1.xpose.msra.mxu0 0.0
    %2485 = vmatprep.subr.mxu0 0.0
    %2486 = vmatpush1.xpose.msra.mxu0 0.0
    %2487 = vmatprep.subr.mxu0 0.0
    %2488 = vmatpush1.xpose.msra.mxu0 0.0
    %2489 = vmatprep.subr.mxu0 0.0
    %2490 = vmatpush1.xpose.msra.mxu0 0.0
    %2491 = vmatprep.subr.mxu0 0.0
    %2492 = vmatpush1.xpose.msra.mxu0 0.0
    %2493 = vmatprep.subr.mxu0 0.0
    %2494 = vmatpush1.xpose.msra.mxu0 0.0
    %2495 = vmatprep.subr.mxu0 0.0
    %2496 = vmatpush1.xpose.msra.mxu0 0.0
    %2497 = vmatprep.mubr.f32.mxu0 0.0
    %2498 = vmatmul.mubr.f32.gmra.mrb[0].mxu0 %v2429
    %v2499 = vpop.f32.mrb[0].mxu0
    %v2500 = vadd.f32 0.0, %v2499
    %v2501 = vpop.f32.mrb[0].mxu0
    %2502 = vdwg.mxu0
    %2503 = vrot.lane.b32.xlu0 %v1970, 96
    %v2504 = vpop.permute.xlu0 %2503
    %v2505 = vsel %vm173, %v1970, 0
    %v2507 = vsel %vm173, %v2504, 0
    %2509 = vmatprep.subr.mxu0 0.0
    %2510 = vmatpush1.xpose.msra.mxu0 %v2507
    %2511 = vmatprep.subr.mxu0 0.0
    %2512 = vmatpush1.xpose.msra.mxu0 0.0
    %2513 = vmatprep.subr.mxu0 0.0
    %2514 = vmatpush1.xpose.msra.mxu0 0.0
    %2515 = vmatprep.subr.mxu0 0.0
    %2516 = vmatpush1.xpose.msra.mxu0 0.0
    %2517 = vmatprep.subr.mxu0 0.0
    %2518 = vmatpush1.xpose.msra.mxu0 0.0
    %2519 = vmatprep.subr.mxu0 0.0
    %2520 = vmatpush1.xpose.msra.mxu0 0.0
    %2521 = vmatprep.subr.mxu0 0.0
    %2522 = vmatpush1.xpose.msra.mxu0 0.0
    %2523 = vmatprep.subr.mxu0 0.0
    %2524 = vmatpush1.xpose.msra.mxu0 0.0
    %2525 = vmatprep.subr.mxu0 0.0
    %2526 = vmatpush1.xpose.msra.mxu0 0.0
    %2527 = vmatprep.subr.mxu0 0.0
    %2528 = vmatpush1.xpose.msra.mxu0 0.0
    %2529 = vmatprep.subr.mxu0 0.0
    %2530 = vmatpush1.xpose.msra.mxu0 0.0
    %2531 = vmatprep.subr.mxu0 0.0
    %2532 = vmatpush1.xpose.msra.mxu0 0.0
    %2533 = vmatprep.subr.mxu0 0.0
    %2534 = vmatpush1.xpose.msra.mxu0 0.0
    %2535 = vmatprep.subr.mxu0 0.0
    %2536 = vmatpush1.xpose.msra.mxu0 0.0
    %2537 = vmatprep.subr.mxu0 0.0
    %2538 = vmatpush1.xpose.msra.mxu0 0.0
    %2539 = vmatprep.subr.mxu0 0.0
    %2540 = vmatpush1.xpose.msra.mxu0 0.0
    %2541 = vmatprep.subr.mxu0 0.0
    %2542 = vmatpush1.xpose.msra.mxu0 0.0
    %2543 = vmatprep.subr.mxu0 0.0
    %2544 = vmatpush1.xpose.msra.mxu0 0.0
    %2545 = vmatprep.subr.mxu0 0.0
    %2546 = vmatpush1.xpose.msra.mxu0 0.0
    %2547 = vmatprep.subr.mxu0 0.0
    %2548 = vmatpush1.xpose.msra.mxu0 0.0
    %2549 = vmatprep.subr.mxu0 0.0
    %2550 = vmatpush1.xpose.msra.mxu0 0.0
    %2551 = vmatprep.subr.mxu0 0.0
    %2552 = vmatpush1.xpose.msra.mxu0 0.0
    %2553 = vmatprep.subr.mxu0 0.0
    %2554 = vmatpush1.xpose.msra.mxu0 0.0
    %2555 = vmatprep.subr.mxu0 0.0
    %2556 = vmatpush1.xpose.msra.mxu0 0.0
    %2557 = vmatprep.subr.mxu0 0.0
    %2558 = vmatpush1.xpose.msra.mxu0 0.0
    %2559 = vmatprep.subr.mxu0 0.0
    %2560 = vmatpush1.xpose.msra.mxu0 0.0
    %2561 = vmatprep.subr.mxu0 0.0
    %2562 = vmatpush1.xpose.msra.mxu0 0.0
    %2563 = vmatprep.subr.mxu0 0.0
    %2564 = vmatpush1.xpose.msra.mxu0 0.0
    %2565 = vmatprep.subr.mxu0 0.0
    %2566 = vmatpush1.xpose.msra.mxu0 0.0
    %2567 = vmatprep.subr.mxu0 0.0
    %2568 = vmatpush1.xpose.msra.mxu0 0.0
    %2569 = vmatprep.subr.mxu0 0.0
    %2570 = vmatpush1.xpose.msra.mxu0 0.0
    %2571 = vmatprep.subr.mxu0 0.0
    %2572 = vmatpush1.xpose.msra.mxu0 0.0
    %2573 = vmatprep.mubr.f32.mxu0 0.0
    %2574 = vmatmul.mubr.f32.gmra.mrb[0].mxu0 %v2505
    %v2575 = vpop.f32.mrb[0].mxu0
    %v2576 = vadd.f32 0.0, %v2575
    %v2577 = vpop.f32.mrb[0].mxu0
    %2578 = vdwg.mxu0
    %v2579 = vsel %vm173, %v2044, -inf
    %2580 = vmax.xlane.f32.xlu0 %v2579
    %v2581 = vpop.xlane.xlu0 %2580
    %v2582 = vsel %vm173, %v2120, -inf
    %2583 = vmax.xlane.f32.xlu0 %v2582
    %v2584 = vpop.xlane.xlu0 %2583
    %v2585 = vsel %vm173, %v2196, -inf
    %2586 = vmax.xlane.f32.xlu0 %v2585
    %v2587 = vpop.xlane.xlu0 %2586
    %v2588 = vsel %vm173, %v2272, -inf
    %2589 = vmax.xlane.f32.xlu0 %v2588
    %v2590 = vpop.xlane.xlu0 %2589
    %v2591 = vsel %vm173, %v2348, -inf
    %2592 = vmax.xlane.f32.xlu0 %v2591
    %v2593 = vpop.xlane.xlu0 %2592
    %v2594 = vsel %vm173, %v2424, -inf
    %2595 = vmax.xlane.f32.xlu0 %v2594
    %v2596 = vpop.xlane.xlu0 %2595
    %v2597 = vsel %vm173, %v2500, -inf
    %2598 = vmax.xlane.f32.xlu0 %v2597
    %v2599 = vpop.xlane.xlu0 %2598
    %v2600 = vsel %vm173, %v2576, -inf
    %2601 = vmax.xlane.f32.xlu0 %v2600
    %v2602 = vpop.xlane.xlu0 %2601
    %v2603 = vsub.f32 %v2044, %v2581
    %v2604 = vsub.f32 %v2120, %v2584
    %v2605 = vsub.f32 %v2196, %v2587
    %v2606 = vsub.f32 %v2272, %v2590
    %v2607 = vsub.f32 %v2348, %v2593
    %v2608 = vsub.f32 %v2424, %v2596
    %v2609 = vsub.f32 %v2500, %v2599
    %v2610 = vsub.f32 %v2576, %v2602
    %v2611 = vmul.f32 %v2603, 1.442695
    %v2612 = vpow.pop %v2611
    %v2613 = vmul.f32 %v2604, 1.442695
    %v2614 = vpow.pop %v2613
    %v2615 = vmul.f32 %v2605, 1.442695
    %v2616 = vpow.pop %v2615
    %v2617 = vmul.f32 %v2606, 1.442695
    %v2618 = vpow.pop %v2617
    %v2619 = vmul.f32 %v2607, 1.442695
    %v2620 = vpow.pop %v2619
    %v2621 = vmul.f32 %v2608, 1.442695
    %v2622 = vpow.pop %v2621
    %v2623 = vmul.f32 %v2609, 1.442695
    %v2624 = vpow.pop %v2623
    %v2625 = vmul.f32 %v2610, 1.442695
    %v2626 = vpow.pop %v2625
    %v2627 = vsel %vm173, %v2612, 0.0
    %2628 = vadd.xlane.f32.xlu0 %v2627
    %v2629 = vpop.xlane.xlu0 %2628
    %v2630 = vsel %vm173, %v2614, 0.0
    %2631 = vadd.xlane.f32.xlu0 %v2630
    %v2632 = vpop.xlane.xlu0 %2631
    %v2633 = vsel %vm173, %v2616, 0.0
    %2634 = vadd.xlane.f32.xlu0 %v2633
    %v2635 = vpop.xlane.xlu0 %2634
    %v2636 = vsel %vm173, %v2618, 0.0
    %2637 = vadd.xlane.f32.xlu0 %v2636
    %v2638 = vpop.xlane.xlu0 %2637
    %v2639 = vsel %vm173, %v2620, 0.0
    %2640 = vadd.xlane.f32.xlu0 %v2639
    %v2641 = vpop.xlane.xlu0 %2640
    %v2642 = vsel %vm173, %v2622, 0.0
    %2643 = vadd.xlane.f32.xlu0 %v2642
    %v2644 = vpop.xlane.xlu0 %2643
    %v2645 = vsel %vm173, %v2624, 0.0
    %2646 = vadd.xlane.f32.xlu0 %v2645
    %v2647 = vpop.xlane.xlu0 %2646
    %v2648 = vsel %vm173, %v2626, 0.0
    %2649 = vadd.xlane.f32.xlu0 %v2648
    %v2650 = vpop.xlane.xlu0 %2649
    %v2651 = vrcp.pop %v2629
    %v2652 = vrcp.pop %v2632
    %v2653 = vrcp.pop %v2635
    %v2654 = vrcp.pop %v2638
    %v2655 = vrcp.pop %v2641
    %v2656 = vrcp.pop %v2644
    %v2657 = vrcp.pop %v2647
    %v2658 = vrcp.pop %v2650
    %v2659 = vmul.f32 %v2612, %v2651
    %v2660 = vmul.f32 %v2614, %v2652
    %v2661 = vmul.f32 %v2616, %v2653
    %v2662 = vmul.f32 %v2618, %v2654
    %v2663 = vmul.f32 %v2620, %v2655
    %v2664 = vmul.f32 %v2622, %v2656
    %v2665 = vmul.f32 %v2624, %v2657
    %v2666 = vmul.f32 %v2626, %v2658
    %2667 = vrot.lane.b32.xlu0 %v1949, 64
    %v2668 = vpop.permute.xlu0 %2667
    %v2671 = vsel %vm173, %v2659, 0
    %2673 = vmatprep.subr.mxu0 0.0
    %2674 = vmatpush1.msra.mxu0 %v2668
    %2675 = vmatprep.subr.mxu0 0.0
    %2676 = vmatpush1.msra.mxu0 0.0
    %2677 = vmatprep.subr.mxu0 0.0
    %2678 = vmatpush1.msra.mxu0 0.0
    %2679 = vmatprep.subr.mxu0 0.0
    %2680 = vmatpush1.msra.mxu0 0.0
    %2681 = vmatprep.subr.mxu0 0.0
    %2682 = vmatpush1.msra.mxu0 0.0
    %2683 = vmatprep.subr.mxu0 0.0
    %2684 = vmatpush1.msra.mxu0 0.0
    %2685 = vmatprep.subr.mxu0 0.0
    %2686 = vmatpush1.msra.mxu0 0.0
    %2687 = vmatprep.subr.mxu0 0.0
    %2688 = vmatpush1.msra.mxu0 0.0
    %2689 = vmatprep.subr.mxu0 0.0
    %2690 = vmatpush1.msra.mxu0 0.0
    %2691 = vmatprep.subr.mxu0 0.0
    %2692 = vmatpush1.msra.mxu0 0.0
    %2693 = vmatprep.subr.mxu0 0.0
    %2694 = vmatpush1.msra.mxu0 0.0
    %2695 = vmatprep.subr.mxu0 0.0
    %2696 = vmatpush1.msra.mxu0 0.0
    %2697 = vmatprep.subr.mxu0 0.0
    %2698 = vmatpush1.msra.mxu0 0.0
    %2699 = vmatprep.subr.mxu0 0.0
    %2700 = vmatpush1.msra.mxu0 0.0
    %2701 = vmatprep.subr.mxu0 0.0
    %2702 = vmatpush1.msra.mxu0 0.0
    %2703 = vmatprep.subr.mxu0 0.0
    %2704 = vmatpush1.msra.mxu0 0.0
    %2705 = vmatprep.subr.mxu0 0.0
    %2706 = vmatpush1.msra.mxu0 0.0
    %2707 = vmatprep.subr.mxu0 0.0
    %2708 = vmatpush1.msra.mxu0 0.0
    %2709 = vmatprep.subr.mxu0 0.0
    %2710 = vmatpush1.msra.mxu0 0.0
    %2711 = vmatprep.subr.mxu0 0.0
    %2712 = vmatpush1.msra.mxu0 0.0
    %2713 = vmatprep.subr.mxu0 0.0
    %2714 = vmatpush1.msra.mxu0 0.0
    %2715 = vmatprep.subr.mxu0 0.0
    %2716 = vmatpush1.msra.mxu0 0.0
    %2717 = vmatprep.subr.mxu0 0.0
    %2718 = vmatpush1.msra.mxu0 0.0
    %2719 = vmatprep.subr.mxu0 0.0
    %2720 = vmatpush1.msra.mxu0 0.0
    %2721 = vmatprep.subr.mxu0 0.0
    %2722 = vmatpush1.msra.mxu0 0.0
    %2723 = vmatprep.subr.mxu0 0.0
    %2724 = vmatpush1.msra.mxu0 0.0
    %2725 = vmatprep.subr.mxu0 0.0
    %2726 = vmatpush1.msra.mxu0 0.0
    %2727 = vmatprep.subr.mxu0 0.0
    %2728 = vmatpush1.msra.mxu0 0.0
    %2729 = vmatprep.subr.mxu0 0.0
    %2730 = vmatpush1.msra.mxu0 0.0
    %2731 = vmatprep.subr.mxu0 0.0
    %2732 = vmatpush1.msra.mxu0 0.0
    %2733 = vmatprep.subr.mxu0 0.0
    %2734 = vmatpush1.msra.mxu0 0.0
    %2735 = vmatprep.subr.mxu0 0.0
    %2736 = vmatpush1.msra.mxu0 0.0
    %2737 = vmatprep.mubr.f32.mxu0 0.0
    %2738 = vmatmul.mubr.f32.gmra.mrb[0].mxu0 %v2671
    %v2739 = vpop.f32.mrb[0].mxu0
    %v2740 = vadd.f32 0.0, %v2739
    %v2741 = vpop.f32.mrb[0].mxu0
    %2742 = vdwg.mxu0
    %2743 = vrot.lane.b32.xlu0 %v1959, 64
    %v2744 = vpop.permute.xlu0 %2743
    %v2747 = vsel %vm173, %v2660, 0
    %2749 = vmatprep.subr.mxu0 0.0
    %2750 = vmatpush1.msra.mxu0 %v2744
    %2751 = vmatprep.subr.mxu0 0.0
    %2752 = vmatpush1.msra.mxu0 0.0
    %2753 = vmatprep.subr.mxu0 0.0
    %2754 = vmatpush1.msra.mxu0 0.0
    %2755 = vmatprep.subr.mxu0 0.0
    %2756 = vmatpush1.msra.mxu0 0.0
    %2757 = vmatprep.subr.mxu0 0.0
    %2758 = vmatpush1.msra.mxu0 0.0
    %2759 = vmatprep.subr.mxu0 0.0
    %2760 = vmatpush1.msra.mxu0 0.0
    %2761 = vmatprep.subr.mxu0 0.0
    %2762 = vmatpush1.msra.mxu0 0.0
    %2763 = vmatprep.subr.mxu0 0.0
    %2764 = vmatpush1.msra.mxu0 0.0
    %2765 = vmatprep.subr.mxu0 0.0
    %2766 = vmatpush1.msra.mxu0 0.0
    %2767 = vmatprep.subr.mxu0 0.0
    %2768 = vmatpush1.msra.mxu0 0.0
    %2769 = vmatprep.subr.mxu0 0.0
    %2770 = vmatpush1.msra.mxu0 0.0
    %2771 = vmatprep.subr.mxu0 0.0
    %2772 = vmatpush1.msra.mxu0 0.0
    %2773 = vmatprep.subr.mxu0 0.0
    %2774 = vmatpush1.msra.mxu0 0.0
    %2775 = vmatprep.subr.mxu0 0.0
    %2776 = vmatpush1.msra.mxu0 0.0
    %2777 = vmatprep.subr.mxu0 0.0
    %2778 = vmatpush1.msra.mxu0 0.0
    %2779 = vmatprep.subr.mxu0 0.0
    %2780 = vmatpush1.msra.mxu0 0.0
    %2781 = vmatprep.subr.mxu0 0.0
    %2782 = vmatpush1.msra.mxu0 0.0
    %2783 = vmatprep.subr.mxu0 0.0
    %2784 = vmatpush1.msra.mxu0 0.0
    %2785 = vmatprep.subr.mxu0 0.0
    %2786 = vmatpush1.msra.mxu0 0.0
    %2787 = vmatprep.subr.mxu0 0.0
    %2788 = vmatpush1.msra.mxu0 0.0
    %2789 = vmatprep.subr.mxu0 0.0
    %2790 = vmatpush1.msra.mxu0 0.0
    %2791 = vmatprep.subr.mxu0 0.0
    %2792 = vmatpush1.msra.mxu0 0.0
    %2793 = vmatprep.subr.mxu0 0.0
    %2794 = vmatpush1.msra.mxu0 0.0
    %2795 = vmatprep.subr.mxu0 0.0
    %2796 = vmatpush1.msra.mxu0 0.0
    %2797 = vmatprep.subr.mxu0 0.0
    %2798 = vmatpush1.msra.mxu0 0.0
    %2799 = vmatprep.subr.mxu0 0.0
    %2800 = vmatpush1.msra.mxu0 0.0
    %2801 = vmatprep.subr.mxu0 0.0
    %2802 = vmatpush1.msra.mxu0 0.0
    %2803 = vmatprep.subr.mxu0 0.0
    %2804 = vmatpush1.msra.mxu0 0.0
    %2805 = vmatprep.subr.mxu0 0.0
    %2806 = vmatpush1.msra.mxu0 0.0
    %2807 = vmatprep.subr.mxu0 0.0
    %2808 = vmatpush1.msra.mxu0 0.0
    %2809 = vmatprep.subr.mxu0 0.0
    %2810 = vmatpush1.msra.mxu0 0.0
    %2811 = vmatprep.subr.mxu0 0.0
    %2812 = vmatpush1.msra.mxu0 0.0
    %2813 = vmatprep.mubr.f32.mxu0 0.0
    %2814 = vmatmul.mubr.f32.gmra.mrb[0].mxu0 %v2747
    %v2815 = vpop.f32.mrb[0].mxu0
    %v2816 = vadd.f32 0.0, %v2815
    %v2817 = vpop.f32.mrb[0].mxu0
    %2818 = vdwg.mxu0
    %2819 = vrot.lane.b32.xlu0 %v1961, 64
    %v2820 = vpop.permute.xlu0 %2819
    %v2823 = vsel %vm173, %v2661, 0
    %2825 = vmatprep.subr.mxu0 0.0
    %2826 = vmatpush1.msra.mxu0 %v2820
    %2827 = vmatprep.subr.mxu0 0.0
    %2828 = vmatpush1.msra.mxu0 0.0
    %2829 = vmatprep.subr.mxu0 0.0
    %2830 = vmatpush1.msra.mxu0 0.0
    %2831 = vmatprep.subr.mxu0 0.0
    %2832 = vmatpush1.msra.mxu0 0.0
    %2833 = vmatprep.subr.mxu0 0.0
    %2834 = vmatpush1.msra.mxu0 0.0
    %2835 = vmatprep.subr.mxu0 0.0
    %2836 = vmatpush1.msra.mxu0 0.0
    %2837 = vmatprep.subr.mxu0 0.0
    %2838 = vmatpush1.msra.mxu0 0.0
    %2839 = vmatprep.subr.mxu0 0.0
    %2840 = vmatpush1.msra.mxu0 0.0
    %2841 = vmatprep.subr.mxu0 0.0
    %2842 = vmatpush1.msra.mxu0 0.0
    %2843 = vmatprep.subr.mxu0 0.0
    %2844 = vmatpush1.msra.mxu0 0.0
    %2845 = vmatprep.subr.mxu0 0.0
    %2846 = vmatpush1.msra.mxu0 0.0
    %2847 = vmatprep.subr.mxu0 0.0
    %2848 = vmatpush1.msra.mxu0 0.0
    %2849 = vmatprep.subr.mxu0 0.0
    %2850 = vmatpush1.msra.mxu0 0.0
    %2851 = vmatprep.subr.mxu0 0.0
    %2852 = vmatpush1.msra.mxu0 0.0
    %2853 = vmatprep.subr.mxu0 0.0
    %2854 = vmatpush1.msra.mxu0 0.0
    %2855 = vmatprep.subr.mxu0 0.0
    %2856 = vmatpush1.msra.mxu0 0.0
    %2857 = vmatprep.subr.mxu0 0.0
    %2858 = vmatpush1.msra.mxu0 0.0
    %2859 = vmatprep.subr.mxu0 0.0
    %2860 = vmatpush1.msra.mxu0 0.0
    %2861 = vmatprep.subr.mxu0 0.0
    %2862 = vmatpush1.msra.mxu0 0.0
    %2863 = vmatprep.subr.mxu0 0.0
    %2864 = vmatpush1.msra.mxu0 0.0
    %2865 = vmatprep.subr.mxu0 0.0
    %2866 = vmatpush1.msra.mxu0 0.0
    %2867 = vmatprep.subr.mxu0 0.0
    %2868 = vmatpush1.msra.mxu0 0.0
    %2869 = vmatprep.subr.mxu0 0.0
    %2870 = vmatpush1.msra.mxu0 0.0
    %2871 = vmatprep.subr.mxu0 0.0
    %2872 = vmatpush1.msra.mxu0 0.0
    %2873 = vmatprep.subr.mxu0 0.0
    %2874 = vmatpush1.msra.mxu0 0.0
    %2875 = vmatprep.subr.mxu0 0.0
    %2876 = vmatpush1.msra.mxu0 0.0
    %2877 = vmatprep.subr.mxu0 0.0
    %2878 = vmatpush1.msra.mxu0 0.0
    %2879 = vmatprep.subr.mxu0 0.0
    %2880 = vmatpush1.msra.mxu0 0.0
    %2881 = vmatprep.subr.mxu0 0.0
    %2882 = vmatpush1.msra.mxu0 0.0
    %2883 = vmatprep.subr.mxu0 0.0
    %2884 = vmatpush1.msra.mxu0 0.0
    %2885 = vmatprep.subr.mxu0 0.0
    %2886 = vmatpush1.msra.mxu0 0.0
    %2887 = vmatprep.subr.mxu0 0.0
    %2888 = vmatpush1.msra.mxu0 0.0
    %2889 = vmatprep.mubr.f32.mxu0 0.0
    %2890 = vmatmul.mubr.f32.gmra.mrb[0].mxu0 %v2823
    %v2891 = vpop.f32.mrb[0].mxu0
    %v2892 = vadd.f32 0.0, %v2891
    %v2893 = vpop.f32.mrb[0].mxu0
    %2894 = vdwg.mxu0
    %2895 = vrot.lane.b32.xlu0 %v1963, 64
    %v2896 = vpop.permute.xlu0 %2895
    %v2899 = vsel %vm173, %v2662, 0
    %2901 = vmatprep.subr.mxu0 0.0
    %2902 = vmatpush1.msra.mxu0 %v2896
    %2903 = vmatprep.subr.mxu0 0.0
    %2904 = vmatpush1.msra.mxu0 0.0
    %2905 = vmatprep.subr.mxu0 0.0
    %2906 = vmatpush1.msra.mxu0 0.0
    %2907 = vmatprep.subr.mxu0 0.0
    %2908 = vmatpush1.msra.mxu0 0.0
    %2909 = vmatprep.subr.mxu0 0.0
    %2910 = vmatpush1.msra.mxu0 0.0
    %2911 = vmatprep.subr.mxu0 0.0
    %2912 = vmatpush1.msra.mxu0 0.0
    %2913 = vmatprep.subr.mxu0 0.0
    %2914 = vmatpush1.msra.mxu0 0.0
    %2915 = vmatprep.subr.mxu0 0.0
    %2916 = vmatpush1.msra.mxu0 0.0
    %2917 = vmatprep.subr.mxu0 0.0
    %2918 = vmatpush1.msra.mxu0 0.0
    %2919 = vmatprep.subr.mxu0 0.0
    %2920 = vmatpush1.msra.mxu0 0.0
    %2921 = vmatprep.subr.mxu0 0.0
    %2922 = vmatpush1.msra.mxu0 0.0
    %2923 = vmatprep.subr.mxu0 0.0
    %2924 = vmatpush1.msra.mxu0 0.0
    %2925 = vmatprep.subr.mxu0 0.0
    %2926 = vmatpush1.msra.mxu0 0.0
    %2927 = vmatprep.subr.mxu0 0.0
    %2928 = vmatpush1.msra.mxu0 0.0
    %2929 = vmatprep.subr.mxu0 0.0
    %2930 = vmatpush1.msra.mxu0 0.0
    %2931 = vmatprep.subr.mxu0 0.0
    %2932 = vmatpush1.msra.mxu0 0.0
    %2933 = vmatprep.subr.mxu0 0.0
    %2934 = vmatpush1.msra.mxu0 0.0
    %2935 = vmatprep.subr.mxu0 0.0
    %2936 = vmatpush1.msra.mxu0 0.0
    %2937 = vmatprep.subr.mxu0 0.0
    %2938 = vmatpush1.msra.mxu0 0.0
    %2939 = vmatprep.subr.mxu0 0.0
    %2940 = vmatpush1.msra.mxu0 0.0
    %2941 = vmatprep.subr.mxu0 0.0
    %2942 = vmatpush1.msra.mxu0 0.0
    %2943 = vmatprep.subr.mxu0 0.0
    %2944 = vmatpush1.msra.mxu0 0.0
    %2945 = vmatprep.subr.mxu0 0.0
    %2946 = vmatpush1.msra.mxu0 0.0
    %2947 = vmatprep.subr.mxu0 0.0
    %2948 = vmatpush1.msra.mxu0 0.0
    %2949 = vmatprep.subr.mxu0 0.0
    %2950 = vmatpush1.msra.mxu0 0.0
    %2951 = vmatprep.subr.mxu0 0.0
    %2952 = vmatpush1.msra.mxu0 0.0
    %2953 = vmatprep.subr.mxu0 0.0
    %2954 = vmatpush1.msra.mxu0 0.0
    %2955 = vmatprep.subr.mxu0 0.0
    %2956 = vmatpush1.msra.mxu0 0.0
    %2957 = vmatprep.subr.mxu0 0.0
    %2958 = vmatpush1.msra.mxu0 0.0
    %2959 = vmatprep.subr.mxu0 0.0
    %2960 = vmatpush1.msra.mxu0 0.0
    %2961 = vmatprep.subr.mxu0 0.0
    %2962 = vmatpush1.msra.mxu0 0.0
    %2963 = vmatprep.subr.mxu0 0.0
    %2964 = vmatpush1.msra.mxu0 0.0
    %2965 = vmatprep.mubr.f32.mxu0 0.0
    %2966 = vmatmul.mubr.f32.gmra.mrb[0].mxu0 %v2899
    %v2967 = vpop.f32.mrb[0].mxu0
    %v2968 = vadd.f32 0.0, %v2967
    %v2969 = vpop.f32.mrb[0].mxu0
    %2970 = vdwg.mxu0
    %2971 = vrot.lane.b32.xlu0 %v1954, 64
    %v2972 = vpop.permute.xlu0 %2971
    %v2975 = vsel %vm173, %v2663, 0
    %2977 = vmatprep.subr.mxu0 0.0
    %2978 = vmatpush1.msra.mxu0 %v2972
    %2979 = vmatprep.subr.mxu0 0.0
    %2980 = vmatpush1.msra.mxu0 0.0
    %2981 = vmatprep.subr.mxu0 0.0
    %2982 = vmatpush1.msra.mxu0 0.0
    %2983 = vmatprep.subr.mxu0 0.0
    %2984 = vmatpush1.msra.mxu0 0.0
    %2985 = vmatprep.subr.mxu0 0.0
    %2986 = vmatpush1.msra.mxu0 0.0
    %2987 = vmatprep.subr.mxu0 0.0
    %2988 = vmatpush1.msra.mxu0 0.0
    %2989 = vmatprep.subr.mxu0 0.0
    %2990 = vmatpush1.msra.mxu0 0.0
    %2991 = vmatprep.subr.mxu0 0.0
    %2992 = vmatpush1.msra.mxu0 0.0
    %2993 = vmatprep.subr.mxu0 0.0
    %2994 = vmatpush1.msra.mxu0 0.0
    %2995 = vmatprep.subr.mxu0 0.0
    %2996 = vmatpush1.msra.mxu0 0.0
    %2997 = vmatprep.subr.mxu0 0.0
    %2998 = vmatpush1.msra.mxu0 0.0
    %2999 = vmatprep.subr.mxu0 0.0
    %3000 = vmatpush1.msra.mxu0 0.0
    %3001 = vmatprep.subr.mxu0 0.0
    %3002 = vmatpush1.msra.mxu0 0.0
    %3003 = vmatprep.subr.mxu0 0.0
    %3004 = vmatpush1.msra.mxu0 0.0
    %3005 = vmatprep.subr.mxu0 0.0
    %3006 = vmatpush1.msra.mxu0 0.0
    %3007 = vmatprep.subr.mxu0 0.0
    %3008 = vmatpush1.msra.mxu0 0.0
    %3009 = vmatprep.subr.mxu0 0.0
    %3010 = vmatpush1.msra.mxu0 0.0
    %3011 = vmatprep.subr.mxu0 0.0
    %3012 = vmatpush1.msra.mxu0 0.0
    %3013 = vmatprep.subr.mxu0 0.0
    %3014 = vmatpush1.msra.mxu0 0.0
    %3015 = vmatprep.subr.mxu0 0.0
    %3016 = vmatpush1.msra.mxu0 0.0
    %3017 = vmatprep.subr.mxu0 0.0
    %3018 = vmatpush1.msra.mxu0 0.0
    %3019 = vmatprep.subr.mxu0 0.0
    %3020 = vmatpush1.msra.mxu0 0.0
    %3021 = vmatprep.subr.mxu0 0.0
    %3022 = vmatpush1.msra.mxu0 0.0
    %3023 = vmatprep.subr.mxu0 0.0
    %3024 = vmatpush1.msra.mxu0 0.0
    %3025 = vmatprep.subr.mxu0 0.0
    %3026 = vmatpush1.msra.mxu0 0.0
    %3027 = vmatprep.subr.mxu0 0.0
    %3028 = vmatpush1.msra.mxu0 0.0
    %3029 = vmatprep.subr.mxu0 0.0
    %3030 = vmatpush1.msra.mxu0 0.0
    %3031 = vmatprep.subr.mxu0 0.0
    %3032 = vmatpush1.msra.mxu0 0.0
    %3033 = vmatprep.subr.mxu0 0.0
    %3034 = vmatpush1.msra.mxu0 0.0
    %3035 = vmatprep.subr.mxu0 0.0
    %3036 = vmatpush1.msra.mxu0 0.0
    %3037 = vmatprep.subr.mxu0 0.0
    %3038 = vmatpush1.msra.mxu0 0.0
    %3039 = vmatprep.subr.mxu0 0.0
    %3040 = vmatpush1.msra.mxu0 0.0
    %3041 = vmatprep.mubr.f32.mxu0 0.0
    %3042 = vmatmul.mubr.f32.gmra.mrb[0].mxu0 %v2975
    %v3043 = vpop.f32.mrb[0].mxu0
    %v3044 = vadd.f32 0.0, %v3043
    %v3045 = vpop.f32.mrb[0].mxu0
    %3046 = vdwg.mxu0
    %3047 = vrot.lane.b32.xlu0 %v1966, 64
    %v3048 = vpop.permute.xlu0 %3047
    %v3051 = vsel %vm173, %v2664, 0
    %3053 = vmatprep.subr.mxu0 0.0
    %3054 = vmatpush1.msra.mxu0 %v3048
    %3055 = vmatprep.subr.mxu0 0.0
    %3056 = vmatpush1.msra.mxu0 0.0
    %3057 = vmatprep.subr.mxu0 0.0
    %3058 = vmatpush1.msra.mxu0 0.0
    %3059 = vmatprep.subr.mxu0 0.0
    %3060 = vmatpush1.msra.mxu0 0.0
    %3061 = vmatprep.subr.mxu0 0.0
    %3062 = vmatpush1.msra.mxu0 0.0
    %3063 = vmatprep.subr.mxu0 0.0
    %3064 = vmatpush1.msra.mxu0 0.0
    %3065 = vmatprep.subr.mxu0 0.0
    %3066 = vmatpush1.msra.mxu0 0.0
    %3067 = vmatprep.subr.mxu0 0.0
    %3068 = vmatpush1.msra.mxu0 0.0
    %3069 = vmatprep.subr.mxu0 0.0
    %3070 = vmatpush1.msra.mxu0 0.0
    %3071 = vmatprep.subr.mxu0 0.0
    %3072 = vmatpush1.msra.mxu0 0.0
    %3073 = vmatprep.subr.mxu0 0.0
    %3074 = vmatpush1.msra.mxu0 0.0
    %3075 = vmatprep.subr.mxu0 0.0
    %3076 = vmatpush1.msra.mxu0 0.0
    %3077 = vmatprep.subr.mxu0 0.0
    %3078 = vmatpush1.msra.mxu0 0.0
    %3079 = vmatprep.subr.mxu0 0.0
    %3080 = vmatpush1.msra.mxu0 0.0
    %3081 = vmatprep.subr.mxu0 0.0
    %3082 = vmatpush1.msra.mxu0 0.0
    %3083 = vmatprep.subr.mxu0 0.0
    %3084 = vmatpush1.msra.mxu0 0.0
    %3085 = vmatprep.subr.mxu0 0.0
    %3086 = vmatpush1.msra.mxu0 0.0
    %3087 = vmatprep.subr.mxu0 0.0
    %3088 = vmatpush1.msra.mxu0 0.0
    %3089 = vmatprep.subr.mxu0 0.0
    %3090 = vmatpush1.msra.mxu0 0.0
    %3091 = vmatprep.subr.mxu0 0.0
    %3092 = vmatpush1.msra.mxu0 0.0
    %3093 = vmatprep.subr.mxu0 0.0
    %3094 = vmatpush1.msra.mxu0 0.0
    %3095 = vmatprep.subr.mxu0 0.0
    %3096 = vmatpush1.msra.mxu0 0.0
    %3097 = vmatprep.subr.mxu0 0.0
    %3098 = vmatpush1.msra.mxu0 0.0
    %3099 = vmatprep.subr.mxu0 0.0
    %3100 = vmatpush1.msra.mxu0 0.0
    %3101 = vmatprep.subr.mxu0 0.0
    %3102 = vmatpush1.msra.mxu0 0.0
    %3103 = vmatprep.subr.mxu0 0.0
    %3104 = vmatpush1.msra.mxu0 0.0
    %3105 = vmatprep.subr.mxu0 0.0
    %3106 = vmatpush1.msra.mxu0 0.0
    %3107 = vmatprep.subr.mxu0 0.0
    %3108 = vmatpush1.msra.mxu0 0.0
    %3109 = vmatprep.subr.mxu0 0.0
    %3110 = vmatpush1.msra.mxu0 0.0
    %3111 = vmatprep.subr.mxu0 0.0
    %3112 = vmatpush1.msra.mxu0 0.0
    %3113 = vmatprep.subr.mxu0 0.0
    %3114 = vmatpush1.msra.mxu0 0.0
    %3115 = vmatprep.subr.mxu0 0.0
    %3116 = vmatpush1.msra.mxu0 0.0
    %3117 = vmatprep.mubr.f32.mxu0 0.0
    %3118 = vmatmul.mubr.f32.gmra.mrb[0].mxu0 %v3051
    %v3119 = vpop.f32.mrb[0].mxu0
    %v3120 = vadd.f32 0.0, %v3119
    %v3121 = vpop.f32.mrb[0].mxu0
    %3122 = vdwg.mxu0
    %3123 = vrot.lane.b32.xlu0 %v1968, 64
    %v3124 = vpop.permute.xlu0 %3123
    %v3127 = vsel %vm173, %v2665, 0
    %3129 = vmatprep.subr.mxu0 0.0
    %3130 = vmatpush1.msra.mxu0 %v3124
    %3131 = vmatprep.subr.mxu0 0.0
    %3132 = vmatpush1.msra.mxu0 0.0
    %3133 = vmatprep.subr.mxu0 0.0
    %3134 = vmatpush1.msra.mxu0 0.0
    %3135 = vmatprep.subr.mxu0 0.0
    %3136 = vmatpush1.msra.mxu0 0.0
    %3137 = vmatprep.subr.mxu0 0.0
    %3138 = vmatpush1.msra.mxu0 0.0
    %3139 = vmatprep.subr.mxu0 0.0
    %3140 = vmatpush1.msra.mxu0 0.0
    %3141 = vmatprep.subr.mxu0 0.0
    %3142 = vmatpush1.msra.mxu0 0.0
    %3143 = vmatprep.subr.mxu0 0.0
    %3144 = vmatpush1.msra.mxu0 0.0
    %3145 = vmatprep.subr.mxu0 0.0
    %3146 = vmatpush1.msra.mxu0 0.0
    %3147 = vmatprep.subr.mxu0 0.0
    %3148 = vmatpush1.msra.mxu0 0.0
    %3149 = vmatprep.subr.mxu0 0.0
    %3150 = vmatpush1.msra.mxu0 0.0
    %3151 = vmatprep.subr.mxu0 0.0
    %3152 = vmatpush1.msra.mxu0 0.0
    %3153 = vmatprep.subr.mxu0 0.0
    %3154 = vmatpush1.msra.mxu0 0.0
    %3155 = vmatprep.subr.mxu0 0.0
    %3156 = vmatpush1.msra.mxu0 0.0
    %3157 = vmatprep.subr.mxu0 0.0
    %3158 = vmatpush1.msra.mxu0 0.0
    %3159 = vmatprep.subr.mxu0 0.0
    %3160 = vmatpush1.msra.mxu0 0.0
    %3161 = vmatprep.subr.mxu0 0.0
    %3162 = vmatpush1.msra.mxu0 0.0
    %3163 = vmatprep.subr.mxu0 0.0
    %3164 = vmatpush1.msra.mxu0 0.0
    %3165 = vmatprep.subr.mxu0 0.0
    %3166 = vmatpush1.msra.mxu0 0.0
    %3167 = vmatprep.subr.mxu0 0.0
    %3168 = vmatpush1.msra.mxu0 0.0
    %3169 = vmatprep.subr.mxu0 0.0
    %3170 = vmatpush1.msra.mxu0 0.0
    %3171 = vmatprep.subr.mxu0 0.0
    %3172 = vmatpush1.msra.mxu0 0.0
    %3173 = vmatprep.subr.mxu0 0.0
    %3174 = vmatpush1.msra.mxu0 0.0
    %3175 = vmatprep.subr.mxu0 0.0
    %3176 = vmatpush1.msra.mxu0 0.0
    %3177 = vmatprep.subr.mxu0 0.0
    %3178 = vmatpush1.msra.mxu0 0.0
    %3179 = vmatprep.subr.mxu0 0.0
    %3180 = vmatpush1.msra.mxu0 0.0
    %3181 = vmatprep.subr.mxu0 0.0
    %3182 = vmatpush1.msra.mxu0 0.0
    %3183 = vmatprep.subr.mxu0 0.0
    %3184 = vmatpush1.msra.mxu0 0.0
    %3185 = vmatprep.subr.mxu0 0.0
    %3186 = vmatpush1.msra.mxu0 0.0
    %3187 = vmatprep.subr.mxu0 0.0
    %3188 = vmatpush1.msra.mxu0 0.0
    %3189 = vmatprep.subr.mxu0 0.0
    %3190 = vmatpush1.msra.mxu0 0.0
    %3191 = vmatprep.subr.mxu0 0.0
    %3192 = vmatpush1.msra.mxu0 0.0
    %3193 = vmatprep.mubr.f32.mxu0 0.0
    %3194 = vmatmul.mubr.f32.gmra.mrb[0].mxu0 %v3127
    %v3195 = vpop.f32.mrb[0].mxu0
    %v3196 = vadd.f32 0.0, %v3195
    %v3197 = vpop.f32.mrb[0].mxu0
    %3198 = vdwg.mxu0
    %3199 = vrot.lane.b32.xlu0 %v1970, 64
    %v3200 = vpop.permute.xlu0 %3199
    %v3203 = vsel %vm173, %v2666, 0
    %3205 = vmatprep.subr.mxu0 0.0
    %3206 = vmatpush1.msra.mxu0 %v3200
    %3207 = vmatprep.subr.mxu0 0.0
    %3208 = vmatpush1.msra.mxu0 0.0
    %3209 = vmatprep.subr.mxu0 0.0
    %3210 = vmatpush1.msra.mxu0 0.0
    %3211 = vmatprep.subr.mxu0 0.0
    %3212 = vmatpush1.msra.mxu0 0.0
    %3213 = vmatprep.subr.mxu0 0.0
    %3214 = vmatpush1.msra.mxu0 0.0
    %3215 = vmatprep.subr.mxu0 0.0
    %3216 = vmatpush1.msra.mxu0 0.0
    %3217 = vmatprep.subr.mxu0 0.0
    %3218 = vmatpush1.msra.mxu0 0.0
    %3219 = vmatprep.subr.mxu0 0.0
    %3220 = vmatpush1.msra.mxu0 0.0
    %3221 = vmatprep.subr.mxu0 0.0
    %3222 = vmatpush1.msra.mxu0 0.0
    %3223 = vmatprep.subr.mxu0 0.0
    %3224 = vmatpush1.msra.mxu0 0.0
    %3225 = vmatprep.subr.mxu0 0.0
    %3226 = vmatpush1.msra.mxu0 0.0
    %3227 = vmatprep.subr.mxu0 0.0
    %3228 = vmatpush1.msra.mxu0 0.0
    %3229 = vmatprep.subr.mxu0 0.0
    %3230 = vmatpush1.msra.mxu0 0.0
    %3231 = vmatprep.subr.mxu0 0.0
    %3232 = vmatpush1.msra.mxu0 0.0
    %3233 = vmatprep.subr.mxu0 0.0
    %3234 = vmatpush1.msra.mxu0 0.0
    %3235 = vmatprep.subr.mxu0 0.0
    %3236 = vmatpush1.msra.mxu0 0.0
    %3237 = vmatprep.subr.mxu0 0.0
    %3238 = vmatpush1.msra.mxu0 0.0
    %3239 = vmatprep.subr.mxu0 0.0
    %3240 = vmatpush1.msra.mxu0 0.0
    %3241 = vmatprep.subr.mxu0 0.0
    %3242 = vmatpush1.msra.mxu0 0.0
    %3243 = vmatprep.subr.mxu0 0.0
    %3244 = vmatpush1.msra.mxu0 0.0
    %3245 = vmatprep.subr.mxu0 0.0
    %3246 = vmatpush1.msra.mxu0 0.0
    %3247 = vmatprep.subr.mxu0 0.0
    %3248 = vmatpush1.msra.mxu0 0.0
    %3249 = vmatprep.subr.mxu0 0.0
    %3250 = vmatpush1.msra.mxu0 0.0
    %3251 = vmatprep.subr.mxu0 0.0
    %3252 = vmatpush1.msra.mxu0 0.0
    %3253 = vmatprep.subr.mxu0 0.0
    %3254 = vmatpush1.msra.mxu0 0.0
    %3255 = vmatprep.subr.mxu0 0.0
    %3256 = vmatpush1.msra.mxu0 0.0
    %3257 = vmatprep.subr.mxu0 0.0
    %3258 = vmatpush1.msra.mxu0 0.0
    %3259 = vmatprep.subr.mxu0 0.0
    %3260 = vmatpush1.msra.mxu0 0.0
    %3261 = vmatprep.subr.mxu0 0.0
    %3262 = vmatpush1.msra.mxu0 0.0
    %3263 = vmatprep.subr.mxu0 0.0
    %3264 = vmatpush1.msra.mxu0 0.0
    %3265 = vmatprep.subr.mxu0 0.0
    %3266 = vmatpush1.msra.mxu0 0.0
    %3267 = vmatprep.subr.mxu0 0.0
    %3268 = vmatpush1.msra.mxu0 0.0
    %3269 = vmatprep.mubr.f32.mxu0 0.0
    %3270 = vmatmul.mubr.f32.gmra.mrb[0].mxu0 %v3203
    %v3271 = vpop.f32.mrb[0].mxu0
    %v3272 = vadd.f32 0.0, %v3271
    %v3273 = vpop.f32.mrb[0].mxu0
    %3274 = vdwg.mxu0
    %3276 = vrot.lane.b32.xlu0 %v2816, 8
    %v3277 = vpop.permute.xlu0 %3276
    %3280 = vrot.lane.b32.xlu0 %v2892, 16
    %v3281 = vpop.permute.xlu0 %3280
    %3284 = vrot.lane.b32.xlu0 %v2968, 24
    %v3285 = vpop.permute.xlu0 %3284
    %v3287 = vsel %vm173, %v2740, %v3277
    %v3288 = vsel %vm1489, %v3287, %v3281
    %v3289 = vsel %vm1491, %v3288, %v3285
    %3291 = vrot.lane.b32.xlu0 %v3120, 8
    %v3292 = vpop.permute.xlu0 %3291
    %3295 = vrot.lane.b32.xlu0 %v3196, 16
    %v3296 = vpop.permute.xlu0 %3295
    %3299 = vrot.lane.b32.xlu0 %v3272, 24
    %v3300 = vpop.permute.xlu0 %3299
    %v3302 = vsel %vm173, %v3044, %v3292
    %v3303 = vsel %vm1489, %v3302, %v3296
    %v3304 = vsel %vm1491, %v3303, %v3300
    %v3305 = vlaneseq
    %v3306 = vshrl.u32 %v3305, 7
    %v3307 = vsub.s32 0, %v3306
    %v3308 = vrot.slane %v1856, %v3307
    %v3310 = vsel %vm75, %v3289, 0
    %v3313 = vsel %vm75, %v3304, 0
    %3315 = vmatprep.subr.mxu0 0.0
    %3316 = vmatpush1.msra.mxu0 %v1852
    %3317 = vmatprep.subr.mxu0 0.0
    %3318 = vmatpush1.msra.mxu0 %v1853
    %3319 = vmatprep.subr.mxu0 0.0
    %3320 = vmatpush1.msra.mxu0 %v1854
    %3321 = vmatprep.subr.mxu0 0.0
    %3322 = vmatpush1.msra.mxu0 %v1855
    %3323 = vmatprep.subr.mxu0 0.0
    %3324 = vmatpush1.msra.mxu0 0.0
    %3325 = vmatprep.subr.mxu0 0.0
    %3326 = vmatpush1.msra.mxu0 0.0
    %3327 = vmatprep.subr.mxu0 0.0
    %3328 = vmatpush1.msra.mxu0 0.0
    %3329 = vmatprep.subr.mxu0 0.0
    %3330 = vmatpush1.msra.mxu0 0.0
    %3331 = vmatprep.subr.mxu0 0.0
    %3332 = vmatpush1.msra.mxu0 0.0
    %3333 = vmatprep.subr.mxu0 0.0
    %3334 = vmatpush1.msra.mxu0 0.0
    %3335 = vmatprep.subr.mxu0 0.0
    %3336 = vmatpush1.msra.mxu0 0.0
    %3337 = vmatprep.subr.mxu0 0.0
    %3338 = vmatpush1.msra.mxu0 0.0
    %3339 = vmatprep.subr.mxu0 0.0
    %3340 = vmatpush1.msra.mxu0 0.0
    %3341 = vmatprep.subr.mxu0 0.0
    %3342 = vmatpush1.msra.mxu0 0.0
    %3343 = vmatprep.subr.mxu0 0.0
    %3344 = vmatpush1.msra.mxu0 0.0
    %3345 = vmatprep.subr.mxu0 0.0
    %3346 = vmatpush1.msra.mxu0 0.0
    %3347 = vmatprep.subr.mxu0 0.0
    %3348 = vmatpush1.msra.mxu0 0.0
    %3349 = vmatprep.subr.mxu0 0.0
    %3350 = vmatpush1.msra.mxu0 0.0
    %3351 = vmatprep.subr.mxu0 0.0
    %3352 = vmatpush1.msra.mxu0 0.0
    %3353 = vmatprep.subr.mxu0 0.0
    %3354 = vmatpush1.msra.mxu0 0.0
    %3355 = vmatprep.subr.mxu0 0.0
    %3356 = vmatpush1.msra.mxu0 0.0
    %3357 = vmatprep.subr.mxu0 0.0
    %3358 = vmatpush1.msra.mxu0 0.0
    %3359 = vmatprep.subr.mxu0 0.0
    %3360 = vmatpush1.msra.mxu0 0.0
    %3361 = vmatprep.subr.mxu0 0.0
    %3362 = vmatpush1.msra.mxu0 0.0
    %3363 = vmatprep.subr.mxu0 0.0
    %3364 = vmatpush1.msra.mxu0 0.0
    %3365 = vmatprep.subr.mxu0 0.0
    %3366 = vmatpush1.msra.mxu0 0.0
    %3367 = vmatprep.subr.mxu0 0.0
    %3368 = vmatpush1.msra.mxu0 0.0
    %3369 = vmatprep.subr.mxu0 0.0
    %3370 = vmatpush1.msra.mxu0 0.0
    %3371 = vmatprep.subr.mxu0 0.0
    %3372 = vmatpush1.msra.mxu0 0.0
    %3373 = vmatprep.subr.mxu0 0.0
    %3374 = vmatpush1.msra.mxu0 0.0
    %3375 = vmatprep.subr.mxu0 0.0
    %3376 = vmatpush1.msra.mxu0 0.0
    %3377 = vmatprep.subr.mxu0 0.0
    %3378 = vmatpush1.msra.mxu0 0.0
    %3379 = vmatprep.mubr.f32.mxu0 0.0
    %3380 = vmatmul.mubr.f32.gmra.mrb[0].mxu0 %v3310
    %v3381 = vpop.f32.mrb[0].mxu0
    %v3382 = vadd.f32 %v3308, %v3381
    %v3383 = vpop.f32.mrb[0].mxu0
    %3384 = vmatprep.mubr.f32.mxu0 0.0
    %3385 = vmatmul.mubr.f32.gmra.mrb[0].mxu0 %v3313
    %v3386 = vpop.f32.mrb[0].mxu0
    %v3387 = vadd.f32 %v3308, %v3386
    %v3388 = vpop.f32.mrb[0].mxu0
    %3389 = vdwg.mxu0
    %v3390 = vadd.f32 %v1845, %v3382
    %v3391 = vadd.f32 %v1846, %v3387
    %v3392 = vsel %vm75, %v3390, 0.0
    %3393 = vadd.xlane.f32.xlu0 %v3392
    %v3394 = vpop.xlane.xlu0 %3393
    %v3395 = vsel %vm75, %v3391, 0.0
    %3396 = vadd.xlane.f32.xlu0 %v3395
    %v3397 = vpop.xlane.xlu0 %3396
    %v3398 = vmul.f32 %v3394, %v1601
    %v3399 = vmul.f32 %v3397, %v1601
    %v3400 = vsub.f32 %v3390, %v3398
    %v3401 = vsub.f32 %v3391, %v3399
    %v3402 = vmul.f32 %v3400, %v3400
    %v3403 = vmul.f32 %v3401, %v3401
    %v3404 = vsel %vm75, %v3402, 0.0
    %3405 = vadd.xlane.f32.xlu0 %v3404
    %v3406 = vpop.xlane.xlu0 %3405
    %v3407 = vsel %vm75, %v3403, 0.0
    %3408 = vadd.xlane.f32.xlu0 %v3407
    %v3409 = vpop.xlane.xlu0 %3408
    %v3410 = vmul.f32 %v3406, %v1601
    %v3411 = vmul.f32 %v3409, %v1601
    %v3412 = vadd.f32 %v3410, 1e-05
    %v3413 = vadd.f32 %v3411, 1e-05
    %v3414 = vrsqrt.pop %v3412
    %v3415 = vrsqrt.pop %v3413
    %v3416 = vmul.f32 %v3400, %v3414
    %v3417 = vmul.f32 %v3401, %v3415
    %v3418 = vlaneseq
    %v3419 = vshrl.u32 %v3418, 7
    %v3420 = vsub.s32 0, %v3419
    %v3421 = vrot.slane %v1871, %v3420
    %v3422 = vmul.f32 %v3416, %v3421
    %v3423 = vmul.f32 %v3417, %v3421
    %v3424 = vlaneseq
    %v3425 = vshrl.u32 %v3424, 7
    %v3426 = vsub.s32 1, %v3425
    %v3427 = vrot.slane %v1871, %v3426
    %v3428 = vadd.f32 %v3422, %v3427
    %v3429 = vadd.f32 %v3423, %v3427
    %v3430 = vlaneseq
    %v3431 = vshrl.u32 %v3430, 7
    %v3432 = vsub.s32 0, %v3431
    %v3433 = vrot.slane %v1861, %v3432
    %v3435 = vsel %vm75, %v3428, 0
    %v3438 = vsel %vm75, %v3429, 0
    %3440 = vmatprep.subr.mxu0 0.0
    %3441 = vmatpush1.msra.mxu0 %v1857
    %3442 = vmatprep.subr.mxu0 0.0
    %3443 = vmatpush1.msra.mxu0 %v1858
    %3444 = vmatprep.subr.mxu0 0.0
    %3445 = vmatpush1.msra.mxu0 %v1859
    %3446 = vmatprep.subr.mxu0 0.0
    %3447 = vmatpush1.msra.mxu0 %v1860
    %3448 = vmatprep.subr.mxu0 0.0
    %3449 = vmatpush1.msra.mxu0 0.0
    %3450 = vmatprep.subr.mxu0 0.0
    %3451 = vmatpush1.msra.mxu0 0.0
    %3452 = vmatprep.subr.mxu0 0.0
    %3453 = vmatpush1.msra.mxu0 0.0
    %3454 = vmatprep.subr.mxu0 0.0
    %3455 = vmatpush1.msra.mxu0 0.0
    %3456 = vmatprep.subr.mxu0 0.0
    %3457 = vmatpush1.msra.mxu0 0.0
    %3458 = vmatprep.subr.mxu0 0.0
    %3459 = vmatpush1.msra.mxu0 0.0
    %3460 = vmatprep.subr.mxu0 0.0
    %3461 = vmatpush1.msra.mxu0 0.0
    %3462 = vmatprep.subr.mxu0 0.0
    %3463 = vmatpush1.msra.mxu0 0.0
    %3464 = vmatprep.subr.mxu0 0.0
    %3465 = vmatpush1.msra.mxu0 0.0
    %3466 = vmatprep.subr.mxu0 0.0
    %3467 = vmatpush1.msra.mxu0 0.0
    %3468 = vmatprep.subr.mxu0 0.0
    %3469 = vmatpush1.msra.mxu0 0.0
    %3470 = vmatprep.subr.mxu0 0.0
    %3471 = vmatpush1.msra.mxu0 0.0
    %3472 = vmatprep.subr.mxu0 0.0
    %3473 = vmatpush1.msra.mxu0 0.0
    %3474 = vmatprep.subr.mxu0 0.0
    %3475 = vmatpush1.msra.mxu0 0.0
    %3476 = vmatprep.subr.mxu0 0.0
    %3477 = vmatpush1.msra.mxu0 0.0
    %3478 = vmatprep.subr.mxu0 0.0
    %3479 = vmatpush1.msra.mxu0 0.0
    %3480 = vmatprep.subr.mxu0 0.0
    %3481 = vmatpush1.msra.mxu0 0.0
    %3482 = vmatprep.subr.mxu0 0.0
    %3483 = vmatpush1.msra.mxu0 0.0
    %3484 = vmatprep.subr.mxu0 0.0
    %3485 = vmatpush1.msra.mxu0 0.0
    %3486 = vmatprep.subr.mxu0 0.0
    %3487 = vmatpush1.msra.mxu0 0.0
    %3488 = vmatprep.subr.mxu0 0.0
    %3489 = vmatpush1.msra.mxu0 0.0
    %3490 = vmatprep.subr.mxu0 0.0
    %3491 = vmatpush1.msra.mxu0 0.0
    %3492 = vmatprep.subr.mxu0 0.0
    %3493 = vmatpush1.msra.mxu0 0.0
    %3494 = vmatprep.subr.mxu0 0.0
    %3495 = vmatpush1.msra.mxu0 0.0
    %3496 = vmatprep.subr.mxu0 0.0
    %3497 = vmatpush1.msra.mxu0 0.0
    %3498 = vmatprep.subr.mxu0 0.0
    %3499 = vmatpush1.msra.mxu0 0.0
    %3500 = vmatprep.subr.mxu0 0.0
    %3501 = vmatpush1.msra.mxu0 0.0
    %3502 = vmatprep.subr.mxu0 0.0
    %3503 = vmatpush1.msra.mxu0 0.0
    %3504 = vmatprep.mubr.f32.mxu0 0.0
    %3505 = vmatmul.mubr.f32.gmra.mrb[0].mxu0 %v3435
    %v3506 = vpop.f32.mrb[0].mxu0
    %v3507 = vadd.f32 %v3433, %v3506
    %v3508 = vpop.f32.mrb[0].mxu0
    %3509 = vmatprep.mubr.f32.mxu0 0.0
    %3510 = vmatmul.mubr.f32.gmra.mrb[0].mxu0 %v3438
    %v3511 = vpop.f32.mrb[0].mxu0
    %v3512 = vadd.f32 %v3433, %v3511
    %v3513 = vpop.f32.mrb[0].mxu0
    %3514 = vdwg.mxu0
    %v3515 = vmax.f32 %v3507, 0.0
    %v3516 = vmax.f32 %v3512, 0.0
    %v3517 = vlaneseq
    %v3518 = vshrl.u32 %v3517, 7
    %v3519 = vsub.s32 0, %v3518
    %v3520 = vrot.slane %v1870, %v3519
    %v3522 = vsel %vm1725, %v3515, 0
    %v3525 = vsel %vm1725, %v3516, 0
    %3527 = vmatprep.subr.mxu0 0.0
    %3528 = vmatpush1.msra.mxu0 %v1862
    %3529 = vmatprep.subr.mxu0 0.0
    %3530 = vmatpush1.msra.mxu0 %v1863
    %3531 = vmatprep.subr.mxu0 0.0
    %3532 = vmatpush1.msra.mxu0 %v1864
    %3533 = vmatprep.subr.mxu0 0.0
    %3534 = vmatpush1.msra.mxu0 %v1865
    %3535 = vmatprep.subr.mxu0 0.0
    %3536 = vmatpush1.msra.mxu0 %v1866
    %3537 = vmatprep.subr.mxu0 0.0
    %3538 = vmatpush1.msra.mxu0 %v1867
    %3539 = vmatprep.subr.mxu0 0.0
    %3540 = vmatpush1.msra.mxu0 %v1868
    %3541 = vmatprep.subr.mxu0 0.0
    %3542 = vmatpush1.msra.mxu0 %v1869
    %3543 = vmatprep.subr.mxu0 0.0
    %3544 = vmatpush1.msra.mxu0 0.0
    %3545 = vmatprep.subr.mxu0 0.0
    %3546 = vmatpush1.msra.mxu0 0.0
    %3547 = vmatprep.subr.mxu0 0.0
    %3548 = vmatpush1.msra.mxu0 0.0
    %3549 = vmatprep.subr.mxu0 0.0
    %3550 = vmatpush1.msra.mxu0 0.0
    %3551 = vmatprep.subr.mxu0 0.0
    %3552 = vmatpush1.msra.mxu0 0.0
    %3553 = vmatprep.subr.mxu0 0.0
    %3554 = vmatpush1.msra.mxu0 0.0
    %3555 = vmatprep.subr.mxu0 0.0
    %3556 = vmatpush1.msra.mxu0 0.0
    %3557 = vmatprep.subr.mxu0 0.0
    %3558 = vmatpush1.msra.mxu0 0.0
    %3559 = vmatprep.subr.mxu0 0.0
    %3560 = vmatpush1.msra.mxu0 0.0
    %3561 = vmatprep.subr.mxu0 0.0
    %3562 = vmatpush1.msra.mxu0 0.0
    %3563 = vmatprep.subr.mxu0 0.0
    %3564 = vmatpush1.msra.mxu0 0.0
    %3565 = vmatprep.subr.mxu0 0.0
    %3566 = vmatpush1.msra.mxu0 0.0
    %3567 = vmatprep.subr.mxu0 0.0
    %3568 = vmatpush1.msra.mxu0 0.0
    %3569 = vmatprep.subr.mxu0 0.0
    %3570 = vmatpush1.msra.mxu0 0.0
    %3571 = vmatprep.subr.mxu0 0.0
    %3572 = vmatpush1.msra.mxu0 0.0
    %3573 = vmatprep.subr.mxu0 0.0
    %3574 = vmatpush1.msra.mxu0 0.0
    %3575 = vmatprep.subr.mxu0 0.0
    %3576 = vmatpush1.msra.mxu0 0.0
    %3577 = vmatprep.subr.mxu0 0.0
    %3578 = vmatpush1.msra.mxu0 0.0
    %3579 = vmatprep.subr.mxu0 0.0
    %3580 = vmatpush1.msra.mxu0 0.0
    %3581 = vmatprep.subr.mxu0 0.0
    %3582 = vmatpush1.msra.mxu0 0.0
    %3583 = vmatprep.subr.mxu0 0.0
    %3584 = vmatpush1.msra.mxu0 0.0
    %3585 = vmatprep.subr.mxu0 0.0
    %3586 = vmatpush1.msra.mxu0 0.0
    %3587 = vmatprep.subr.mxu0 0.0
    %3588 = vmatpush1.msra.mxu0 0.0
    %3589 = vmatprep.subr.mxu0 0.0
    %3590 = vmatpush1.msra.mxu0 0.0
    %3591 = vmatprep.mubr.f32.mxu0 0.0
    %3592 = vmatmul.mubr.f32.gmra.mrb[0].mxu0 %v3522
    %v3593 = vpop.f32.mrb[0].mxu0
    %v3594 = vadd.f32 %v3520, %v3593
    %v3595 = vpop.f32.mrb[0].mxu0
    %3596 = vmatprep.mubr.f32.mxu0 0.0
    %3597 = vmatmul.mubr.f32.gmra.mrb[0].mxu0 %v3525
    %v3598 = vpop.f32.mrb[0].mxu0
    %v3599 = vadd.f32 %v3520, %v3598
    %v3600 = vpop.f32.mrb[0].mxu0
    %3601 = vdwg.mxu0
    %v3602 = vadd.f32 %v3428, %v3594
    %v3603 = vadd.f32 %v3429, %v3599
    %v3604 = vsel %vm75, %v3602, 0.0
    %3605 = vadd.xlane.f32.xlu0 %v3604
    %v3606 = vpop.xlane.xlu0 %3605
    %v3607 = vsel %vm75, %v3603, 0.0
    %3608 = vadd.xlane.f32.xlu0 %v3607
    %v3609 = vpop.xlane.xlu0 %3608
    %v3610 = vmul.f32 %v3606, %v1601
    %v3611 = vmul.f32 %v3609, %v1601
    %v3612 = vsub.f32 %v3602, %v3610
    %v3613 = vsub.f32 %v3603, %v3611
    %v3614 = vmul.f32 %v3612, %v3612
    %v3615 = vmul.f32 %v3613, %v3613
    %v3616 = vsel %vm75, %v3614, 0.0
    %3617 = vadd.xlane.f32.xlu0 %v3616
    %v3618 = vpop.xlane.xlu0 %3617
    %v3619 = vsel %vm75, %v3615, 0.0
    %3620 = vadd.xlane.f32.xlu0 %v3619
    %v3621 = vpop.xlane.xlu0 %3620
    %v3622 = vmul.f32 %v3618, %v1601
    %v3623 = vmul.f32 %v3621, %v1601
    %v3624 = vadd.f32 %v3622, 1e-05
    %v3625 = vadd.f32 %v3623, 1e-05
    %v3626 = vrsqrt.pop %v3624
    %v3627 = vrsqrt.pop %v3625
    %v3628 = vmul.f32 %v3612, %v3626
    %v3629 = vmul.f32 %v3613, %v3627
    %v3630 = vlaneseq
    %v3631 = vshrl.u32 %v3630, 7
    %v3632 = vsub.s32 2, %v3631
    %v3633 = vrot.slane %v1871, %v3632
    %v3634 = vmul.f32 %v3628, %v3633
    %v3635 = vmul.f32 %v3629, %v3633
    %v3636 = vlaneseq
    %v3637 = vshrl.u32 %v3636, 7
    %v3638 = vsub.s32 3, %v3637
    %v3639 = vrot.slane %v1871, %v3638
    %v3640 = vadd.f32 %v3634, %v3639
    %v3641 = vadd.f32 %v3635, %v3639
    %v3642 = vld [vmem:[#allocation5 + $0x10] sm:$0xff]
    %v3643 = vld [vmem:[#allocation5 + $0x18] sm:$0xff]
    %v3644 = vld [vmem:[#allocation5 + $0x20] sm:$0xff]
    %v3645 = vld [vmem:[#allocation5 + $0x28] sm:$0xff]
    %v3647 = vsel %vm75, %v3640, 0
    %v3650 = vsel %vm75, %v3641, 0
    %3652 = vmatprep.subr.mxu0 0.0
    %3653 = vmatpush1.msra.mxu0 %v3642
    %3654 = vmatprep.subr.mxu0 0.0
    %3655 = vmatpush1.msra.mxu0 %v3643
    %3656 = vmatprep.subr.mxu0 0.0
    %3657 = vmatpush1.msra.mxu0 %v3644
    %3658 = vmatprep.subr.mxu0 0.0
    %3659 = vmatpush1.msra.mxu0 %v3645
    %3660 = vmatprep.subr.mxu0 0.0
    %3661 = vmatpush1.msra.mxu0 0.0
    %3662 = vmatprep.subr.mxu0 0.0
    %3663 = vmatpush1.msra.mxu0 0.0
    %3664 = vmatprep.subr.mxu0 0.0
    %3665 = vmatpush1.msra.mxu0 0.0
    %3666 = vmatprep.subr.mxu0 0.0
    %3667 = vmatpush1.msra.mxu0 0.0
    %3668 = vmatprep.subr.mxu0 0.0
    %3669 = vmatpush1.msra.mxu0 0.0
    %3670 = vmatprep.subr.mxu0 0.0
    %3671 = vmatpush1.msra.mxu0 0.0
    %3672 = vmatprep.subr.mxu0 0.0
    %3673 = vmatpush1.msra.mxu0 0.0
    %3674 = vmatprep.subr.mxu0 0.0
    %3675 = vmatpush1.msra.mxu0 0.0
    %3676 = vmatprep.subr.mxu0 0.0
    %3677 = vmatpush1.msra.mxu0 0.0
    %3678 = vmatprep.subr.mxu0 0.0
    %3679 = vmatpush1.msra.mxu0 0.0
    %3680 = vmatprep.subr.mxu0 0.0
    %3681 = vmatpush1.msra.mxu0 0.0
    %3682 = vmatprep.subr.mxu0 0.0
    %3683 = vmatpush1.msra.mxu0 0.0
    %3684 = vmatprep.subr.mxu0 0.0
    %3685 = vmatpush1.msra.mxu0 0.0
    %3686 = vmatprep.subr.mxu0 0.0
    %3687 = vmatpush1.msra.mxu0 0.0
    %3688 = vmatprep.subr.mxu0 0.0
    %3689 = vmatpush1.msra.mxu0 0.0
    %3690 = vmatprep.subr.mxu0 0.0
    %3691 = vmatpush1.msra.mxu0 0.0
    %3692 = vmatprep.subr.mxu0 0.0
    %3693 = vmatpush1.msra.mxu0 0.0
    %3694 = vmatprep.subr.mxu0 0.0
    %3695 = vmatpush1.msra.mxu0 0.0
    %3696 = vmatprep.subr.mxu0 0.0
    %3697 = vmatpush1.msra.mxu0 0.0
    %3698 = vmatprep.subr.mxu0 0.0
    %3699 = vmatpush1.msra.mxu0 0.0
    %3700 = vmatprep.subr.mxu0 0.0
    %3701 = vmatpush1.msra.mxu0 0.0
    %3702 = vmatprep.subr.mxu0 0.0
    %3703 = vmatpush1.msra.mxu0 0.0
    %3704 = vmatprep.subr.mxu0 0.0
    %3705 = vmatpush1.msra.mxu0 0.0
    %3706 = vmatprep.subr.mxu0 0.0
    %3707 = vmatpush1.msra.mxu0 0.0
    %3708 = vmatprep.subr.mxu0 0.0
    %3709 = vmatpush1.msra.mxu0 0.0
    %3710 = vmatprep.subr.mxu0 0.0
    %3711 = vmatpush1.msra.mxu0 0.0
    %3712 = vmatprep.subr.mxu0 0.0
    %3713 = vmatpush1.msra.mxu0 0.0
    %3714 = vmatprep.subr.mxu0 0.0
    %3715 = vmatpush1.msra.mxu0 0.0
    %3716 = vmatprep.mubr.f32.mxu0 0.0
    %3717 = vmatmul.mubr.f32.gmra.mrb[0].mxu0 %v3647
    %v3718 = vpop.f32.mrb[0].mxu0
    %v3719 = vadd.f32 0.0, %v3718
    %v3720 = vpop.f32.mrb[0].mxu0
    %3721 = vmatprep.mubr.f32.mxu0 0.0
    %3722 = vmatmul.mubr.f32.gmra.mrb[0].mxu0 %v3650
    %v3723 = vpop.f32.mrb[0].mxu0
    %v3724 = vadd.f32 0.0, %v3723
    %v3725 = vpop.f32.mrb[0].mxu0
    %3726 = vdwg.mxu0
    %v3727 = vld [vmem:[#allocation5 + $0x30] sm:$0xff]
    %v3728 = vld [vmem:[#allocation5 + $0x38] sm:$0xff]
    %v3729 = vmul.f32 %v3719, %v3727
    %v3730 = vmul.f32 %v3724, %v3728
    %v3731 = vld [vmem:[#allocation5 + $0x40] sm:$0xff]
    %v3732 = vld [vmem:[#allocation5 + $0x48] sm:$0xff]
    %v3733 = vld [vmem:[#allocation5 + $0x50] sm:$0xff]
    %v3734 = vld [vmem:[#allocation5 + $0x58] sm:$0xff]
    %v3735 = vld [vmem:[#allocation5 + $0x60] sm:$0xff]
    %vm3736 = vcmask 326656
    %v3738 = vsel %vm3736, %v3729, 0
    %v3741 = vsel %vm3736, %v3730, 0
    %3743 = vmatprep.subr.mxu0 0.0
    %3744 = vmatpush1.msra.mxu0 %v3731
    %3745 = vmatprep.subr.mxu0 0.0
    %3746 = vmatpush1.msra.mxu0 %v3732
    %3747 = vmatprep.subr.mxu0 0.0
    %3748 = vmatpush1.msra.mxu0 %v3733
    %3749 = vmatprep.subr.mxu0 0.0
    %3750 = vmatpush1.msra.mxu0 %v3734
    %3751 = vmatprep.subr.mxu0 0.0
    %3752 = vmatpush1.msra.mxu0 %v3735
    %3753 = vmatprep.subr.mxu0 0.0
    %3754 = vmatpush1.msra.mxu0 0.0
    %3755 = vmatprep.subr.mxu0 0.0
    %3756 = vmatpush1.msra.mxu0 0.0
    %3757 = vmatprep.subr.mxu0 0.0
    %3758 = vmatpush1.msra.mxu0 0.0
    %3759 = vmatprep.subr.mxu0 0.0
    %3760 = vmatpush1.msra.mxu0 0.0
    %3761 = vmatprep.subr.mxu0 0.0
    %3762 = vmatpush1.msra.mxu0 0.0
    %3763 = vmatprep.subr.mxu0 0.0
    %3764 = vmatpush1.msra.mxu0 0.0
    %3765 = vmatprep.subr.mxu0 0.0
    %3766 = vmatpush1.msra.mxu0 0.0
    %3767 = vmatprep.subr.mxu0 0.0
    %3768 = vmatpush1.msra.mxu0 0.0
    %3769 = vmatprep.subr.mxu0 0.0
    %3770 = vmatpush1.msra.mxu0 0.0
    %3771 = vmatprep.subr.mxu0 0.0
    %3772 = vmatpush1.msra.mxu0 0.0
    %3773 = vmatprep.subr.mxu0 0.0
    %3774 = vmatpush1.msra.mxu0 0.0
    %3775 = vmatprep.subr.mxu0 0.0
    %3776 = vmatpush1.msra.mxu0 0.0
    %3777 = vmatprep.subr.mxu0 0.0
    %3778 = vmatpush1.msra.mxu0 0.0
    %3779 = vmatprep.subr.mxu0 0.0
    %3780 = vmatpush1.msra.mxu0 0.0
    %3781 = vmatprep.subr.mxu0 0.0
    %3782 = vmatpush1.msra.mxu0 0.0
    %3783 = vmatprep.subr.mxu0 0.0
    %3784 = vmatpush1.msra.mxu0 0.0
    %3785 = vmatprep.subr.mxu0 0.0
    %3786 = vmatpush1.msra.mxu0 0.0
    %3787 = vmatprep.subr.mxu0 0.0
    %3788 = vmatpush1.msra.mxu0 0.0
    %3789 = vmatprep.subr.mxu0 0.0
    %3790 = vmatpush1.msra.mxu0 0.0
    %3791 = vmatprep.subr.mxu0 0.0
    %3792 = vmatpush1.msra.mxu0 0.0
    %3793 = vmatprep.subr.mxu0 0.0
    %3794 = vmatpush1.msra.mxu0 0.0
    %3795 = vmatprep.subr.mxu0 0.0
    %3796 = vmatpush1.msra.mxu0 0.0
    %3797 = vmatprep.subr.mxu0 0.0
    %3798 = vmatpush1.msra.mxu0 0.0
    %3799 = vmatprep.subr.mxu0 0.0
    %3800 = vmatpush1.msra.mxu0 0.0
    %3801 = vmatprep.subr.mxu0 0.0
    %3802 = vmatpush1.msra.mxu0 0.0
    %3803 = vmatprep.subr.mxu0 0.0
    %3804 = vmatpush1.msra.mxu0 0.0
    %3805 = vmatprep.subr.mxu0 0.0
    %3806 = vmatpush1.msra.mxu0 0.0
    %3807 = vmatprep.mubr.f32.mxu0 0.0
    %3808 = vmatmul.mubr.f32.gmra.mrb[0].mxu0 %v3738
    %v3809 = vpop.f32.mrb[0].mxu0
    %v3810 = vadd.f32 0.0, %v3809
    %v3811 = vpop.f32.mrb[0].mxu0
    %3812 = vmatprep.mubr.f32.mxu0 0.0
    %3813 = vmatmul.mubr.f32.gmra.mrb[0].mxu0 %v3741
    %v3814 = vpop.f32.mrb[0].mxu0
    %v3815 = vadd.f32 0.0, %v3814
    %v3816 = vpop.f32.mrb[0].mxu0
    %3817 = vdwg.mxu0
    %v3818 = vld [vmem:[#allocation5 + $0x68] sm:$0x3]
    %v3819 = vld [vmem:[#allocation5 + $0x70] sm:$0x1]
    %v3820 = vlaneseq
    %v3821 = vshrl.u32 %v3820, 7
    %v3822 = vsub.s32 0, %v3821
    %v3823 = vrot.slane %v3819, %v3822
    %v3825 = vsel %vm1489, %v3818, 0
    %3827 = vmatprep.subr.mxu0 0.0
    %3828 = vmatpush1.msra.mxu0 %v3810
    %3829 = vmatprep.subr.mxu0 0.0
    %3830 = vmatpush1.msra.mxu0 %v3815
    %3831 = vmatprep.subr.mxu0 0.0
    %3832 = vmatpush1.msra.mxu0 0.0
    %3833 = vmatprep.subr.mxu0 0.0
    %3834 = vmatpush1.msra.mxu0 0.0
    %3835 = vmatprep.subr.mxu0 0.0
    %3836 = vmatpush1.msra.mxu0 0.0
    %3837 = vmatprep.subr.mxu0 0.0
    %3838 = vmatpush1.msra.mxu0 0.0
    %3839 = vmatprep.subr.mxu0 0.0
    %3840 = vmatpush1.msra.mxu0 0.0
    %3841 = vmatprep.subr.mxu0 0.0
    %3842 = vmatpush1.msra.mxu0 0.0
    %3843 = vmatprep.subr.mxu0 0.0
    %3844 = vmatpush1.msra.mxu0 0.0
    %3845 = vmatprep.subr.mxu0 0.0
    %3846 = vmatpush1.msra.mxu0 0.0
    %3847 = vmatprep.subr.mxu0 0.0
    %3848 = vmatpush1.msra.mxu0 0.0
    %3849 = vmatprep.subr.mxu0 0.0
    %3850 = vmatpush1.msra.mxu0 0.0
    %3851 = vmatprep.subr.mxu0 0.0
    %3852 = vmatpush1.msra.mxu0 0.0
    %3853 = vmatprep.subr.mxu0 0.0
    %3854 = vmatpush1.msra.mxu0 0.0
    %3855 = vmatprep.subr.mxu0 0.0
    %3856 = vmatpush1.msra.mxu0 0.0
    %3857 = vmatprep.subr.mxu0 0.0
    %3858 = vmatpush1.msra.mxu0 0.0
    %3859 = vmatprep.subr.mxu0 0.0
    %3860 = vmatpush1.msra.mxu0 0.0
    %3861 = vmatprep.subr.mxu0 0.0
    %3862 = vmatpush1.msra.mxu0 0.0
    %3863 = vmatprep.subr.mxu0 0.0
    %3864 = vmatpush1.msra.mxu0 0.0
    %3865 = vmatprep.subr.mxu0 0.0
    %3866 = vmatpush1.msra.mxu0 0.0
    %3867 = vmatprep.subr.mxu0 0.0
    %3868 = vmatpush1.msra.mxu0 0.0
    %3869 = vmatprep.subr.mxu0 0.0
    %3870 = vmatpush1.msra.mxu0 0.0
    %3871 = vmatprep.subr.mxu0 0.0
    %3872 = vmatpush1.msra.mxu0 0.0
    %3873 = vmatprep.subr.mxu0 0.0
    %3874 = vmatpush1.msra.mxu0 0.0
    %3875 = vmatprep.subr.mxu0 0.0
    %3876 = vmatpush1.msra.mxu0 0.0
    %3877 = vmatprep.subr.mxu0 0.0
    %3878 = vmatpush1.msra.mxu0 0.0
    %3879 = vmatprep.subr.mxu0 0.0
    %3880 = vmatpush1.msra.mxu0 0.0
    %3881 = vmatprep.subr.mxu0 0.0
    %3882 = vmatpush1.msra.mxu0 0.0
    %3883 = vmatprep.subr.mxu0 0.0
    %3884 = vmatpush1.msra.mxu0 0.0
    %3885 = vmatprep.subr.mxu0 0.0
    %3886 = vmatpush1.msra.mxu0 0.0
    %3887 = vmatprep.subr.mxu0 0.0
    %3888 = vmatpush1.msra.mxu0 0.0
    %3889 = vmatprep.subr.mxu0 0.0
    %3890 = vmatpush1.msra.mxu0 0.0
    %3891 = vmatprep.mubr.f32.mxu0 0.0
    %3892 = vmatmul.mubr.f32.gmra.mrb[0].mxu0 %v3825
    %v3893 = vpop.f32.mrb[0].mxu0
    %v3894 = vadd.f32 %v3823, %v3893
    %v3895 = vpop.f32.mrb[0].mxu0
    %3896 = vdwg.mxu0
    %vm3897 = vcmask 33792
    %3898 = vst.msk [vmem:[#allocation7] sm:$0x3] %vm3897, %v3894
    // Predicated region
    $region18: #{forward.1} parent=1 // pred_check
      _
    $region19: #{forward.1} parent=1 // pred_check_branch
      %3900 = sbr.rel (0) target = $region21
    $region20: #{forward.1} parent=1 // pred_region
      %s3902 = ssub.s32 32, 32
      %3903 = vsyncadd [#allocation4], %s3902
      %s3905 = sshll.u32 [#allocation7], 4
      %s3906 = int_to_ptr.vmem [resolvable:$true] %s3905
      %3908 = dma.vmem_to_hbm [thread:$0]  %s3906, 32, %s2, [#allocation4]
    $region21: #{forward.1} parent=1 // pred_fallthru
      _
    // Predicated region
    $region22: #{forward.1} parent=1 // pred_check
      _
    $region23: #{forward.1} parent=1 // pred_check_branch
      %3910 = sbr.rel (0) target = $region25
    $region24: #{forward.1} parent=1 // pred_region
      %3911 = dma.done [#allocation4], 32
    $region25: #{forward.1} parent=1 // pred_fallthru
      _
    %3912 = vsyncpa [#allocation3], 1
    %3913 = vsyncpa [#allocation6], 1
    %3914 = vsyncpa [#allocation4], 1

</llo_original>
